<compile_context>
chip_gen: v7x
topology: tpu7x:2x2x1
jax: 0.10.0
libtpu: 0.0.40
codegen_flags: <defaults>
</compile_context>

<pallas_src>
import jax
import jax.numpy as jnp
from jax.experimental import pallas as pl
from jax.experimental.pallas import tpu as pltpu

C_IN, HID, OUT = 21, 250, 4
KW = 5                 # kernel width (kernel_size=(1,5))
PAD = 2                # padding=(0,2)
HID_PAD = 256          # lane-dense hidden dim (zero-padded, exact semantics)


def _model_kernel(x1_ref, w1_ref, b1_ref, w2_ref, b2_ref, w3_ref, b3_ref,
                  wfc_ref, bfc_ref, out_ref, buf):
    """Whole forward pass in one grid step (batch folded into the matmul M dim).

    x1_ref : (W*B*H, 128)     im2col'd padded input, rows ordered (w, b, h)
    w1_ref : (128, HID_PAD)   ; b1_ref : (1, HID_PAD)
    w2/w3  : (KW, HID_PAD, HID_PAD) ; b2/b3 : (1, HID_PAD)
    wfc_ref: (HID_PAD, OUT)   ; bfc_ref: (1, OUT)
    out_ref: (B, OUT)
    buf    : (W + 2*PAD, B*H, HID_PAD) scratch; activation at spatial
             position w lives at leading index PAD + w; leading rows
             [0, PAD) and [PAD+W, PAD+W+PAD) are the zero padding read by
             the shifted conv taps.
    """
    M = buf.shape[1]                 # B*H
    HP = buf.shape[2]                # HID_PAD
    MW = x1_ref.shape[0]             # W*B*H rows fed to every matmul
    W = MW // M
    B = out_ref.shape[0]
    H = M // B

    def elu(v):
        # exp lives in the EUP slot; alpha=1 ELU.
        return jnp.where(v > 0, v, jnp.exp(jnp.minimum(v, 0.0)) - 1.0)

    def conv_taps(w_ref, b_ref):
        # Five shifted (W*B*H, HP) @ (HP, HP) MXU matmuls over the padded
        # buffer.  Tap k is a leading-axis (tile-granular) slice: no
        # relayout, no sublane rotation.
        def tap(k):
            xs = buf[k:k + W].reshape(MW, HP)
            return jnp.dot(xs, w_ref[k], preferred_element_type=jnp.float32)
        acc = tap(0) + b_ref[...]    # fold the bias into the first partial sum
        for k in range(1, KW):
            acc = acc + tap(k)
        return acc

    # conv_1 : single fused im2col matmul (K padded to 128) -> ELU -> Dropout2d(eval)
    y1 = elu(jnp.dot(x1_ref[...], w1_ref[...],
                     preferred_element_type=jnp.float32) + b1_ref[...])

    # Zero only the 2 left + 2 right pad rows the shifted taps read.
    buf[0:PAD] = jnp.zeros((PAD, M, HP), jnp.float32)
    buf[PAD + W:PAD + W + PAD] = jnp.zeros((PAD, M, HP), jnp.float32)

    # conv_2 : Conv2d -> ELU -> Dropout2d(eval)
    buf[PAD:PAD + W] = y1.reshape(W, M, HP)          # tile-identity reshape/store
    y2 = elu(conv_taps(w2_ref, b2_ref))

    # conv : Conv2d (no activation); scratch buffer reused in place.
    buf[PAD:PAD + W] = y2.reshape(W, M, HP)
    y3 = conv_taps(w3_ref, b3_ref)                   # (W*B*H, HP)

    # AdaptiveAvgPool2d((1,1)) + flatten + Linear.
    # Big reduction over W is along the leading (cheap) axis; the tiny
    # per-batch H reduction touches a single (8, lanes) tile.
    pooled_m = jnp.sum(y3.reshape(W, M, HP), axis=0)                     # (M, HP)
    pooled = jnp.sum(pooled_m.reshape(B, H, HP), axis=1) * (1.0 / (H * W))
    out_ref[...] = (jnp.dot(pooled, wfc_ref[...],
                            preferred_element_type=jnp.float32) + bfc_ref[...])


def my_architecture_forward(x_nchw, params):
    """x_nchw: (B, 21, H, W) float32, PyTorch NCHW layout."""
    w1, b1, w2, b2, w3, b3, wfc, bfc = params
    B, C, H, W = x_nchw.shape
    assert C == C_IN

    HP = HID_PAD
    K1 = KW * C_IN                      # 105
    K1P = ((K1 + 127) // 128) * 128     # 128

    # Layout plumbing in plain JAX: NCHW -> NHWC, pad W, im2col the (1,5)
    # window with rows ordered (w, b, h) so the in-kernel scratch buffer has
    # the spatial axis leading (tile-granular tap slices).
    x = jnp.transpose(x_nchw, (0, 2, 3, 1))                           # (B, H, W, C)
    x_pad = jnp.pad(x, ((0, 0), (0, 0), (PAD, PAD), (0, 0)))          # (B, H, W+4, C)
    cols = jnp.stack([x_pad[:, :, k:k + W, :] for k in range(KW)], axis=3)  # (B,H,W,KW,C)
    x1 = jnp.transpose(cols, (2, 0, 1, 3, 4)).reshape(W * B * H, K1)  # rows (w,b,h)
    x1 = jnp.pad(x1, ((0, 0), (0, K1P - K1)))                         # (W*B*H, 128)

    # Zero-pad the hidden dim to 256 (exact: ELU(0)=0, FC pad rows are 0).
    dh = HP - HID
    w1f = jnp.pad(w1.reshape(K1, HID), ((0, K1P - K1), (0, dh)))      # (128, 256)
    w2p = jnp.pad(w2, ((0, 0), (0, dh), (0, dh)))                     # (5, 256, 256)
    w3p = jnp.pad(w3, ((0, 0), (0, dh), (0, dh)))
    wfcp = jnp.pad(wfc, ((0, dh), (0, 0)))                            # (256, OUT)
    b1p = jnp.pad(b1, (0, dh)).reshape(1, HP)
    b2p = jnp.pad(b2, (0, dh)).reshape(1, HP)
    b3p = jnp.pad(b3, (0, dh)).reshape(1, HP)
    bfcp = bfc.reshape(1, OUT)

    M = B * H
    W_BUF = W + 2 * PAD                 # leading axis: no alignment constraint

    const2 = lambda shape: pl.BlockSpec(shape, lambda i: (0, 0))
    const3 = lambda shape: pl.BlockSpec(shape, lambda i: (0, 0, 0))

    # Single grid step: the whole (small) batch is folded into the matmul M
    # dim.  For large B, tile the batch with a "parallel" grid axis and
    # per-tile output blocks instead.
    out = pl.pallas_call(
        _model_kernel,
        out_shape=jax.ShapeDtypeStruct((B, OUT), jnp.float32),
        grid=(1,),
        in_specs=[
            const2((W * B * H, K1P)),
            const2((K1P, HP)),        const2((1, HP)),
            const3((KW, HP, HP)),     const2((1, HP)),
            const3((KW, HP, HP)),     const2((1, HP)),
            const2((HP, OUT)),        const2((1, OUT)),
        ],
        out_specs=pl.BlockSpec((B, OUT), lambda i: (0, 0)),
        scratch_shapes=[pltpu.VMEM((W_BUF, M, HP), jnp.float32)],
        compiler_params=pltpu.CompilerParams(
            dimension_semantics=("arbitrary",)),
    )(x1, w1f, b1p, w2p, b2p, w3p, b3p, wfcp, bfcp)
    return out


def init_params(key):
    ks = jax.random.split(key, 8)
    s = 0.1
    w1 = s * jax.random.normal(ks[0], (KW, C_IN, HID), jnp.float32)
    b1 = 0.01 * jax.random.normal(ks[1], (HID,), jnp.float32)
    w2 = s * jax.random.normal(ks[2], (KW, HID, HID), jnp.float32) / jnp.sqrt(HID / C_IN)
    b2 = 0.01 * jax.random.normal(ks[3], (HID,), jnp.float32)
    w3 = s * jax.random.normal(ks[4], (KW, HID, HID), jnp.float32) / jnp.sqrt(HID / C_IN)
    b3 = 0.01 * jax.random.normal(ks[5], (HID,), jnp.float32)
    wfc = s * jax.random.normal(ks[6], (HID, OUT), jnp.float32)
    bfc = 0.01 * jax.random.normal(ks[7], (OUT,), jnp.float32)
    return (w1, b1, w2, b2, w3, b3, wfc, bfc)


def reference_forward(x_nchw, params):
    """Pure-JAX (XLA conv) reference of the PyTorch eval-mode forward."""
    w1, b1, w2, b2, w3, b3, wfc, bfc = params

    def conv(x, w_kco, bvec):
        w_oihw = jnp.transpose(w_kco, (2, 1, 0))[:, :, None, :]      # (O, C, 1, K)
        y = jax.lax.conv_general_dilated(
            x, w_oihw, window_strides=(1, 1),
            padding=((0, 0), (PAD, PAD)),
            dimension_numbers=("NCHW", "OIHW", "NCHW"))
        return y + bvec[None, :, None, None]

    x = jax.nn.elu(conv(x_nchw, w1, b1))
    x = jax.nn.elu(conv(x, w2, b2))
    x = conv(x, w3, b3)
    x = jnp.mean(x, axis=(2, 3))                                      # GAP -> (B, HID)
    return x @ wfc + bfc[None, :]


if __name__ == "__main__":
    key = jax.random.PRNGKey(0)
    k_x, k_p = jax.random.split(key)

    B, H, W = 2, 4, 16                       # small spatial/batch; channels fixed by module
    x = jax.random.normal(k_x, (B, C_IN, H, W), jnp.float32)
    params = init_params(k_p)

    out = my_architecture_forward(x, params)
    out = jax.block_until_ready(out)

    ref = jax.block_until_ready(reference_forward(x, params))
    assert out.shape == (B, OUT)
    assert jnp.allclose(out, ref, rtol=1e-3, atol=1e-3), (
        f"max abs diff {float(jnp.max(jnp.abs(out - ref)))}")

    print("KERNEL_OK")
</pallas_src>

<mosaic_0001>
module attributes {stable_mosaic.version = 11 : i64} {
  func.func @_model_kernel(%arg0: i32, %arg1: memref<128x128xf32, #tpu.memory_space<vmem>>, %arg2: memref<128x256xf32, #tpu.memory_space<vmem>>, %arg3: memref<1x256xf32, #tpu.memory_space<vmem>>, %arg4: memref<5x256x256xf32, #tpu.memory_space<vmem>>, %arg5: memref<1x256xf32, #tpu.memory_space<vmem>>, %arg6: memref<5x256x256xf32, #tpu.memory_space<vmem>>, %arg7: memref<1x256xf32, #tpu.memory_space<vmem>>, %arg8: memref<256x4xf32, #tpu.memory_space<vmem>>, %arg9: memref<1x4xf32, #tpu.memory_space<vmem>>, %arg10: memref<2x4xf32, #tpu.memory_space<vmem>>, %arg11: memref<20x8x256xf32, #tpu.memory_space<vmem>>) attributes {dimension_semantics = [#tpu.dimension_semantics<arbitrary>], iteration_bounds = array<i64: 1>, scalar_prefetch = 0 : i64, scratch_operands = 1 : i64, tpu.core_type = #tpu.core_type<tc>, window_params = [{pipeline_mode = #tpu.pipeline_mode<synchronous>, transform_indices = @transform_0, window_bounds = array<i64: 128, 128>}, {pipeline_mode = #tpu.pipeline_mode<synchronous>, transform_indices = @transform_1, window_bounds = array<i64: 128, 256>}, {pipeline_mode = #tpu.pipeline_mode<synchronous>, transform_indices = @transform_2, window_bounds = array<i64: 1, 256>}, {pipeline_mode = #tpu.pipeline_mode<synchronous>, transform_indices = @transform_3, window_bounds = array<i64: 5, 256, 256>}, {pipeline_mode = #tpu.pipeline_mode<synchronous>, transform_indices = @transform_4, window_bounds = array<i64: 1, 256>}, {pipeline_mode = #tpu.pipeline_mode<synchronous>, transform_indices = @transform_5, window_bounds = array<i64: 5, 256, 256>}, {pipeline_mode = #tpu.pipeline_mode<synchronous>, transform_indices = @transform_6, window_bounds = array<i64: 1, 256>}, {pipeline_mode = #tpu.pipeline_mode<synchronous>, transform_indices = @transform_7, window_bounds = array<i64: 256, 4>}, {pipeline_mode = #tpu.pipeline_mode<synchronous>, transform_indices = @transform_8, window_bounds = array<i64: 1, 4>}, {pipeline_mode = #tpu.pipeline_mode<synchronous>, transform_indices = @transform_9, window_bounds = array<i64: 2, 4>}]} {
    %c0 = arith.constant 0 : index
    %c0_0 = arith.constant 0 : index
    %0 = vector.load %arg1[%c0, %c0_0] : memref<128x128xf32, #tpu.memory_space<vmem>>, vector<128x128xf32>
    %c0_1 = arith.constant 0 : index
    %c0_2 = arith.constant 0 : index
    %1 = vector.load %arg2[%c0_1, %c0_2] : memref<128x256xf32, #tpu.memory_space<vmem>>, vector<128x256xf32>
    %cst = arith.constant dense<0.000000e+00> : vector<128x256xf32>
    %2 = tpu.matmul %0, %1, %cst {dimension_numbers = #tpu.dot_dimension_numbers<[1], [0], [0], [1], [0, 0, 1, 1], [], []>} : vector<128x128xf32>, vector<128x256xf32>, vector<128x256xf32> -> vector<128x256xf32>
    %c0_3 = arith.constant 0 : index
    %c0_4 = arith.constant 0 : index
    %3 = vector.load %arg3[%c0_3, %c0_4] : memref<1x256xf32, #tpu.memory_space<vmem>>, vector<1x256xf32>
    %4 = vector.broadcast %3 : vector<1x256xf32> to vector<128x256xf32>
    %5 = arith.addf %2, %4 : vector<128x256xf32>
    %cst_5 = arith.constant 0.000000e+00 : f32
    %6 = vector.broadcast %cst_5 : f32 to vector<128x256xf32>
    %7 = arith.cmpf ogt, %5, %6 : vector<128x256xf32>
    %cst_6 = arith.constant 0.000000e+00 : f32
    %8 = vector.broadcast %cst_6 : f32 to vector<128x256xf32>
    %9 = arith.minimumf %5, %8 : vector<128x256xf32>
    %10 = math.exp %9 : vector<128x256xf32>
    %cst_7 = arith.constant 1.000000e+00 : f32
    %11 = vector.broadcast %cst_7 : f32 to vector<128x256xf32>
    %12 = arith.subf %10, %11 : vector<128x256xf32>
    %13 = arith.select %7, %5, %12 : vector<128x256xi1>, vector<128x256xf32>
    %cst_8 = arith.constant 0.000000e+00 : f32
    %14 = vector.broadcast %cst_8 : f32 to vector<2x8x256xf32>
    %c0_9 = arith.constant 0 : index
    %c0_10 = arith.constant 0 : index
    %c0_11 = arith.constant 0 : index
    %15 = vector.load %arg11[%c0_9, %c0_10, %c0_11] : memref<20x8x256xf32, #tpu.memory_space<vmem>>, vector<2x8x256xf32>
    tpu.vector_store %arg11[%c0_9, %c0_10, %c0_11], %14 {strides = array<i32>} : memref<20x8x256xf32, #tpu.memory_space<vmem>>, vector<2x8x256xf32>,
    %cst_12 = arith.constant 0.000000e+00 : f32
    %16 = vector.broadcast %cst_12 : f32 to vector<2x8x256xf32>
    %c18 = arith.constant 18 : index
    %c0_13 = arith.constant 0 : index
    %c0_14 = arith.constant 0 : index
    %17 = vector.load %arg11[%c18, %c0_13, %c0_14] : memref<20x8x256xf32, #tpu.memory_space<vmem>>, vector<2x8x256xf32>
    tpu.vector_store %arg11[%c18, %c0_13, %c0_14], %16 {strides = array<i32>} : memref<20x8x256xf32, #tpu.memory_space<vmem>>, vector<2x8x256xf32>,
    %18 = vector.shape_cast %13 : vector<128x256xf32> to vector<16x8x256xf32>
    %c2 = arith.constant 2 : index
    %c0_15 = arith.constant 0 : index
    %c0_16 = arith.constant 0 : index
    %19 = vector.load %arg11[%c2, %c0_15, %c0_16] : memref<20x8x256xf32, #tpu.memory_space<vmem>>, vector<16x8x256xf32>
    tpu.vector_store %arg11[%c2, %c0_15, %c0_16], %18 {strides = array<i32>} : memref<20x8x256xf32, #tpu.memory_space<vmem>>, vector<16x8x256xf32>,
    %c0_17 = arith.constant 0 : index
    %c0_18 = arith.constant 0 : index
    %c0_19 = arith.constant 0 : index
    %20 = vector.load %arg11[%c0_17, %c0_18, %c0_19] : memref<20x8x256xf32, #tpu.memory_space<vmem>>, vector<16x8x256xf32>
    %21 = vector.shape_cast %20 : vector<16x8x256xf32> to vector<128x256xf32>
    %c0_20 = arith.constant 0 : index
    %c0_21 = arith.constant 0 : index
    %c0_22 = arith.constant 0 : index
    %22 = vector.load %arg4[%c0_20, %c0_21, %c0_22] : memref<5x256x256xf32, #tpu.memory_space<vmem>>, vector<1x256x256xf32>
    %23 = vector.shape_cast %22 : vector<1x256x256xf32> to vector<256x256xf32>
    %cst_23 = arith.constant dense<0.000000e+00> : vector<128x256xf32>
    %24 = tpu.matmul %21, %23, %cst_23 {dimension_numbers = #tpu.dot_dimension_numbers<[1], [0], [0], [1], [0, 0, 1, 1], [], []>} : vector<128x256xf32>, vector<256x256xf32>, vector<128x256xf32> -> vector<128x256xf32>
    %c0_24 = arith.constant 0 : index
    %c0_25 = arith.constant 0 : index
    %25 = vector.load %arg5[%c0_24, %c0_25] : memref<1x256xf32, #tpu.memory_space<vmem>>, vector<1x256xf32>
    %26 = vector.broadcast %25 : vector<1x256xf32> to vector<128x256xf32>
    %27 = arith.addf %24, %26 : vector<128x256xf32>
    %c1 = arith.constant 1 : index
    %c0_26 = arith.constant 0 : index
    %c0_27 = arith.constant 0 : index
    %28 = vector.load %arg11[%c1, %c0_26, %c0_27] : memref<20x8x256xf32, #tpu.memory_space<vmem>>, vector<16x8x256xf32>
    %29 = vector.shape_cast %28 : vector<16x8x256xf32> to vector<128x256xf32>
    %c1_28 = arith.constant 1 : index
    %c0_29 = arith.constant 0 : index
    %c0_30 = arith.constant 0 : index
    %30 = vector.load %arg4[%c1_28, %c0_29, %c0_30] : memref<5x256x256xf32, #tpu.memory_space<vmem>>, vector<1x256x256xf32>
    %31 = vector.shape_cast %30 : vector<1x256x256xf32> to vector<256x256xf32>
    %cst_31 = arith.constant dense<0.000000e+00> : vector<128x256xf32>
    %32 = tpu.matmul %29, %31, %cst_31 {dimension_numbers = #tpu.dot_dimension_numbers<[1], [0], [0], [1], [0, 0, 1, 1], [], []>} : vector<128x256xf32>, vector<256x256xf32>, vector<128x256xf32> -> vector<128x256xf32>
    %33 = arith.addf %27, %32 : vector<128x256xf32>
    %c2_32 = arith.constant 2 : index
    %c0_33 = arith.constant 0 : index
    %c0_34 = arith.constant 0 : index
    %34 = vector.load %arg11[%c2_32, %c0_33, %c0_34] : memref<20x8x256xf32, #tpu.memory_space<vmem>>, vector<16x8x256xf32>
    %35 = vector.shape_cast %34 : vector<16x8x256xf32> to vector<128x256xf32>
    %c2_35 = arith.constant 2 : index
    %c0_36 = arith.constant 0 : index
    %c0_37 = arith.constant 0 : index
    %36 = vector.load %arg4[%c2_35, %c0_36, %c0_37] : memref<5x256x256xf32, #tpu.memory_space<vmem>>, vector<1x256x256xf32>
    %37 = vector.shape_cast %36 : vector<1x256x256xf32> to vector<256x256xf32>
    %cst_38 = arith.constant dense<0.000000e+00> : vector<128x256xf32>
    %38 = tpu.matmul %35, %37, %cst_38 {dimension_numbers = #tpu.dot_dimension_numbers<[1], [0], [0], [1], [0, 0, 1, 1], [], []>} : vector<128x256xf32>, vector<256x256xf32>, vector<128x256xf32> -> vector<128x256xf32>
    %39 = arith.addf %33, %38 : vector<128x256xf32>
    %c3 = arith.constant 3 : index
    %c0_39 = arith.constant 0 : index
    %c0_40 = arith.constant 0 : index
    %40 = vector.load %arg11[%c3, %c0_39, %c0_40] : memref<20x8x256xf32, #tpu.memory_space<vmem>>, vector<16x8x256xf32>
    %41 = vector.shape_cast %40 : vector<16x8x256xf32> to vector<128x256xf32>
    %c3_41 = arith.constant 3 : index
    %c0_42 = arith.constant 0 : index
    %c0_43 = arith.constant 0 : index
    %42 = vector.load %arg4[%c3_41, %c0_42, %c0_43] : memref<5x256x256xf32, #tpu.memory_space<vmem>>, vector<1x256x256xf32>
    %43 = vector.shape_cast %42 : vector<1x256x256xf32> to vector<256x256xf32>
    %cst_44 = arith.constant dense<0.000000e+00> : vector<128x256xf32>
    %44 = tpu.matmul %41, %43, %cst_44 {dimension_numbers = #tpu.dot_dimension_numbers<[1], [0], [0], [1], [0, 0, 1, 1], [], []>} : vector<128x256xf32>, vector<256x256xf32>, vector<128x256xf32> -> vector<128x256xf32>
    %45 = arith.addf %39, %44 : vector<128x256xf32>
    %c4 = arith.constant 4 : index
    %c0_45 = arith.constant 0 : index
    %c0_46 = arith.constant 0 : index
    %46 = vector.load %arg11[%c4, %c0_45, %c0_46] : memref<20x8x256xf32, #tpu.memory_space<vmem>>, vector<16x8x256xf32>
    %47 = vector.shape_cast %46 : vector<16x8x256xf32> to vector<128x256xf32>
    %c4_47 = arith.constant 4 : index
    %c0_48 = arith.constant 0 : index
    %c0_49 = arith.constant 0 : index
    %48 = vector.load %arg4[%c4_47, %c0_48, %c0_49] : memref<5x256x256xf32, #tpu.memory_space<vmem>>, vector<1x256x256xf32>
    %49 = vector.shape_cast %48 : vector<1x256x256xf32> to vector<256x256xf32>
    %cst_50 = arith.constant dense<0.000000e+00> : vector<128x256xf32>
    %50 = tpu.matmul %47, %49, %cst_50 {dimension_numbers = #tpu.dot_dimension_numbers<[1], [0], [0], [1], [0, 0, 1, 1], [], []>} : vector<128x256xf32>, vector<256x256xf32>, vector<128x256xf32> -> vector<128x256xf32>
    %51 = arith.addf %45, %50 : vector<128x256xf32>
    %cst_51 = arith.constant 0.000000e+00 : f32
    %52 = vector.broadcast %cst_51 : f32 to vector<128x256xf32>
    %53 = arith.cmpf ogt, %51, %52 : vector<128x256xf32>
    %cst_52 = arith.constant 0.000000e+00 : f32
    %54 = vector.broadcast %cst_52 : f32 to vector<128x256xf32>
    %55 = arith.minimumf %51, %54 : vector<128x256xf32>
    %56 = math.exp %55 : vector<128x256xf32>
    %cst_53 = arith.constant 1.000000e+00 : f32
    %57 = vector.broadcast %cst_53 : f32 to vector<128x256xf32>
    %58 = arith.subf %56, %57 : vector<128x256xf32>
    %59 = arith.select %53, %51, %58 : vector<128x256xi1>, vector<128x256xf32>
    %60 = vector.shape_cast %59 : vector<128x256xf32> to vector<16x8x256xf32>
    %c2_54 = arith.constant 2 : index
    %c0_55 = arith.constant 0 : index
    %c0_56 = arith.constant 0 : index
    %61 = vector.load %arg11[%c2_54, %c0_55, %c0_56] : memref<20x8x256xf32, #tpu.memory_space<vmem>>, vector<16x8x256xf32>
    tpu.vector_store %arg11[%c2_54, %c0_55, %c0_56], %60 {strides = array<i32>} : memref<20x8x256xf32, #tpu.memory_space<vmem>>, vector<16x8x256xf32>,
    %c0_57 = arith.constant 0 : index
    %c0_58 = arith.constant 0 : index
    %c0_59 = arith.constant 0 : index
    %62 = vector.load %arg11[%c0_57, %c0_58, %c0_59] : memref<20x8x256xf32, #tpu.memory_space<vmem>>, vector<16x8x256xf32>
    %63 = vector.shape_cast %62 : vector<16x8x256xf32> to vector<128x256xf32>
    %c0_60 = arith.constant 0 : index
    %c0_61 = arith.constant 0 : index
    %c0_62 = arith.constant 0 : index
    %64 = vector.load %arg6[%c0_60, %c0_61, %c0_62] : memref<5x256x256xf32, #tpu.memory_space<vmem>>, vector<1x256x256xf32>
    %65 = vector.shape_cast %64 : vector<1x256x256xf32> to vector<256x256xf32>
    %cst_63 = arith.constant dense<0.000000e+00> : vector<128x256xf32>
    %66 = tpu.matmul %63, %65, %cst_63 {dimension_numbers = #tpu.dot_dimension_numbers<[1], [0], [0], [1], [0, 0, 1, 1], [], []>} : vector<128x256xf32>, vector<256x256xf32>, vector<128x256xf32> -> vector<128x256xf32>
    %c0_64 = arith.constant 0 : index
    %c0_65 = arith.constant 0 : index
    %67 = vector.load %arg7[%c0_64, %c0_65] : memref<1x256xf32, #tpu.memory_space<vmem>>, vector<1x256xf32>
    %68 = vector.broadcast %67 : vector<1x256xf32> to vector<128x256xf32>
    %69 = arith.addf %66, %68 : vector<128x256xf32>
    %c1_66 = arith.constant 1 : index
    %c0_67 = arith.constant 0 : index
    %c0_68 = arith.constant 0 : index
    %70 = vector.load %arg11[%c1_66, %c0_67, %c0_68] : memref<20x8x256xf32, #tpu.memory_space<vmem>>, vector<16x8x256xf32>
    %71 = vector.shape_cast %70 : vector<16x8x256xf32> to vector<128x256xf32>
    %c1_69 = arith.constant 1 : index
    %c0_70 = arith.constant 0 : index
    %c0_71 = arith.constant 0 : index
    %72 = vector.load %arg6[%c1_69, %c0_70, %c0_71] : memref<5x256x256xf32, #tpu.memory_space<vmem>>, vector<1x256x256xf32>
    %73 = vector.shape_cast %72 : vector<1x256x256xf32> to vector<256x256xf32>
    %cst_72 = arith.constant dense<0.000000e+00> : vector<128x256xf32>
    %74 = tpu.matmul %71, %73, %cst_72 {dimension_numbers = #tpu.dot_dimension_numbers<[1], [0], [0], [1], [0, 0, 1, 1], [], []>} : vector<128x256xf32>, vector<256x256xf32>, vector<128x256xf32> -> vector<128x256xf32>
    %75 = arith.addf %69, %74 : vector<128x256xf32>
    %c2_73 = arith.constant 2 : index
    %c0_74 = arith.constant 0 : index
    %c0_75 = arith.constant 0 : index
    %76 = vector.load %arg11[%c2_73, %c0_74, %c0_75] : memref<20x8x256xf32, #tpu.memory_space<vmem>>, vector<16x8x256xf32>
    %77 = vector.shape_cast %76 : vector<16x8x256xf32> to vector<128x256xf32>
    %c2_76 = arith.constant 2 : index
    %c0_77 = arith.constant 0 : index
    %c0_78 = arith.constant 0 : index
    %78 = vector.load %arg6[%c2_76, %c0_77, %c0_78] : memref<5x256x256xf32, #tpu.memory_space<vmem>>, vector<1x256x256xf32>
    %79 = vector.shape_cast %78 : vector<1x256x256xf32> to vector<256x256xf32>
    %cst_79 = arith.constant dense<0.000000e+00> : vector<128x256xf32>
    %80 = tpu.matmul %77, %79, %cst_79 {dimension_numbers = #tpu.dot_dimension_numbers<[1], [0], [0], [1], [0, 0, 1, 1], [], []>} : vector<128x256xf32>, vector<256x256xf32>, vector<128x256xf32> -> vector<128x256xf32>
    %81 = arith.addf %75, %80 : vector<128x256xf32>
    %c3_80 = arith.constant 3 : index
    %c0_81 = arith.constant 0 : index
    %c0_82 = arith.constant 0 : index
    %82 = vector.load %arg11[%c3_80, %c0_81, %c0_82] : memref<20x8x256xf32, #tpu.memory_space<vmem>>, vector<16x8x256xf32>
    %83 = vector.shape_cast %82 : vector<16x8x256xf32> to vector<128x256xf32>
    %c3_83 = arith.constant 3 : index
    %c0_84 = arith.constant 0 : index
    %c0_85 = arith.constant 0 : index
    %84 = vector.load %arg6[%c3_83, %c0_84, %c0_85] : memref<5x256x256xf32, #tpu.memory_space<vmem>>, vector<1x256x256xf32>
    %85 = vector.shape_cast %84 : vector<1x256x256xf32> to vector<256x256xf32>
    %cst_86 = arith.constant dense<0.000000e+00> : vector<128x256xf32>
    %86 = tpu.matmul %83, %85, %cst_86 {dimension_numbers = #tpu.dot_dimension_numbers<[1], [0], [0], [1], [0, 0, 1, 1], [], []>} : vector<128x256xf32>, vector<256x256xf32>, vector<128x256xf32> -> vector<128x256xf32>
    %87 = arith.addf %81, %86 : vector<128x256xf32>
    %c4_87 = arith.constant 4 : index
    %c0_88 = arith.constant 0 : index
    %c0_89 = arith.constant 0 : index
    %88 = vector.load %arg11[%c4_87, %c0_88, %c0_89] : memref<20x8x256xf32, #tpu.memory_space<vmem>>, vector<16x8x256xf32>
    %89 = vector.shape_cast %88 : vector<16x8x256xf32> to vector<128x256xf32>
    %c4_90 = arith.constant 4 : index
    %c0_91 = arith.constant 0 : index
    %c0_92 = arith.constant 0 : index
    %90 = vector.load %arg6[%c4_90, %c0_91, %c0_92] : memref<5x256x256xf32, #tpu.memory_space<vmem>>, vector<1x256x256xf32>
    %91 = vector.shape_cast %90 : vector<1x256x256xf32> to vector<256x256xf32>
    %cst_93 = arith.constant dense<0.000000e+00> : vector<128x256xf32>
    %92 = tpu.matmul %89, %91, %cst_93 {dimension_numbers = #tpu.dot_dimension_numbers<[1], [0], [0], [1], [0, 0, 1, 1], [], []>} : vector<128x256xf32>, vector<256x256xf32>, vector<128x256xf32> -> vector<128x256xf32>
    %93 = arith.addf %87, %92 : vector<128x256xf32>
    %94 = vector.shape_cast %93 : vector<128x256xf32> to vector<16x8x256xf32>
    %cst_94 = arith.constant dense<0.000000e+00> : vector<8x256xf32>
    %95 = vector.multi_reduction <add>, %94, %cst_94 [0] : vector<16x8x256xf32> to vector<8x256xf32>
    %96 = vector.shape_cast %95 : vector<8x256xf32> to vector<2x4x256xf32>
    %cst_95 = arith.constant dense<0.000000e+00> : vector<2x256xf32>
    %97 = vector.multi_reduction <add>, %96, %cst_95 [1] : vector<2x4x256xf32> to vector<2x256xf32>
    %cst_96 = arith.constant 1.562500e-02 : f32
    %98 = vector.broadcast %cst_96 : f32 to vector<2x256xf32>
    %99 = arith.mulf %97, %98 : vector<2x256xf32>
    %c0_97 = arith.constant 0 : index
    %c0_98 = arith.constant 0 : index
    %100 = vector.load %arg8[%c0_97, %c0_98] : memref<256x4xf32, #tpu.memory_space<vmem>>, vector<256x4xf32>
    %cst_99 = arith.constant dense<0.000000e+00> : vector<2x4xf32>
    %101 = tpu.matmul %99, %100, %cst_99 {dimension_numbers = #tpu.dot_dimension_numbers<[1], [0], [0], [1], [0, 0, 1, 1], [], []>} : vector<2x256xf32>, vector<256x4xf32>, vector<2x4xf32> -> vector<2x4xf32>
    %c0_100 = arith.constant 0 : index
    %c0_101 = arith.constant 0 : index
    %102 = vector.load %arg9[%c0_100, %c0_101] : memref<1x4xf32, #tpu.memory_space<vmem>>, vector<1x4xf32>
    %103 = vector.broadcast %102 : vector<1x4xf32> to vector<2x4xf32>
    %104 = arith.addf %101, %103 : vector<2x4xf32>
    %c0_102 = arith.constant 0 : index
    %c0_103 = arith.constant 0 : index
    %105 = vector.load %arg10[%c0_102, %c0_103] : memref<2x4xf32, #tpu.memory_space<vmem>>, vector<2x4xf32>
    tpu.vector_store %arg10[%c0_102, %c0_103], %104 {strides = array<i32>} : memref<2x4xf32, #tpu.memory_space<vmem>>, vector<2x4xf32>,
    return
  }
  func.func @transform_0(%arg0: i32) -> (i32, i32) {
    %c0_i32 = arith.constant 0 : i32
    %c0_i32_0 = arith.constant 0 : i32
    %c0_i32_1 = arith.constant 0 : i32
    return %c0_i32, %c0_i32_0 : i32, i32
  }
  func.func @transform_1(%arg0: i32) -> (i32, i32) {
    %c0_i32 = arith.constant 0 : i32
    %c0_i32_0 = arith.constant 0 : i32
    %c0_i32_1 = arith.constant 0 : i32
    return %c0_i32, %c0_i32_0 : i32, i32
  }
  func.func @transform_2(%arg0: i32) -> (i32, i32) {
    %c0_i32 = arith.constant 0 : i32
    %c0_i32_0 = arith.constant 0 : i32
    %c0_i32_1 = arith.constant 0 : i32
    return %c0_i32, %c0_i32_0 : i32, i32
  }
  func.func @transform_3(%arg0: i32) -> (i32, i32, i32) {
    %c0_i32 = arith.constant 0 : i32
    %c0_i32_0 = arith.constant 0 : i32
    %c0_i32_1 = arith.constant 0 : i32
    %c0_i32_2 = arith.constant 0 : i32
    return %c0_i32, %c0_i32_0, %c0_i32_1 : i32, i32, i32
  }
  func.func @transform_4(%arg0: i32) -> (i32, i32) {
    %c0_i32 = arith.constant 0 : i32
    %c0_i32_0 = arith.constant 0 : i32
    %c0_i32_1 = arith.constant 0 : i32
    return %c0_i32, %c0_i32_0 : i32, i32
  }
  func.func @transform_5(%arg0: i32) -> (i32, i32, i32) {
    %c0_i32 = arith.constant 0 : i32
    %c0_i32_0 = arith.constant 0 : i32
    %c0_i32_1 = arith.constant 0 : i32
    %c0_i32_2 = arith.constant 0 : i32
    return %c0_i32, %c0_i32_0, %c0_i32_1 : i32, i32, i32
  }
  func.func @transform_6(%arg0: i32) -> (i32, i32) {
    %c0_i32 = arith.constant 0 : i32
    %c0_i32_0 = arith.constant 0 : i32
    %c0_i32_1 = arith.constant 0 : i32
    return %c0_i32, %c0_i32_0 : i32, i32
  }
  func.func @transform_7(%arg0: i32) -> (i32, i32) {
    %c0_i32 = arith.constant 0 : i32
    %c0_i32_0 = arith.constant 0 : i32
    %c0_i32_1 = arith.constant 0 : i32
    return %c0_i32, %c0_i32_0 : i32, i32
  }
  func.func @transform_8(%arg0: i32) -> (i32, i32) {
    %c0_i32 = arith.constant 0 : i32
    %c0_i32_0 = arith.constant 0 : i32
    %c0_i32_1 = arith.constant 0 : i32
    return %c0_i32, %c0_i32_0 : i32, i32
  }
  func.func @transform_9(%arg0: i32) -> (i32, i32) {
    %c0_i32 = arith.constant 0 : i32
    %c0_i32_0 = arith.constant 0 : i32
    %c0_i32_1 = arith.constant 0 : i32
    return %c0_i32, %c0_i32_0 : i32, i32
  }
}

</mosaic_0001>

<llo_original>
// kernel: tpu_custom_call.1
$region0: #{tpu_custom_call.1}
  #allocation0 [shape = 'u32[]', space=smem, size = 0x4, offset = 0x4, fixed_abs, tag = 'smem constant byte address 0x4 - core index']
  #allocation1 [shape = 'u32[144,128]{1,0:T(1,128)}', space=vmem, size = 0x12000, scoped, tag = 'internal scratch']
  #allocation2 [shape = 'f32[20,8,256]{2,1,0:T(8,128)}', space=vmem, size = 0x28000, scoped, tag = 'scratch operand']
  %s0 = inlined_call_operand.hbm [shape: f32[128,128], index: 0, kind: input, shape index: {}]
  %s1 = inlined_call_operand.hbm [shape: f32[128,256], index: 1, kind: input, shape index: {}]
  %s2 = inlined_call_operand.hbm [shape: f32[1,256], index: 2, kind: input, shape index: {}]
  %s3 = inlined_call_operand.hbm [shape: f32[5,256,256], index: 3, kind: input, shape index: {}]
  %s4 = inlined_call_operand.hbm [shape: f32[1,256], index: 4, kind: input, shape index: {}]
  %s5 = inlined_call_operand.hbm [shape: f32[5,256,256], index: 5, kind: input, shape index: {}]
  %s6 = inlined_call_operand.hbm [shape: f32[1,256], index: 6, kind: input, shape index: {}]
  %s7 = inlined_call_operand.vmem [shape: f32[256,4], index: 7, kind: input, shape index: {}]
  %s8 = inlined_call_operand.hbm [shape: f32[1,4], index: 8, kind: input, shape index: {}]
  %s9 = inlined_call_operand.hbm [shape: f32[2,4], index: 9, kind: output, shape index: {}]
  %s10 = sld [smem:[#allocation0]]
  $region78: #{tpu_custom_call.1} parent=0
    _
  %s12 = ssub.s32 1, %s10
  %s13 = scalar_select 0, %s12, %s10
  $region1: #{tpu_custom_call.1} parent=0
    #allocation3 [shape = 'u8[65536]{0}', space=vmem, size = 0x10000, scoped, tag = 'input window, operand 0, single buffered']
    #allocation4 [shape = 's32[1]{0}', space=sflag, size = 0x4, scoped, tag = 'scoped memory for tpu_custom_call.1']
    #allocation5 [shape = 's32[1]{0}', space=sflag, size = 0x4, scoped, tag = 'scoped memory for tpu_custom_call.1']
    #allocation6 [shape = 'u8[131072]{0}', space=vmem, size = 0x20000, scoped, tag = 'input window, operand 1, single buffered']
    #allocation7 [shape = 's32[1]{0}', space=sflag, size = 0x4, scoped, tag = 'scoped memory for tpu_custom_call.1']
    #allocation8 [shape = 'u8[1024]{0}', space=vmem, size = 0x400, scoped, tag = 'input window, operand 2, single buffered']
    #allocation9 [shape = 'u8[1310720]{0}', space=vmem, size = 0x140000, scoped, tag = 'input window, operand 3, single buffered']
    #allocation10 [shape = 's32[1]{0}', space=sflag, size = 0x4, scoped, tag = 'scoped memory for tpu_custom_call.1']
    #allocation11 [shape = 'u8[1024]{0}', space=vmem, size = 0x400, scoped, tag = 'input window, operand 4, single buffered']
    #allocation12 [shape = 'u8[1310720]{0}', space=vmem, size = 0x140000, scoped, tag = 'input window, operand 5, single buffered']
    #allocation13 [shape = 's32[1]{0}', space=sflag, size = 0x4, scoped, tag = 'scoped memory for tpu_custom_call.1']
    #allocation14 [shape = 'u8[1024]{0}', space=vmem, size = 0x400, scoped, tag = 'input window, operand 6, single buffered']
    #allocation15 [shape = 'u8[512]{0}', space=vmem, size = 0x400, scoped, tag = 'input window, operand 8, single buffered']
    #allocation16 [shape = 's32[1]{0}', space=sflag, size = 0x4, scoped, tag = 'scoped memory for tpu_custom_call.1']
    #allocation17 [shape = 'u8[1024]{0}', space=vmem, size = 0x400, scoped, tag = 'output window, operand 0, single buffered']
    %14 = vsyncpa [#allocation4], 0
    %15 = vsyncpa [#allocation7], 0
    %16 = vsyncpa [#allocation10], 0
    %17 = vsyncpa [#allocation13], 0
    %18 = vsyncpa [#allocation16], 0
    %19 = vsyncpa [#allocation5], 0
    // Predicated region
    $region2: #{tpu_custom_call.1} parent=1 // pred_check
      _
    $region3: #{tpu_custom_call.1} parent=1 // pred_check_branch
      %21 = sbr.rel (0) target = $region5
    $region4: #{tpu_custom_call.1} parent=1 // pred_region
      %s23 = ssub.s32 2048, 2048
      %24 = vsyncadd [#allocation4], %s23
      %s25 = sshll.u32 [#allocation3], 4
      %s26 = int_to_ptr.vmem [resolvable:$true] %s25
      %31 = dma.hbm_to_vmem [thread:$0]  %s0, 2048, %s26, [#allocation4], 128, 128, 8
    $region5: #{tpu_custom_call.1} parent=1 // pred_fallthru
      _
    // Predicated region
    $region6: #{tpu_custom_call.1} parent=1 // pred_check
      _
    $region7: #{tpu_custom_call.1} parent=1 // pred_check_branch
      %33 = sbr.rel (0) target = $region9
    $region8: #{tpu_custom_call.1} parent=1 // pred_region
      %s35 = ssub.s32 4096, 4096
      %36 = vsyncadd [#allocation7], %s35
      %s37 = sshll.u32 [#allocation6], 4
      %s38 = int_to_ptr.vmem [resolvable:$true] %s37
      %43 = dma.hbm_to_vmem [thread:$0]  %s1, 4096, %s38, [#allocation7], 256, 256, 16
    $region9: #{tpu_custom_call.1} parent=1 // pred_fallthru
      _
    // Predicated region
    $region10: #{tpu_custom_call.1} parent=1 // pred_check
      _
    $region11: #{tpu_custom_call.1} parent=1 // pred_check_branch
      %45 = sbr.rel (0) target = $region13
    $region12: #{tpu_custom_call.1} parent=1 // pred_region
      %s47 = ssub.s32 32, 32
      %48 = vsyncadd [#allocation7], %s47
      %s50 = sshll.u32 [#allocation8], 4
      %s51 = int_to_ptr.vmem [resolvable:$true] %s50
      %53 = dma.hbm_to_vmem [thread:$0]  %s2, 32, %s51, [#allocation7]
    $region13: #{tpu_custom_call.1} parent=1 // pred_fallthru
      _
    // Predicated region
    $region14: #{tpu_custom_call.1} parent=1 // pred_check
      _
    $region15: #{tpu_custom_call.1} parent=1 // pred_check_branch
      %55 = sbr.rel (0) target = $region17
    $region16: #{tpu_custom_call.1} parent=1 // pred_region
      %s57 = ssub.s32 40960, 40960
      %58 = vsyncadd [#allocation10], %s57
      %s59 = sshll.u32 [#allocation9], 4
      %s60 = int_to_ptr.vmem [resolvable:$true] %s59
      %65 = dma.hbm_to_vmem [thread:$0]  %s3, 40960, %s60, [#allocation10], 256, 256, 16
    $region17: #{tpu_custom_call.1} parent=1 // pred_fallthru
      _
    // Predicated region
    $region18: #{tpu_custom_call.1} parent=1 // pred_check
      _
    $region19: #{tpu_custom_call.1} parent=1 // pred_check_branch
      %67 = sbr.rel (0) target = $region21
    $region20: #{tpu_custom_call.1} parent=1 // pred_region
      %s69 = ssub.s32 32, 32
      %70 = vsyncadd [#allocation10], %s69
      %s72 = sshll.u32 [#allocation11], 4
      %s73 = int_to_ptr.vmem [resolvable:$true] %s72
      %75 = dma.hbm_to_vmem [thread:$0]  %s4, 32, %s73, [#allocation10]
    $region21: #{tpu_custom_call.1} parent=1 // pred_fallthru
      _
    // Predicated region
    $region22: #{tpu_custom_call.1} parent=1 // pred_check
      _
    $region23: #{tpu_custom_call.1} parent=1 // pred_check_branch
      %77 = sbr.rel (0) target = $region25
    $region24: #{tpu_custom_call.1} parent=1 // pred_region
      %s79 = ssub.s32 40960, 40960
      %80 = vsyncadd [#allocation13], %s79
      %s81 = sshll.u32 [#allocation12], 4
      %s82 = int_to_ptr.vmem [resolvable:$true] %s81
      %87 = dma.hbm_to_vmem [thread:$0]  %s5, 40960, %s82, [#allocation13], 256, 256, 16
    $region25: #{tpu_custom_call.1} parent=1 // pred_fallthru
      _
    // Predicated region
    $region26: #{tpu_custom_call.1} parent=1 // pred_check
      _
    $region27: #{tpu_custom_call.1} parent=1 // pred_check_branch
      %89 = sbr.rel (0) target = $region29
    $region28: #{tpu_custom_call.1} parent=1 // pred_region
      %s91 = ssub.s32 32, 32
      %92 = vsyncadd [#allocation13], %s91
      %s94 = sshll.u32 [#allocation14], 4
      %s95 = int_to_ptr.vmem [resolvable:$true] %s94
      %97 = dma.hbm_to_vmem [thread:$0]  %s6, 32, %s95, [#allocation13]
    $region29: #{tpu_custom_call.1} parent=1 // pred_fallthru
      _
    // Predicated region
    $region30: #{tpu_custom_call.1} parent=1 // pred_check
      _
    $region31: #{tpu_custom_call.1} parent=1 // pred_check_branch
      %99 = sbr.rel (0) target = $region33
    $region32: #{tpu_custom_call.1} parent=1 // pred_region
      _
    $region33: #{tpu_custom_call.1} parent=1 // pred_fallthru
      _
    // Predicated region
    $region34: #{tpu_custom_call.1} parent=1 // pred_check
      _
    $region35: #{tpu_custom_call.1} parent=1 // pred_check_branch
      %101 = sbr.rel (0) target = $region37
    $region36: #{tpu_custom_call.1} parent=1 // pred_region
      %s103 = ssub.s32 16, 16
      %104 = vsyncadd [#allocation16], %s103
      %s106 = sshll.u32 [#allocation15], 4
      %s107 = int_to_ptr.vmem [resolvable:$true] %s106
      %109 = dma.hbm_to_vmem [thread:$0]  %s8, 16, %s107, [#allocation16]
    $region37: #{tpu_custom_call.1} parent=1 // pred_fallthru
      _
    // Predicated region
    $region38: #{tpu_custom_call.1} parent=1 // pred_check
      _
    $region39: #{tpu_custom_call.1} parent=1 // pred_check_branch
      %111 = sbr.rel (0) target = $region41
    $region40: #{tpu_custom_call.1} parent=1 // pred_region
      %112 = dma.done [#allocation4], 2048
    $region41: #{tpu_custom_call.1} parent=1 // pred_fallthru
      _
    // Predicated region
    $region42: #{tpu_custom_call.1} parent=1 // pred_check
      _
    $region43: #{tpu_custom_call.1} parent=1 // pred_check_branch
      %114 = sbr.rel (0) target = $region45
    $region44: #{tpu_custom_call.1} parent=1 // pred_region
      %115 = dma.done [#allocation7], 4096
    $region45: #{tpu_custom_call.1} parent=1 // pred_fallthru
      _
    // Predicated region
    $region46: #{tpu_custom_call.1} parent=1 // pred_check
      _
    $region47: #{tpu_custom_call.1} parent=1 // pred_check_branch
      %117 = sbr.rel (0) target = $region49
    $region48: #{tpu_custom_call.1} parent=1 // pred_region
      %118 = dma.done [#allocation7], 32
    $region49: #{tpu_custom_call.1} parent=1 // pred_fallthru
      _
    // Predicated region
    $region50: #{tpu_custom_call.1} parent=1 // pred_check
      _
    $region51: #{tpu_custom_call.1} parent=1 // pred_check_branch
      %120 = sbr.rel (0) target = $region53
    $region52: #{tpu_custom_call.1} parent=1 // pred_region
      %121 = dma.done [#allocation10], 40960
    $region53: #{tpu_custom_call.1} parent=1 // pred_fallthru
      _
    // Predicated region
    $region54: #{tpu_custom_call.1} parent=1 // pred_check
      _
    $region55: #{tpu_custom_call.1} parent=1 // pred_check_branch
      %123 = sbr.rel (0) target = $region57
    $region56: #{tpu_custom_call.1} parent=1 // pred_region
      %124 = dma.done [#allocation10], 32
    $region57: #{tpu_custom_call.1} parent=1 // pred_fallthru
      _
    // Predicated region
    $region58: #{tpu_custom_call.1} parent=1 // pred_check
      _
    $region59: #{tpu_custom_call.1} parent=1 // pred_check_branch
      %126 = sbr.rel (0) target = $region61
    $region60: #{tpu_custom_call.1} parent=1 // pred_region
      %127 = dma.done [#allocation13], 40960
    $region61: #{tpu_custom_call.1} parent=1 // pred_fallthru
      _
    // Predicated region
    $region62: #{tpu_custom_call.1} parent=1 // pred_check
      _
    $region63: #{tpu_custom_call.1} parent=1 // pred_check_branch
      %129 = sbr.rel (0) target = $region65
    $region64: #{tpu_custom_call.1} parent=1 // pred_region
      %130 = dma.done [#allocation13], 32
    $region65: #{tpu_custom_call.1} parent=1 // pred_fallthru
      _
    // Predicated region
    $region66: #{tpu_custom_call.1} parent=1 // pred_check
      _
    $region67: #{tpu_custom_call.1} parent=1 // pred_check_branch
      %132 = sbr.rel (0) target = $region69
    $region68: #{tpu_custom_call.1} parent=1 // pred_region
      %133 = dma.done [#allocation16], 16
    $region69: #{tpu_custom_call.1} parent=1 // pred_fallthru
      _
    %v134 = vld [vmem:[#allocation3] sm:$0xff]
    %v135 = vld [vmem:[#allocation3 + $0x8] sm:$0xff]
    %v136 = vld [vmem:[#allocation3 + $0x10] sm:$0xff]
    %v137 = vld [vmem:[#allocation3 + $0x18] sm:$0xff]
    %v138 = vld [vmem:[#allocation3 + $0x20] sm:$0xff]
    %v139 = vld [vmem:[#allocation3 + $0x28] sm:$0xff]
    %v140 = vld [vmem:[#allocation3 + $0x30] sm:$0xff]
    %v141 = vld [vmem:[#allocation3 + $0x38] sm:$0xff]
    %v142 = vld [vmem:[#allocation3 + $0x40] sm:$0xff]
    %v143 = vld [vmem:[#allocation3 + $0x48] sm:$0xff]
    %v144 = vld [vmem:[#allocation3 + $0x50] sm:$0xff]
    %v145 = vld [vmem:[#allocation3 + $0x58] sm:$0xff]
    %v146 = vld [vmem:[#allocation3 + $0x60] sm:$0xff]
    %v147 = vld [vmem:[#allocation3 + $0x68] sm:$0xff]
    %v148 = vld [vmem:[#allocation3 + $0x70] sm:$0xff]
    %v149 = vld [vmem:[#allocation3 + $0x78] sm:$0xff]
    %v150 = vld [vmem:[#allocation6] sm:$0xff]
    %v151 = vld [vmem:[#allocation6 + $0x8] sm:$0xff]
    %v152 = vld [vmem:[#allocation6 + $0x10] sm:$0xff]
    %v153 = vld [vmem:[#allocation6 + $0x18] sm:$0xff]
    %v154 = vld [vmem:[#allocation6 + $0x20] sm:$0xff]
    %v155 = vld [vmem:[#allocation6 + $0x28] sm:$0xff]
    %v156 = vld [vmem:[#allocation6 + $0x30] sm:$0xff]
    %v157 = vld [vmem:[#allocation6 + $0x38] sm:$0xff]
    %v158 = vld [vmem:[#allocation6 + $0x40] sm:$0xff]
    %v159 = vld [vmem:[#allocation6 + $0x48] sm:$0xff]
    %v160 = vld [vmem:[#allocation6 + $0x50] sm:$0xff]
    %v161 = vld [vmem:[#allocation6 + $0x58] sm:$0xff]
    %v162 = vld [vmem:[#allocation6 + $0x60] sm:$0xff]
    %v163 = vld [vmem:[#allocation6 + $0x68] sm:$0xff]
    %v164 = vld [vmem:[#allocation6 + $0x70] sm:$0xff]
    %v165 = vld [vmem:[#allocation6 + $0x78] sm:$0xff]
    %v166 = vld [vmem:[#allocation6 + $0x80] sm:$0xff]
    %v167 = vld [vmem:[#allocation6 + $0x88] sm:$0xff]
    %v168 = vld [vmem:[#allocation6 + $0x90] sm:$0xff]
    %v169 = vld [vmem:[#allocation6 + $0x98] sm:$0xff]
    %v170 = vld [vmem:[#allocation6 + $0xa0] sm:$0xff]
    %v171 = vld [vmem:[#allocation6 + $0xa8] sm:$0xff]
    %v172 = vld [vmem:[#allocation6 + $0xb0] sm:$0xff]
    %v173 = vld [vmem:[#allocation6 + $0xb8] sm:$0xff]
    %v174 = vld [vmem:[#allocation6 + $0xc0] sm:$0xff]
    %v175 = vld [vmem:[#allocation6 + $0xc8] sm:$0xff]
    %v176 = vld [vmem:[#allocation6 + $0xd0] sm:$0xff]
    %v177 = vld [vmem:[#allocation6 + $0xd8] sm:$0xff]
    %v178 = vld [vmem:[#allocation6 + $0xe0] sm:$0xff]
    %v179 = vld [vmem:[#allocation6 + $0xe8] sm:$0xff]
    %v180 = vld [vmem:[#allocation6 + $0xf0] sm:$0xff]
    %v181 = vld [vmem:[#allocation6 + $0xf8] sm:$0xff]
    %v182 = vld [vmem:[#allocation8] sm:$0x3]
    %v184 = vlaneseq
    %v185 = vshrl.u32 %v184, 7
    %v186 = vsub.s32 0, %v185
    %v187 = vrot.slane %v182, %v186
    %v188 = vlaneseq
    %v189 = vshrl.u32 %v188, 7
    %v190 = vsub.s32 1, %v189
    %v191 = vrot.slane %v182, %v190
    %194 = vmatprep.subr.mxu0 %v151
    %195 = vmatpush1.msra.mxu0 %v150
    %196 = vmatprep.subr.mxu0 %v153
    %197 = vmatpush1.msra.mxu0 %v152
    %198 = vmatprep.subr.mxu0 %v155
    %199 = vmatpush1.msra.mxu0 %v154
    %200 = vmatprep.subr.mxu0 %v157
    %201 = vmatpush1.msra.mxu0 %v156
    %202 = vmatprep.subr.mxu0 %v159
    %203 = vmatpush1.msra.mxu0 %v158
    %204 = vmatprep.subr.mxu0 %v161
    %205 = vmatpush1.msra.mxu0 %v160
    %206 = vmatprep.subr.mxu0 %v163
    %207 = vmatpush1.msra.mxu0 %v162
    %208 = vmatprep.subr.mxu0 %v165
    %209 = vmatpush1.msra.mxu0 %v164
    %210 = vmatprep.subr.mxu0 %v167
    %211 = vmatpush1.msra.mxu0 %v166
    %212 = vmatprep.subr.mxu0 %v169
    %213 = vmatpush1.msra.mxu0 %v168
    %214 = vmatprep.subr.mxu0 %v171
    %215 = vmatpush1.msra.mxu0 %v170
    %216 = vmatprep.subr.mxu0 %v173
    %217 = vmatpush1.msra.mxu0 %v172
    %218 = vmatprep.subr.mxu0 %v175
    %219 = vmatpush1.msra.mxu0 %v174
    %220 = vmatprep.subr.mxu0 %v177
    %221 = vmatpush1.msra.mxu0 %v176
    %222 = vmatprep.subr.mxu0 %v179
    %223 = vmatpush1.msra.mxu0 %v178
    %224 = vmatprep.subr.mxu0 %v181
    %225 = vmatpush1.msra.mxu0 %v180
    %226 = vmatprep.subr.mxu0 0.0
    %227 = vmatpush1.msra.mxu0 0.0
    %228 = vmatprep.subr.mxu0 0.0
    %229 = vmatpush1.msra.mxu0 0.0
    %230 = vmatprep.subr.mxu0 0.0
    %231 = vmatpush1.msra.mxu0 0.0
    %232 = vmatprep.subr.mxu0 0.0
    %233 = vmatpush1.msra.mxu0 0.0
    %234 = vmatprep.subr.mxu0 0.0
    %235 = vmatpush1.msra.mxu0 0.0
    %236 = vmatprep.subr.mxu0 0.0
    %237 = vmatpush1.msra.mxu0 0.0
    %238 = vmatprep.subr.mxu0 0.0
    %239 = vmatpush1.msra.mxu0 0.0
    %240 = vmatprep.subr.mxu0 0.0
    %241 = vmatpush1.msra.mxu0 0.0
    %242 = vmatprep.subr.mxu0 0.0
    %243 = vmatpush1.msra.mxu0 0.0
    %244 = vmatprep.subr.mxu0 0.0
    %245 = vmatpush1.msra.mxu0 0.0
    %246 = vmatprep.subr.mxu0 0.0
    %247 = vmatpush1.msra.mxu0 0.0
    %248 = vmatprep.subr.mxu0 0.0
    %249 = vmatpush1.msra.mxu0 0.0
    %250 = vmatprep.subr.mxu0 0.0
    %251 = vmatpush1.msra.mxu0 0.0
    %252 = vmatprep.subr.mxu0 0.0
    %253 = vmatpush1.msra.mxu0 0.0
    %254 = vmatprep.subr.mxu0 0.0
    %255 = vmatpush1.msra.mxu0 0.0
    %256 = vmatprep.subr.mxu0 0.0
    %257 = vmatpush1.msra.mxu0 0.0
    %258 = vmatprep.mubr.f32.mxu0 0.0
    %259 = vmatmul.mubr.f32.gmra.mrb[0].mxu0 %v134
    %v260 = vpop.f32.mrb[0].mxu0
    %v261 = vadd.f32 %v187, %v260
    %v262 = vpop.f32.mrb[0].mxu0
    %v263 = vadd.f32 %v191, %v262
    %264 = vmatprep.mubr.f32.mxu0 0.0
    %265 = vmatmul.mubr.f32.gmra.mrb[0].mxu0 %v135
    %v266 = vpop.f32.mrb[0].mxu0
    %v267 = vadd.f32 %v187, %v266
    %v268 = vpop.f32.mrb[0].mxu0
    %v269 = vadd.f32 %v191, %v268
    %270 = vmatprep.mubr.f32.mxu0 0.0
    %271 = vmatmul.mubr.f32.gmra.mrb[0].mxu0 %v136
    %v272 = vpop.f32.mrb[0].mxu0
    %v273 = vadd.f32 %v187, %v272
    %v274 = vpop.f32.mrb[0].mxu0
    %v275 = vadd.f32 %v191, %v274
    %276 = vmatprep.mubr.f32.mxu0 0.0
    %277 = vmatmul.mubr.f32.gmra.mrb[0].mxu0 %v137
    %v278 = vpop.f32.mrb[0].mxu0
    %v279 = vadd.f32 %v187, %v278
    %v280 = vpop.f32.mrb[0].mxu0
    %v281 = vadd.f32 %v191, %v280
    %282 = vmatprep.mubr.f32.mxu0 0.0
    %283 = vmatmul.mubr.f32.gmra.mrb[0].mxu0 %v138
    %v284 = vpop.f32.mrb[0].mxu0
    %v285 = vadd.f32 %v187, %v284
    %v286 = vpop.f32.mrb[0].mxu0
    %v287 = vadd.f32 %v191, %v286
    %288 = vmatprep.mubr.f32.mxu0 0.0
    %289 = vmatmul.mubr.f32.gmra.mrb[0].mxu0 %v139
    %v290 = vpop.f32.mrb[0].mxu0
    %v291 = vadd.f32 %v187, %v290
    %v292 = vpop.f32.mrb[0].mxu0
    %v293 = vadd.f32 %v191, %v292
    %294 = vmatprep.mubr.f32.mxu0 0.0
    %295 = vmatmul.mubr.f32.gmra.mrb[0].mxu0 %v140
    %v296 = vpop.f32.mrb[0].mxu0
    %v297 = vadd.f32 %v187, %v296
    %v298 = vpop.f32.mrb[0].mxu0
    %v299 = vadd.f32 %v191, %v298
    %300 = vmatprep.mubr.f32.mxu0 0.0
    %301 = vmatmul.mubr.f32.gmra.mrb[0].mxu0 %v141
    %v302 = vpop.f32.mrb[0].mxu0
    %v303 = vadd.f32 %v187, %v302
    %v304 = vpop.f32.mrb[0].mxu0
    %v305 = vadd.f32 %v191, %v304
    %306 = vmatprep.mubr.f32.mxu0 0.0
    %307 = vmatmul.mubr.f32.gmra.mrb[0].mxu0 %v142
    %v308 = vpop.f32.mrb[0].mxu0
    %v309 = vadd.f32 %v187, %v308
    %v310 = vpop.f32.mrb[0].mxu0
    %v311 = vadd.f32 %v191, %v310
    %312 = vmatprep.mubr.f32.mxu0 0.0
    %313 = vmatmul.mubr.f32.gmra.mrb[0].mxu0 %v143
    %v314 = vpop.f32.mrb[0].mxu0
    %v315 = vadd.f32 %v187, %v314
    %v316 = vpop.f32.mrb[0].mxu0
    %v317 = vadd.f32 %v191, %v316
    %318 = vmatprep.mubr.f32.mxu0 0.0
    %319 = vmatmul.mubr.f32.gmra.mrb[0].mxu0 %v144
    %v320 = vpop.f32.mrb[0].mxu0
    %v321 = vadd.f32 %v187, %v320
    %v322 = vpop.f32.mrb[0].mxu0
    %v323 = vadd.f32 %v191, %v322
    %324 = vmatprep.mubr.f32.mxu0 0.0
    %325 = vmatmul.mubr.f32.gmra.mrb[0].mxu0 %v145
    %v326 = vpop.f32.mrb[0].mxu0
    %v327 = vadd.f32 %v187, %v326
    %v328 = vpop.f32.mrb[0].mxu0
    %v329 = vadd.f32 %v191, %v328
    %330 = vmatprep.mubr.f32.mxu0 0.0
    %331 = vmatmul.mubr.f32.gmra.mrb[0].mxu0 %v146
    %v332 = vpop.f32.mrb[0].mxu0
    %v333 = vadd.f32 %v187, %v332
    %v334 = vpop.f32.mrb[0].mxu0
    %v335 = vadd.f32 %v191, %v334
    %336 = vmatprep.mubr.f32.mxu0 0.0
    %337 = vmatmul.mubr.f32.gmra.mrb[0].mxu0 %v147
    %v338 = vpop.f32.mrb[0].mxu0
    %v339 = vadd.f32 %v187, %v338
    %v340 = vpop.f32.mrb[0].mxu0
    %v341 = vadd.f32 %v191, %v340
    %342 = vmatprep.mubr.f32.mxu0 0.0
    %343 = vmatmul.mubr.f32.gmra.mrb[0].mxu0 %v148
    %v344 = vpop.f32.mrb[0].mxu0
    %v345 = vadd.f32 %v187, %v344
    %v346 = vpop.f32.mrb[0].mxu0
    %v347 = vadd.f32 %v191, %v346
    %348 = vmatprep.mubr.f32.mxu0 0.0
    %349 = vmatmul.mubr.f32.gmra.mrb[0].mxu0 %v149
    %v350 = vpop.f32.mrb[0].mxu0
    %v351 = vadd.f32 %v187, %v350
    %v352 = vpop.f32.mrb[0].mxu0
    %v353 = vadd.f32 %v191, %v352
    %354 = vdwg.mxu0
    %vm355 = vcmp.gt.f32.partialorder %v261, 0.0
    %vm356 = vcmp.gt.f32.partialorder %v263, 0.0
    %vm357 = vcmp.gt.f32.partialorder %v267, 0.0
    %vm358 = vcmp.gt.f32.partialorder %v269, 0.0
    %vm359 = vcmp.gt.f32.partialorder %v273, 0.0
    %vm360 = vcmp.gt.f32.partialorder %v275, 0.0
    %vm361 = vcmp.gt.f32.partialorder %v279, 0.0
    %vm362 = vcmp.gt.f32.partialorder %v281, 0.0
    %vm363 = vcmp.gt.f32.partialorder %v285, 0.0
    %vm364 = vcmp.gt.f32.partialorder %v287, 0.0
    %vm365 = vcmp.gt.f32.partialorder %v291, 0.0
    %vm366 = vcmp.gt.f32.partialorder %v293, 0.0
    %vm367 = vcmp.gt.f32.partialorder %v297, 0.0
    %vm368 = vcmp.gt.f32.partialorder %v299, 0.0
    %vm369 = vcmp.gt.f32.partialorder %v303, 0.0
    %vm370 = vcmp.gt.f32.partialorder %v305, 0.0
    %vm371 = vcmp.gt.f32.partialorder %v309, 0.0
    %vm372 = vcmp.gt.f32.partialorder %v311, 0.0
    %vm373 = vcmp.gt.f32.partialorder %v315, 0.0
    %vm374 = vcmp.gt.f32.partialorder %v317, 0.0
    %vm375 = vcmp.gt.f32.partialorder %v321, 0.0
    %vm376 = vcmp.gt.f32.partialorder %v323, 0.0
    %vm377 = vcmp.gt.f32.partialorder %v327, 0.0
    %vm378 = vcmp.gt.f32.partialorder %v329, 0.0
    %vm379 = vcmp.gt.f32.partialorder %v333, 0.0
    %vm380 = vcmp.gt.f32.partialorder %v335, 0.0
    %vm381 = vcmp.gt.f32.partialorder %v339, 0.0
    %vm382 = vcmp.gt.f32.partialorder %v341, 0.0
    %vm383 = vcmp.gt.f32.partialorder %v345, 0.0
    %vm384 = vcmp.gt.f32.partialorder %v347, 0.0
    %vm385 = vcmp.gt.f32.partialorder %v351, 0.0
    %vm386 = vcmp.gt.f32.partialorder %v353, 0.0
    %v387 = vmin.f32 %v261, 0.0
    %v388 = vmin.f32 %v263, 0.0
    %v389 = vmin.f32 %v267, 0.0
    %v390 = vmin.f32 %v269, 0.0
    %v391 = vmin.f32 %v273, 0.0
    %v392 = vmin.f32 %v275, 0.0
    %v393 = vmin.f32 %v279, 0.0
    %v394 = vmin.f32 %v281, 0.0
    %v395 = vmin.f32 %v285, 0.0
    %v396 = vmin.f32 %v287, 0.0
    %v397 = vmin.f32 %v291, 0.0
    %v398 = vmin.f32 %v293, 0.0
    %v399 = vmin.f32 %v297, 0.0
    %v400 = vmin.f32 %v299, 0.0
    %v401 = vmin.f32 %v303, 0.0
    %v402 = vmin.f32 %v305, 0.0
    %v403 = vmin.f32 %v309, 0.0
    %v404 = vmin.f32 %v311, 0.0
    %v405 = vmin.f32 %v315, 0.0
    %v406 = vmin.f32 %v317, 0.0
    %v407 = vmin.f32 %v321, 0.0
    %v408 = vmin.f32 %v323, 0.0
    %v409 = vmin.f32 %v327, 0.0
    %v410 = vmin.f32 %v329, 0.0
    %v411 = vmin.f32 %v333, 0.0
    %v412 = vmin.f32 %v335, 0.0
    %v413 = vmin.f32 %v339, 0.0
    %v414 = vmin.f32 %v341, 0.0
    %v415 = vmin.f32 %v345, 0.0
    %v416 = vmin.f32 %v347, 0.0
    %v417 = vmin.f32 %v351, 0.0
    %v418 = vmin.f32 %v353, 0.0
    %v419 = vmul.f32 %v387, 1.442695
    %v420 = vpow.pop %v419
    %v421 = vmul.f32 %v388, 1.442695
    %v422 = vpow.pop %v421
    %v423 = vmul.f32 %v389, 1.442695
    %v424 = vpow.pop %v423
    %v425 = vmul.f32 %v390, 1.442695
    %v426 = vpow.pop %v425
    %v427 = vmul.f32 %v391, 1.442695
    %v428 = vpow.pop %v427
    %v429 = vmul.f32 %v392, 1.442695
    %v430 = vpow.pop %v429
    %v431 = vmul.f32 %v393, 1.442695
    %v432 = vpow.pop %v431
    %v433 = vmul.f32 %v394, 1.442695
    %v434 = vpow.pop %v433
    %v435 = vmul.f32 %v395, 1.442695
    %v436 = vpow.pop %v435
    %v437 = vmul.f32 %v396, 1.442695
    %v438 = vpow.pop %v437
    %v439 = vmul.f32 %v397, 1.442695
    %v440 = vpow.pop %v439
    %v441 = vmul.f32 %v398, 1.442695
    %v442 = vpow.pop %v441
    %v443 = vmul.f32 %v399, 1.442695
    %v444 = vpow.pop %v443
    %v445 = vmul.f32 %v400, 1.442695
    %v446 = vpow.pop %v445
    %v447 = vmul.f32 %v401, 1.442695
    %v448 = vpow.pop %v447
    %v449 = vmul.f32 %v402, 1.442695
    %v450 = vpow.pop %v449
    %v451 = vmul.f32 %v403, 1.442695
    %v452 = vpow.pop %v451
    %v453 = vmul.f32 %v404, 1.442695
    %v454 = vpow.pop %v453
    %v455 = vmul.f32 %v405, 1.442695
    %v456 = vpow.pop %v455
    %v457 = vmul.f32 %v406, 1.442695
    %v458 = vpow.pop %v457
    %v459 = vmul.f32 %v407, 1.442695
    %v460 = vpow.pop %v459
    %v461 = vmul.f32 %v408, 1.442695
    %v462 = vpow.pop %v461
    %v463 = vmul.f32 %v409, 1.442695
    %v464 = vpow.pop %v463
    %v465 = vmul.f32 %v410, 1.442695
    %v466 = vpow.pop %v465
    %v467 = vmul.f32 %v411, 1.442695
    %v468 = vpow.pop %v467
    %v469 = vmul.f32 %v412, 1.442695
    %v470 = vpow.pop %v469
    %v471 = vmul.f32 %v413, 1.442695
    %v472 = vpow.pop %v471
    %v473 = vmul.f32 %v414, 1.442695
    %v474 = vpow.pop %v473
    %v475 = vmul.f32 %v415, 1.442695
    %v476 = vpow.pop %v475
    %v477 = vmul.f32 %v416, 1.442695
    %v478 = vpow.pop %v477
    %v479 = vmul.f32 %v417, 1.442695
    %v480 = vpow.pop %v479
    %v481 = vmul.f32 %v418, 1.442695
    %v482 = vpow.pop %v481
    %v483 = vsub.f32 %v420, 1.0
    %v484 = vsub.f32 %v422, 1.0
    %v485 = vsub.f32 %v424, 1.0
    %v486 = vsub.f32 %v426, 1.0
    %v487 = vsub.f32 %v428, 1.0
    %v488 = vsub.f32 %v430, 1.0
    %v489 = vsub.f32 %v432, 1.0
    %v490 = vsub.f32 %v434, 1.0
    %v491 = vsub.f32 %v436, 1.0
    %v492 = vsub.f32 %v438, 1.0
    %v493 = vsub.f32 %v440, 1.0
    %v494 = vsub.f32 %v442, 1.0
    %v495 = vsub.f32 %v444, 1.0
    %v496 = vsub.f32 %v446, 1.0
    %v497 = vsub.f32 %v448, 1.0
    %v498 = vsub.f32 %v450, 1.0
    %v499 = vsub.f32 %v452, 1.0
    %v500 = vsub.f32 %v454, 1.0
    %v501 = vsub.f32 %v456, 1.0
    %v502 = vsub.f32 %v458, 1.0
    %v503 = vsub.f32 %v460, 1.0
    %v504 = vsub.f32 %v462, 1.0
    %v505 = vsub.f32 %v464, 1.0
    %v506 = vsub.f32 %v466, 1.0
    %v507 = vsub.f32 %v468, 1.0
    %v508 = vsub.f32 %v470, 1.0
    %v509 = vsub.f32 %v472, 1.0
    %v510 = vsub.f32 %v474, 1.0
    %v511 = vsub.f32 %v476, 1.0
    %v512 = vsub.f32 %v478, 1.0
    %v513 = vsub.f32 %v480, 1.0
    %v514 = vsub.f32 %v482, 1.0
    %v515 = vsel %vm355, %v261, %v483
    %v516 = vsel %vm356, %v263, %v484
    %v517 = vsel %vm357, %v267, %v485
    %v518 = vsel %vm358, %v269, %v486
    %v519 = vsel %vm359, %v273, %v487
    %v520 = vsel %vm360, %v275, %v488
    %v521 = vsel %vm361, %v279, %v489
    %v522 = vsel %vm362, %v281, %v490
    %v523 = vsel %vm363, %v285, %v491
    %v524 = vsel %vm364, %v287, %v492
    %v525 = vsel %vm365, %v291, %v493
    %v526 = vsel %vm366, %v293, %v494
    %v527 = vsel %vm367, %v297, %v495
    %v528 = vsel %vm368, %v299, %v496
    %v529 = vsel %vm369, %v303, %v497
    %v530 = vsel %vm370, %v305, %v498
    %v531 = vsel %vm371, %v309, %v499
    %v532 = vsel %vm372, %v311, %v500
    %v533 = vsel %vm373, %v315, %v501
    %v534 = vsel %vm374, %v317, %v502
    %v535 = vsel %vm375, %v321, %v503
    %v536 = vsel %vm376, %v323, %v504
    %v537 = vsel %vm377, %v327, %v505
    %v538 = vsel %vm378, %v329, %v506
    %v539 = vsel %vm379, %v333, %v507
    %v540 = vsel %vm380, %v335, %v508
    %v541 = vsel %vm381, %v339, %v509
    %v542 = vsel %vm382, %v341, %v510
    %v543 = vsel %vm383, %v345, %v511
    %v544 = vsel %vm384, %v347, %v512
    %v545 = vsel %vm385, %v351, %v513
    %v546 = vsel %vm386, %v353, %v514
    %547 = vst [vmem:[#allocation2] sm:$0xff] 0.0
    %548 = vst [vmem:[#allocation2 + $0x8] sm:$0xff] 0.0
    %549 = vst [vmem:[#allocation2 + $0x10] sm:$0xff] 0.0
    %550 = vst [vmem:[#allocation2 + $0x18] sm:$0xff] 0.0
    %s551 = scalar_lea.vmem [#allocation2], 288
    %552 = vst [vmem:[%s551] sm:$0xff] 0.0
    %553 = vst [vmem:[%s551 + $0x8] sm:$0xff] 0.0
    %554 = vst [vmem:[%s551 + $0x10] sm:$0xff] 0.0
    %555 = vst [vmem:[%s551 + $0x18] sm:$0xff] 0.0
    %s556 = scalar_lea.vmem [#allocation2], 32
    %557 = vst [vmem:[%s556] sm:$0xff] %v515
    %558 = vst [vmem:[%s556 + $0x8] sm:$0xff] %v516
    %559 = vst [vmem:[%s556 + $0x10] sm:$0xff] %v517
    %560 = vst [vmem:[%s556 + $0x18] sm:$0xff] %v518
    %561 = vst [vmem:[%s556 + $0x20] sm:$0xff] %v519
    %562 = vst [vmem:[%s556 + $0x28] sm:$0xff] %v520
    %563 = vst [vmem:[%s556 + $0x30] sm:$0xff] %v521
    %564 = vst [vmem:[%s556 + $0x38] sm:$0xff] %v522
    %565 = vst [vmem:[%s556 + $0x40] sm:$0xff] %v523
    %566 = vst [vmem:[%s556 + $0x48] sm:$0xff] %v524
    %567 = vst [vmem:[%s556 + $0x50] sm:$0xff] %v525
    %568 = vst [vmem:[%s556 + $0x58] sm:$0xff] %v526
    %569 = vst [vmem:[%s556 + $0x60] sm:$0xff] %v527
    %570 = vst [vmem:[%s556 + $0x68] sm:$0xff] %v528
    %571 = vst [vmem:[%s556 + $0x70] sm:$0xff] %v529
    %572 = vst [vmem:[%s556 + $0x78] sm:$0xff] %v530
    %573 = vst [vmem:[%s556 + $0x80] sm:$0xff] %v531
    %574 = vst [vmem:[%s556 + $0x88] sm:$0xff] %v532
    %575 = vst [vmem:[%s556 + $0x90] sm:$0xff] %v533
    %576 = vst [vmem:[%s556 + $0x98] sm:$0xff] %v534
    %577 = vst [vmem:[%s556 + $0xa0] sm:$0xff] %v535
    %578 = vst [vmem:[%s556 + $0xa8] sm:$0xff] %v536
    %579 = vst [vmem:[%s556 + $0xb0] sm:$0xff] %v537
    %580 = vst [vmem:[%s556 + $0xb8] sm:$0xff] %v538
    %581 = vst [vmem:[%s556 + $0xc0] sm:$0xff] %v539
    %582 = vst [vmem:[%s556 + $0xc8] sm:$0xff] %v540
    %583 = vst [vmem:[%s556 + $0xd0] sm:$0xff] %v541
    %584 = vst [vmem:[%s556 + $0xd8] sm:$0xff] %v542
    %585 = vst [vmem:[%s556 + $0xe0] sm:$0xff] %v543
    %586 = vst [vmem:[%s556 + $0xe8] sm:$0xff] %v544
    %587 = vst [vmem:[%s556 + $0xf0] sm:$0xff] %v545
    %588 = vst [vmem:[%s556 + $0xf8] sm:$0xff] %v546
    %v589 = vld [vmem:[#allocation2] sm:$0xff]
    %v590 = vld [vmem:[#allocation2 + $0x8] sm:$0xff]
    %v591 = vld [vmem:[#allocation2 + $0x10] sm:$0xff]
    %v592 = vld [vmem:[#allocation2 + $0x18] sm:$0xff]
    %v593 = vld [vmem:[#allocation2 + $0x20] sm:$0xff]
    %v594 = vld [vmem:[#allocation2 + $0x28] sm:$0xff]
    %v595 = vld [vmem:[#allocation2 + $0x30] sm:$0xff]
    %v596 = vld [vmem:[#allocation2 + $0x38] sm:$0xff]
    %v597 = vld [vmem:[#allocation2 + $0x40] sm:$0xff]
    %v598 = vld [vmem:[#allocation2 + $0x48] sm:$0xff]
    %v599 = vld [vmem:[#allocation2 + $0x50] sm:$0xff]
    %v600 = vld [vmem:[#allocation2 + $0x58] sm:$0xff]
    %v601 = vld [vmem:[#allocation2 + $0x60] sm:$0xff]
    %v602 = vld [vmem:[#allocation2 + $0x68] sm:$0xff]
    %v603 = vld [vmem:[#allocation2 + $0x70] sm:$0xff]
    %v604 = vld [vmem:[#allocation2 + $0x78] sm:$0xff]
    %v605 = vld [vmem:[#allocation2 + $0x80] sm:$0xff]
    %v606 = vld [vmem:[#allocation2 + $0x88] sm:$0xff]
    %v607 = vld [vmem:[#allocation2 + $0x90] sm:$0xff]
    %v608 = vld [vmem:[#allocation2 + $0x98] sm:$0xff]
    %v609 = vld [vmem:[#allocation2 + $0xa0] sm:$0xff]
    %v610 = vld [vmem:[#allocation2 + $0xa8] sm:$0xff]
    %v611 = vld [vmem:[#allocation2 + $0xb0] sm:$0xff]
    %v612 = vld [vmem:[#allocation2 + $0xb8] sm:$0xff]
    %v613 = vld [vmem:[#allocation2 + $0xc0] sm:$0xff]
    %v614 = vld [vmem:[#allocation2 + $0xc8] sm:$0xff]
    %v615 = vld [vmem:[#allocation2 + $0xd0] sm:$0xff]
    %v616 = vld [vmem:[#allocation2 + $0xd8] sm:$0xff]
    %v617 = vld [vmem:[#allocation2 + $0xe0] sm:$0xff]
    %v618 = vld [vmem:[#allocation2 + $0xe8] sm:$0xff]
    %v619 = vld [vmem:[#allocation2 + $0xf0] sm:$0xff]
    %v620 = vld [vmem:[#allocation2 + $0xf8] sm:$0xff]
    %v621 = vld [vmem:[#allocation9] sm:$0xff]
    %v622 = vld [vmem:[#allocation9 + $0x8] sm:$0xff]
    %v623 = vld [vmem:[#allocation9 + $0x10] sm:$0xff]
    %v624 = vld [vmem:[#allocation9 + $0x18] sm:$0xff]
    %v625 = vld [vmem:[#allocation9 + $0x20] sm:$0xff]
    %v626 = vld [vmem:[#allocation9 + $0x28] sm:$0xff]
    %v627 = vld [vmem:[#allocation9 + $0x30] sm:$0xff]
    %v628 = vld [vmem:[#allocation9 + $0x38] sm:$0xff]
    %v629 = vld [vmem:[#allocation9 + $0x40] sm:$0xff]
    %v630 = vld [vmem:[#allocation9 + $0x48] sm:$0xff]
    %v631 = vld [vmem:[#allocation9 + $0x50] sm:$0xff]
    %v632 = vld [vmem:[#allocation9 + $0x58] sm:$0xff]
    %v633 = vld [vmem:[#allocation9 + $0x60] sm:$0xff]
    %v634 = vld [vmem:[#allocation9 + $0x68] sm:$0xff]
    %v635 = vld [vmem:[#allocation9 + $0x70] sm:$0xff]
    %v636 = vld [vmem:[#allocation9 + $0x78] sm:$0xff]
    %v637 = vld [vmem:[#allocation9 + $0x80] sm:$0xff]
    %v638 = vld [vmem:[#allocation9 + $0x88] sm:$0xff]
    %v639 = vld [vmem:[#allocation9 + $0x90] sm:$0xff]
    %v640 = vld [vmem:[#allocation9 + $0x98] sm:$0xff]
    %v641 = vld [vmem:[#allocation9 + $0xa0] sm:$0xff]
    %v642 = vld [vmem:[#allocation9 + $0xa8] sm:$0xff]
    %v643 = vld [vmem:[#allocation9 + $0xb0] sm:$0xff]
    %v644 = vld [vmem:[#allocation9 + $0xb8] sm:$0xff]
    %v645 = vld [vmem:[#allocation9 + $0xc0] sm:$0xff]
    %v646 = vld [vmem:[#allocation9 + $0xc8] sm:$0xff]
    %v647 = vld [vmem:[#allocation9 + $0xd0] sm:$0xff]
    %v648 = vld [vmem:[#allocation9 + $0xd8] sm:$0xff]
    %v649 = vld [vmem:[#allocation9 + $0xe0] sm:$0xff]
    %v650 = vld [vmem:[#allocation9 + $0xe8] sm:$0xff]
    %v651 = vld [vmem:[#allocation9 + $0xf0] sm:$0xff]
    %v652 = vld [vmem:[#allocation9 + $0xf8] sm:$0xff]
    %v653 = vld [vmem:[#allocation9 + $0x100] sm:$0xff]
    %v654 = vld [vmem:[#allocation9 + $0x108] sm:$0xff]
    %v655 = vld [vmem:[#allocation9 + $0x110] sm:$0xff]
    %v656 = vld [vmem:[#allocation9 + $0x118] sm:$0xff]
    %v657 = vld [vmem:[#allocation9 + $0x120] sm:$0xff]
    %v658 = vld [vmem:[#allocation9 + $0x128] sm:$0xff]
    %v659 = vld [vmem:[#allocation9 + $0x130] sm:$0xff]
    %v660 = vld [vmem:[#allocation9 + $0x138] sm:$0xff]
    %v661 = vld [vmem:[#allocation9 + $0x140] sm:$0xff]
    %v662 = vld [vmem:[#allocation9 + $0x148] sm:$0xff]
    %v663 = vld [vmem:[#allocation9 + $0x150] sm:$0xff]
    %v664 = vld [vmem:[#allocation9 + $0x158] sm:$0xff]
    %v665 = vld [vmem:[#allocation9 + $0x160] sm:$0xff]
    %v666 = vld [vmem:[#allocation9 + $0x168] sm:$0xff]
    %v667 = vld [vmem:[#allocation9 + $0x170] sm:$0xff]
    %v668 = vld [vmem:[#allocation9 + $0x178] sm:$0xff]
    %v669 = vld [vmem:[#allocation9 + $0x180] sm:$0xff]
    %v670 = vld [vmem:[#allocation9 + $0x188] sm:$0xff]
    %v671 = vld [vmem:[#allocation9 + $0x190] sm:$0xff]
    %v672 = vld [vmem:[#allocation9 + $0x198] sm:$0xff]
    %v673 = vld [vmem:[#allocation9 + $0x1a0] sm:$0xff]
    %v674 = vld [vmem:[#allocation9 + $0x1a8] sm:$0xff]
    %v675 = vld [vmem:[#allocation9 + $0x1b0] sm:$0xff]
    %v676 = vld [vmem:[#allocation9 + $0x1b8] sm:$0xff]
    %v677 = vld [vmem:[#allocation9 + $0x1c0] sm:$0xff]
    %v678 = vld [vmem:[#allocation9 + $0x1c8] sm:$0xff]
    %v679 = vld [vmem:[#allocation9 + $0x1d0] sm:$0xff]
    %v680 = vld [vmem:[#allocation9 + $0x1d8] sm:$0xff]
    %v681 = vld [vmem:[#allocation9 + $0x1e0] sm:$0xff]
    %v682 = vld [vmem:[#allocation9 + $0x1e8] sm:$0xff]
    %v683 = vld [vmem:[#allocation9 + $0x1f0] sm:$0xff]
    %v684 = vld [vmem:[#allocation9 + $0x1f8] sm:$0xff]
    %v685 = vld [vmem:[#allocation11] sm:$0x3]
    %v687 = vlaneseq
    %v688 = vshrl.u32 %v687, 7
    %v689 = vsub.s32 0, %v688
    %v690 = vrot.slane %v685, %v689
    %v691 = vlaneseq
    %v692 = vshrl.u32 %v691, 7
    %v693 = vsub.s32 1, %v692
    %v694 = vrot.slane %v685, %v693
    %697 = vmatprep.subr.mxu0 %v622
    %698 = vmatpush1.msra.mxu0 %v621
    %699 = vmatprep.subr.mxu0 %v624
    %700 = vmatpush1.msra.mxu0 %v623
    %701 = vmatprep.subr.mxu0 %v626
    %702 = vmatpush1.msra.mxu0 %v625
    %703 = vmatprep.subr.mxu0 %v628
    %704 = vmatpush1.msra.mxu0 %v627
    %705 = vmatprep.subr.mxu0 %v630
    %706 = vmatpush1.msra.mxu0 %v629
    %707 = vmatprep.subr.mxu0 %v632
    %708 = vmatpush1.msra.mxu0 %v631
    %709 = vmatprep.subr.mxu0 %v634
    %710 = vmatpush1.msra.mxu0 %v633
    %711 = vmatprep.subr.mxu0 %v636
    %712 = vmatpush1.msra.mxu0 %v635
    %713 = vmatprep.subr.mxu0 %v638
    %714 = vmatpush1.msra.mxu0 %v637
    %715 = vmatprep.subr.mxu0 %v640
    %716 = vmatpush1.msra.mxu0 %v639
    %717 = vmatprep.subr.mxu0 %v642
    %718 = vmatpush1.msra.mxu0 %v641
    %719 = vmatprep.subr.mxu0 %v644
    %720 = vmatpush1.msra.mxu0 %v643
    %721 = vmatprep.subr.mxu0 %v646
    %722 = vmatpush1.msra.mxu0 %v645
    %723 = vmatprep.subr.mxu0 %v648
    %724 = vmatpush1.msra.mxu0 %v647
    %725 = vmatprep.subr.mxu0 %v650
    %726 = vmatpush1.msra.mxu0 %v649
    %727 = vmatprep.subr.mxu0 %v652
    %728 = vmatpush1.msra.mxu0 %v651
    %729 = vmatprep.subr.mxu0 %v654
    %730 = vmatpush1.msra.mxu0 %v653
    %731 = vmatprep.subr.mxu0 %v656
    %732 = vmatpush1.msra.mxu0 %v655
    %733 = vmatprep.subr.mxu0 %v658
    %734 = vmatpush1.msra.mxu0 %v657
    %735 = vmatprep.subr.mxu0 %v660
    %736 = vmatpush1.msra.mxu0 %v659
    %737 = vmatprep.subr.mxu0 %v662
    %738 = vmatpush1.msra.mxu0 %v661
    %739 = vmatprep.subr.mxu0 %v664
    %740 = vmatpush1.msra.mxu0 %v663
    %741 = vmatprep.subr.mxu0 %v666
    %742 = vmatpush1.msra.mxu0 %v665
    %743 = vmatprep.subr.mxu0 %v668
    %744 = vmatpush1.msra.mxu0 %v667
    %745 = vmatprep.subr.mxu0 %v670
    %746 = vmatpush1.msra.mxu0 %v669
    %747 = vmatprep.subr.mxu0 %v672
    %748 = vmatpush1.msra.mxu0 %v671
    %749 = vmatprep.subr.mxu0 %v674
    %750 = vmatpush1.msra.mxu0 %v673
    %751 = vmatprep.subr.mxu0 %v676
    %752 = vmatpush1.msra.mxu0 %v675
    %753 = vmatprep.subr.mxu0 %v678
    %754 = vmatpush1.msra.mxu0 %v677
    %755 = vmatprep.subr.mxu0 %v680
    %756 = vmatpush1.msra.mxu0 %v679
    %757 = vmatprep.subr.mxu0 %v682
    %758 = vmatpush1.msra.mxu0 %v681
    %759 = vmatprep.subr.mxu0 %v684
    %760 = vmatpush1.msra.mxu0 %v683
    %761 = vmatprep.mubr.f32.mxu0 %v590
    %762 = vmatmul.mubr.f32.gmra.mrb[0].mxu0 %v589
    %v763 = vpop.f32.mrb[0].mxu0
    %v764 = vadd.f32 %v690, %v763
    %v765 = vpop.f32.mrb[0].mxu0
    %v766 = vadd.f32 %v694, %v765
    %767 = vmatprep.mubr.f32.mxu0 %v592
    %768 = vmatmul.mubr.f32.gmra.mrb[0].mxu0 %v591
    %v769 = vpop.f32.mrb[0].mxu0
    %v770 = vadd.f32 %v690, %v769
    %v771 = vpop.f32.mrb[0].mxu0
    %v772 = vadd.f32 %v694, %v771
    %773 = vmatprep.mubr.f32.mxu0 %v594
    %774 = vmatmul.mubr.f32.gmra.mrb[0].mxu0 %v593
    %v775 = vpop.f32.mrb[0].mxu0
    %v776 = vadd.f32 %v690, %v775
    %v777 = vpop.f32.mrb[0].mxu0
    %v778 = vadd.f32 %v694, %v777
    %779 = vmatprep.mubr.f32.mxu0 %v596
    %780 = vmatmul.mubr.f32.gmra.mrb[0].mxu0 %v595
    %v781 = vpop.f32.mrb[0].mxu0
    %v782 = vadd.f32 %v690, %v781
    %v783 = vpop.f32.mrb[0].mxu0
    %v784 = vadd.f32 %v694, %v783
    %785 = vmatprep.mubr.f32.mxu0 %v598
    %786 = vmatmul.mubr.f32.gmra.mrb[0].mxu0 %v597
    %v787 = vpop.f32.mrb[0].mxu0
    %v788 = vadd.f32 %v690, %v787
    %v789 = vpop.f32.mrb[0].mxu0
    %v790 = vadd.f32 %v694, %v789
    %791 = vmatprep.mubr.f32.mxu0 %v600
    %792 = vmatmul.mubr.f32.gmra.mrb[0].mxu0 %v599
    %v793 = vpop.f32.mrb[0].mxu0
    %v794 = vadd.f32 %v690, %v793
    %v795 = vpop.f32.mrb[0].mxu0
    %v796 = vadd.f32 %v694, %v795
    %797 = vmatprep.mubr.f32.mxu0 %v602
    %798 = vmatmul.mubr.f32.gmra.mrb[0].mxu0 %v601
    %v799 = vpop.f32.mrb[0].mxu0
    %v800 = vadd.f32 %v690, %v799
    %v801 = vpop.f32.mrb[0].mxu0
    %v802 = vadd.f32 %v694, %v801
    %803 = vmatprep.mubr.f32.mxu0 %v604
    %804 = vmatmul.mubr.f32.gmra.mrb[0].mxu0 %v603
    %v805 = vpop.f32.mrb[0].mxu0
    %v806 = vadd.f32 %v690, %v805
    %v807 = vpop.f32.mrb[0].mxu0
    %v808 = vadd.f32 %v694, %v807
    %809 = vmatprep.mubr.f32.mxu0 %v606
    %810 = vmatmul.mubr.f32.gmra.mrb[0].mxu0 %v605
    %v811 = vpop.f32.mrb[0].mxu0
    %v812 = vadd.f32 %v690, %v811
    %v813 = vpop.f32.mrb[0].mxu0
    %v814 = vadd.f32 %v694, %v813
    %815 = vmatprep.mubr.f32.mxu0 %v608
    %816 = vmatmul.mubr.f32.gmra.mrb[0].mxu0 %v607
    %v817 = vpop.f32.mrb[0].mxu0
    %v818 = vadd.f32 %v690, %v817
    %v819 = vpop.f32.mrb[0].mxu0
    %v820 = vadd.f32 %v694, %v819
    %821 = vmatprep.mubr.f32.mxu0 %v610
    %822 = vmatmul.mubr.f32.gmra.mrb[0].mxu0 %v609
    %v823 = vpop.f32.mrb[0].mxu0
    %v824 = vadd.f32 %v690, %v823
    %v825 = vpop.f32.mrb[0].mxu0
    %v826 = vadd.f32 %v694, %v825
    %827 = vmatprep.mubr.f32.mxu0 %v612
    %828 = vmatmul.mubr.f32.gmra.mrb[0].mxu0 %v611
    %v829 = vpop.f32.mrb[0].mxu0
    %v830 = vadd.f32 %v690, %v829
    %v831 = vpop.f32.mrb[0].mxu0
    %v832 = vadd.f32 %v694, %v831
    %833 = vmatprep.mubr.f32.mxu0 %v614
    %834 = vmatmul.mubr.f32.gmra.mrb[0].mxu0 %v613
    %v835 = vpop.f32.mrb[0].mxu0
    %v836 = vadd.f32 %v690, %v835
    %v837 = vpop.f32.mrb[0].mxu0
    %v838 = vadd.f32 %v694, %v837
    %839 = vmatprep.mubr.f32.mxu0 %v616
    %840 = vmatmul.mubr.f32.gmra.mrb[0].mxu0 %v615
    %v841 = vpop.f32.mrb[0].mxu0
    %v842 = vadd.f32 %v690, %v841
    %v843 = vpop.f32.mrb[0].mxu0
    %v844 = vadd.f32 %v694, %v843
    %845 = vmatprep.mubr.f32.mxu0 %v618
    %846 = vmatmul.mubr.f32.gmra.mrb[0].mxu0 %v617
    %v847 = vpop.f32.mrb[0].mxu0
    %v848 = vadd.f32 %v690, %v847
    %v849 = vpop.f32.mrb[0].mxu0
    %v850 = vadd.f32 %v694, %v849
    %851 = vmatprep.mubr.f32.mxu0 %v620
    %852 = vmatmul.mubr.f32.gmra.mrb[0].mxu0 %v619
    %v853 = vpop.f32.mrb[0].mxu0
    %v854 = vadd.f32 %v690, %v853
    %v855 = vpop.f32.mrb[0].mxu0
    %v856 = vadd.f32 %v694, %v855
    %857 = vdwg.mxu0
    %s858 = scalar_lea.vmem [#allocation2], 16
    %v859 = vld [vmem:[%s858] sm:$0xff]
    %v860 = vld [vmem:[%s858 + $0x8] sm:$0xff]
    %v861 = vld [vmem:[%s858 + $0x10] sm:$0xff]
    %v862 = vld [vmem:[%s858 + $0x18] sm:$0xff]
    %v863 = vld [vmem:[%s858 + $0x20] sm:$0xff]
    %v864 = vld [vmem:[%s858 + $0x28] sm:$0xff]
    %v865 = vld [vmem:[%s858 + $0x30] sm:$0xff]
    %v866 = vld [vmem:[%s858 + $0x38] sm:$0xff]
    %v867 = vld [vmem:[%s858 + $0x40] sm:$0xff]
    %v868 = vld [vmem:[%s858 + $0x48] sm:$0xff]
    %v869 = vld [vmem:[%s858 + $0x50] sm:$0xff]
    %v870 = vld [vmem:[%s858 + $0x58] sm:$0xff]
    %v871 = vld [vmem:[%s858 + $0x60] sm:$0xff]
    %v872 = vld [vmem:[%s858 + $0x68] sm:$0xff]
    %v873 = vld [vmem:[%s858 + $0x70] sm:$0xff]
    %v874 = vld [vmem:[%s858 + $0x78] sm:$0xff]
    %v875 = vld [vmem:[%s858 + $0x80] sm:$0xff]
    %v876 = vld [vmem:[%s858 + $0x88] sm:$0xff]
    %v877 = vld [vmem:[%s858 + $0x90] sm:$0xff]
    %v878 = vld [vmem:[%s858 + $0x98] sm:$0xff]
    %v879 = vld [vmem:[%s858 + $0xa0] sm:$0xff]
    %v880 = vld [vmem:[%s858 + $0xa8] sm:$0xff]
    %v881 = vld [vmem:[%s858 + $0xb0] sm:$0xff]
    %v882 = vld [vmem:[%s858 + $0xb8] sm:$0xff]
    %v883 = vld [vmem:[%s858 + $0xc0] sm:$0xff]
    %v884 = vld [vmem:[%s858 + $0xc8] sm:$0xff]
    %v885 = vld [vmem:[%s858 + $0xd0] sm:$0xff]
    %v886 = vld [vmem:[%s858 + $0xd8] sm:$0xff]
    %v887 = vld [vmem:[%s858 + $0xe0] sm:$0xff]
    %v888 = vld [vmem:[%s858 + $0xe8] sm:$0xff]
    %v889 = vld [vmem:[%s858 + $0xf0] sm:$0xff]
    %v890 = vld [vmem:[%s858 + $0xf8] sm:$0xff]
    %s891 = scalar_lea.vmem [#allocation9], 512
    %v892 = vld [vmem:[%s891] sm:$0xff]
    %v893 = vld [vmem:[%s891 + $0x8] sm:$0xff]
    %v894 = vld [vmem:[%s891 + $0x10] sm:$0xff]
    %v895 = vld [vmem:[%s891 + $0x18] sm:$0xff]
    %v896 = vld [vmem:[%s891 + $0x20] sm:$0xff]
    %v897 = vld [vmem:[%s891 + $0x28] sm:$0xff]
    %v898 = vld [vmem:[%s891 + $0x30] sm:$0xff]
    %v899 = vld [vmem:[%s891 + $0x38] sm:$0xff]
    %v900 = vld [vmem:[%s891 + $0x40] sm:$0xff]
    %v901 = vld [vmem:[%s891 + $0x48] sm:$0xff]
    %v902 = vld [vmem:[%s891 + $0x50] sm:$0xff]
    %v903 = vld [vmem:[%s891 + $0x58] sm:$0xff]
    %v904 = vld [vmem:[%s891 + $0x60] sm:$0xff]
    %v905 = vld [vmem:[%s891 + $0x68] sm:$0xff]
    %v906 = vld [vmem:[%s891 + $0x70] sm:$0xff]
    %v907 = vld [vmem:[%s891 + $0x78] sm:$0xff]
    %v908 = vld [vmem:[%s891 + $0x80] sm:$0xff]
    %v909 = vld [vmem:[%s891 + $0x88] sm:$0xff]
    %v910 = vld [vmem:[%s891 + $0x90] sm:$0xff]
    %v911 = vld [vmem:[%s891 + $0x98] sm:$0xff]
    %v912 = vld [vmem:[%s891 + $0xa0] sm:$0xff]
    %v913 = vld [vmem:[%s891 + $0xa8] sm:$0xff]
    %v914 = vld [vmem:[%s891 + $0xb0] sm:$0xff]
    %v915 = vld [vmem:[%s891 + $0xb8] sm:$0xff]
    %v916 = vld [vmem:[%s891 + $0xc0] sm:$0xff]
    %v917 = vld [vmem:[%s891 + $0xc8] sm:$0xff]
    %v918 = vld [vmem:[%s891 + $0xd0] sm:$0xff]
    %v919 = vld [vmem:[%s891 + $0xd8] sm:$0xff]
    %v920 = vld [vmem:[%s891 + $0xe0] sm:$0xff]
    %v921 = vld [vmem:[%s891 + $0xe8] sm:$0xff]
    %v922 = vld [vmem:[%s891 + $0xf0] sm:$0xff]
    %v923 = vld [vmem:[%s891 + $0xf8] sm:$0xff]
    %v924 = vld [vmem:[%s891 + $0x100] sm:$0xff]
    %v925 = vld [vmem:[%s891 + $0x108] sm:$0xff]
    %v926 = vld [vmem:[%s891 + $0x110] sm:$0xff]
    %v927 = vld [vmem:[%s891 + $0x118] sm:$0xff]
    %v928 = vld [vmem:[%s891 + $0x120] sm:$0xff]
    %v929 = vld [vmem:[%s891 + $0x128] sm:$0xff]
    %v930 = vld [vmem:[%s891 + $0x130] sm:$0xff]
    %v931 = vld [vmem:[%s891 + $0x138] sm:$0xff]
    %v932 = vld [vmem:[%s891 + $0x140] sm:$0xff]
    %v933 = vld [vmem:[%s891 + $0x148] sm:$0xff]
    %v934 = vld [vmem:[%s891 + $0x150] sm:$0xff]
    %v935 = vld [vmem:[%s891 + $0x158] sm:$0xff]
    %v936 = vld [vmem:[%s891 + $0x160] sm:$0xff]
    %v937 = vld [vmem:[%s891 + $0x168] sm:$0xff]
    %v938 = vld [vmem:[%s891 + $0x170] sm:$0xff]
    %v939 = vld [vmem:[%s891 + $0x178] sm:$0xff]
    %v940 = vld [vmem:[%s891 + $0x180] sm:$0xff]
    %v941 = vld [vmem:[%s891 + $0x188] sm:$0xff]
    %v942 = vld [vmem:[%s891 + $0x190] sm:$0xff]
    %v943 = vld [vmem:[%s891 + $0x198] sm:$0xff]
    %v944 = vld [vmem:[%s891 + $0x1a0] sm:$0xff]
    %v945 = vld [vmem:[%s891 + $0x1a8] sm:$0xff]
    %v946 = vld [vmem:[%s891 + $0x1b0] sm:$0xff]
    %v947 = vld [vmem:[%s891 + $0x1b8] sm:$0xff]
    %v948 = vld [vmem:[%s891 + $0x1c0] sm:$0xff]
    %v949 = vld [vmem:[%s891 + $0x1c8] sm:$0xff]
    %v950 = vld [vmem:[%s891 + $0x1d0] sm:$0xff]
    %v951 = vld [vmem:[%s891 + $0x1d8] sm:$0xff]
    %v952 = vld [vmem:[%s891 + $0x1e0] sm:$0xff]
    %v953 = vld [vmem:[%s891 + $0x1e8] sm:$0xff]
    %v954 = vld [vmem:[%s891 + $0x1f0] sm:$0xff]
    %v955 = vld [vmem:[%s891 + $0x1f8] sm:$0xff]
    %956 = vmatprep.subr.mxu0 %v893
    %957 = vmatpush1.msra.mxu0 %v892
    %958 = vmatprep.subr.mxu0 %v895
    %959 = vmatpush1.msra.mxu0 %v894
    %960 = vmatprep.subr.mxu0 %v897
    %961 = vmatpush1.msra.mxu0 %v896
    %962 = vmatprep.subr.mxu0 %v899
    %963 = vmatpush1.msra.mxu0 %v898
    %964 = vmatprep.subr.mxu0 %v901
    %965 = vmatpush1.msra.mxu0 %v900
    %966 = vmatprep.subr.mxu0 %v903
    %967 = vmatpush1.msra.mxu0 %v902
    %968 = vmatprep.subr.mxu0 %v905
    %969 = vmatpush1.msra.mxu0 %v904
    %970 = vmatprep.subr.mxu0 %v907
    %971 = vmatpush1.msra.mxu0 %v906
    %972 = vmatprep.subr.mxu0 %v909
    %973 = vmatpush1.msra.mxu0 %v908
    %974 = vmatprep.subr.mxu0 %v911
    %975 = vmatpush1.msra.mxu0 %v910
    %976 = vmatprep.subr.mxu0 %v913
    %977 = vmatpush1.msra.mxu0 %v912
    %978 = vmatprep.subr.mxu0 %v915
    %979 = vmatpush1.msra.mxu0 %v914
    %980 = vmatprep.subr.mxu0 %v917
    %981 = vmatpush1.msra.mxu0 %v916
    %982 = vmatprep.subr.mxu0 %v919
    %983 = vmatpush1.msra.mxu0 %v918
    %984 = vmatprep.subr.mxu0 %v921
    %985 = vmatpush1.msra.mxu0 %v920
    %986 = vmatprep.subr.mxu0 %v923
    %987 = vmatpush1.msra.mxu0 %v922
    %988 = vmatprep.subr.mxu0 %v925
    %989 = vmatpush1.msra.mxu0 %v924
    %990 = vmatprep.subr.mxu0 %v927
    %991 = vmatpush1.msra.mxu0 %v926
    %992 = vmatprep.subr.mxu0 %v929
    %993 = vmatpush1.msra.mxu0 %v928
    %994 = vmatprep.subr.mxu0 %v931
    %995 = vmatpush1.msra.mxu0 %v930
    %996 = vmatprep.subr.mxu0 %v933
    %997 = vmatpush1.msra.mxu0 %v932
    %998 = vmatprep.subr.mxu0 %v935
    %999 = vmatpush1.msra.mxu0 %v934
    %1000 = vmatprep.subr.mxu0 %v937
    %1001 = vmatpush1.msra.mxu0 %v936
    %1002 = vmatprep.subr.mxu0 %v939
    %1003 = vmatpush1.msra.mxu0 %v938
    %1004 = vmatprep.subr.mxu0 %v941
    %1005 = vmatpush1.msra.mxu0 %v940
    %1006 = vmatprep.subr.mxu0 %v943
    %1007 = vmatpush1.msra.mxu0 %v942
    %1008 = vmatprep.subr.mxu0 %v945
    %1009 = vmatpush1.msra.mxu0 %v944
    %1010 = vmatprep.subr.mxu0 %v947
    %1011 = vmatpush1.msra.mxu0 %v946
    %1012 = vmatprep.subr.mxu0 %v949
    %1013 = vmatpush1.msra.mxu0 %v948
    %1014 = vmatprep.subr.mxu0 %v951
    %1015 = vmatpush1.msra.mxu0 %v950
    %1016 = vmatprep.subr.mxu0 %v953
    %1017 = vmatpush1.msra.mxu0 %v952
    %1018 = vmatprep.subr.mxu0 %v955
    %1019 = vmatpush1.msra.mxu0 %v954
    %1020 = vmatprep.mubr.f32.mxu0 %v860
    %1021 = vmatmul.mubr.f32.gmra.mrb[0].mxu0 %v859
    %v1022 = vpop.f32.mrb[0].mxu0
    %v1023 = vadd.f32 0.0, %v1022
    %v1024 = vpop.f32.mrb[0].mxu0
    %v1025 = vadd.f32 0.0, %v1024
    %1026 = vmatprep.mubr.f32.mxu0 %v862
    %1027 = vmatmul.mubr.f32.gmra.mrb[0].mxu0 %v861
    %v1028 = vpop.f32.mrb[0].mxu0
    %v1029 = vadd.f32 0.0, %v1028
    %v1030 = vpop.f32.mrb[0].mxu0
    %v1031 = vadd.f32 0.0, %v1030
    %1032 = vmatprep.mubr.f32.mxu0 %v864
    %1033 = vmatmul.mubr.f32.gmra.mrb[0].mxu0 %v863
    %v1034 = vpop.f32.mrb[0].mxu0
    %v1035 = vadd.f32 0.0, %v1034
    %v1036 = vpop.f32.mrb[0].mxu0
    %v1037 = vadd.f32 0.0, %v1036
    %1038 = vmatprep.mubr.f32.mxu0 %v866
    %1039 = vmatmul.mubr.f32.gmra.mrb[0].mxu0 %v865
    %v1040 = vpop.f32.mrb[0].mxu0
    %v1041 = vadd.f32 0.0, %v1040
    %v1042 = vpop.f32.mrb[0].mxu0
    %v1043 = vadd.f32 0.0, %v1042
    %1044 = vmatprep.mubr.f32.mxu0 %v868
    %1045 = vmatmul.mubr.f32.gmra.mrb[0].mxu0 %v867
    %v1046 = vpop.f32.mrb[0].mxu0
    %v1047 = vadd.f32 0.0, %v1046
    %v1048 = vpop.f32.mrb[0].mxu0
    %v1049 = vadd.f32 0.0, %v1048
    %1050 = vmatprep.mubr.f32.mxu0 %v870
    %1051 = vmatmul.mubr.f32.gmra.mrb[0].mxu0 %v869
    %v1052 = vpop.f32.mrb[0].mxu0
    %v1053 = vadd.f32 0.0, %v1052
    %v1054 = vpop.f32.mrb[0].mxu0
    %v1055 = vadd.f32 0.0, %v1054
    %1056 = vmatprep.mubr.f32.mxu0 %v872
    %1057 = vmatmul.mubr.f32.gmra.mrb[0].mxu0 %v871
    %v1058 = vpop.f32.mrb[0].mxu0
    %v1059 = vadd.f32 0.0, %v1058
    %v1060 = vpop.f32.mrb[0].mxu0
    %v1061 = vadd.f32 0.0, %v1060
    %1062 = vmatprep.mubr.f32.mxu0 %v874
    %1063 = vmatmul.mubr.f32.gmra.mrb[0].mxu0 %v873
    %v1064 = vpop.f32.mrb[0].mxu0
    %v1065 = vadd.f32 0.0, %v1064
    %v1066 = vpop.f32.mrb[0].mxu0
    %v1067 = vadd.f32 0.0, %v1066
    %1068 = vmatprep.mubr.f32.mxu0 %v876
    %1069 = vmatmul.mubr.f32.gmra.mrb[0].mxu0 %v875
    %v1070 = vpop.f32.mrb[0].mxu0
    %v1071 = vadd.f32 0.0, %v1070
    %v1072 = vpop.f32.mrb[0].mxu0
    %v1073 = vadd.f32 0.0, %v1072
    %1074 = vmatprep.mubr.f32.mxu0 %v878
    %1075 = vmatmul.mubr.f32.gmra.mrb[0].mxu0 %v877
    %v1076 = vpop.f32.mrb[0].mxu0
    %v1077 = vadd.f32 0.0, %v1076
    %v1078 = vpop.f32.mrb[0].mxu0
    %v1079 = vadd.f32 0.0, %v1078
    %1080 = vmatprep.mubr.f32.mxu0 %v880
    %1081 = vmatmul.mubr.f32.gmra.mrb[0].mxu0 %v879
    %v1082 = vpop.f32.mrb[0].mxu0
    %v1083 = vadd.f32 0.0, %v1082
    %v1084 = vpop.f32.mrb[0].mxu0
    %v1085 = vadd.f32 0.0, %v1084
    %1086 = vmatprep.mubr.f32.mxu0 %v882
    %1087 = vmatmul.mubr.f32.gmra.mrb[0].mxu0 %v881
    %v1088 = vpop.f32.mrb[0].mxu0
    %v1089 = vadd.f32 0.0, %v1088
    %v1090 = vpop.f32.mrb[0].mxu0
    %v1091 = vadd.f32 0.0, %v1090
    %1092 = vmatprep.mubr.f32.mxu0 %v884
    %1093 = vmatmul.mubr.f32.gmra.mrb[0].mxu0 %v883
    %v1094 = vpop.f32.mrb[0].mxu0
    %v1095 = vadd.f32 0.0, %v1094
    %v1096 = vpop.f32.mrb[0].mxu0
    %v1097 = vadd.f32 0.0, %v1096
    %1098 = vmatprep.mubr.f32.mxu0 %v886
    %1099 = vmatmul.mubr.f32.gmra.mrb[0].mxu0 %v885
    %v1100 = vpop.f32.mrb[0].mxu0
    %v1101 = vadd.f32 0.0, %v1100
    %v1102 = vpop.f32.mrb[0].mxu0
    %v1103 = vadd.f32 0.0, %v1102
    %1104 = vmatprep.mubr.f32.mxu0 %v888
    %1105 = vmatmul.mubr.f32.gmra.mrb[0].mxu0 %v887
    %v1106 = vpop.f32.mrb[0].mxu0
    %v1107 = vadd.f32 0.0, %v1106
    %v1108 = vpop.f32.mrb[0].mxu0
    %v1109 = vadd.f32 0.0, %v1108
    %1110 = vmatprep.mubr.f32.mxu0 %v890
    %1111 = vmatmul.mubr.f32.gmra.mrb[0].mxu0 %v889
    %v1112 = vpop.f32.mrb[0].mxu0
    %v1113 = vadd.f32 0.0, %v1112
    %v1114 = vpop.f32.mrb[0].mxu0
    %v1115 = vadd.f32 0.0, %v1114
    %1116 = vdwg.mxu0
    %v1117 = vadd.f32 %v764, %v1023
    %v1118 = vadd.f32 %v766, %v1025
    %v1119 = vadd.f32 %v770, %v1029
    %v1120 = vadd.f32 %v772, %v1031
    %v1121 = vadd.f32 %v776, %v1035
    %v1122 = vadd.f32 %v778, %v1037
    %v1123 = vadd.f32 %v782, %v1041
    %v1124 = vadd.f32 %v784, %v1043
    %v1125 = vadd.f32 %v788, %v1047
    %v1126 = vadd.f32 %v790, %v1049
    %v1127 = vadd.f32 %v794, %v1053
    %v1128 = vadd.f32 %v796, %v1055
    %v1129 = vadd.f32 %v800, %v1059
    %v1130 = vadd.f32 %v802, %v1061
    %v1131 = vadd.f32 %v806, %v1065
    %v1132 = vadd.f32 %v808, %v1067
    %v1133 = vadd.f32 %v812, %v1071
    %v1134 = vadd.f32 %v814, %v1073
    %v1135 = vadd.f32 %v818, %v1077
    %v1136 = vadd.f32 %v820, %v1079
    %v1137 = vadd.f32 %v824, %v1083
    %v1138 = vadd.f32 %v826, %v1085
    %v1139 = vadd.f32 %v830, %v1089
    %v1140 = vadd.f32 %v832, %v1091
    %v1141 = vadd.f32 %v836, %v1095
    %v1142 = vadd.f32 %v838, %v1097
    %v1143 = vadd.f32 %v842, %v1101
    %v1144 = vadd.f32 %v844, %v1103
    %v1145 = vadd.f32 %v848, %v1107
    %v1146 = vadd.f32 %v850, %v1109
    %v1147 = vadd.f32 %v854, %v1113
    %v1148 = vadd.f32 %v856, %v1115
    %v1149 = vld [vmem:[%s556] sm:$0xff]
    %v1150 = vld [vmem:[%s556 + $0x8] sm:$0xff]
    %v1151 = vld [vmem:[%s556 + $0x10] sm:$0xff]
    %v1152 = vld [vmem:[%s556 + $0x18] sm:$0xff]
    %v1153 = vld [vmem:[%s556 + $0x20] sm:$0xff]
    %v1154 = vld [vmem:[%s556 + $0x28] sm:$0xff]
    %v1155 = vld [vmem:[%s556 + $0x30] sm:$0xff]
    %v1156 = vld [vmem:[%s556 + $0x38] sm:$0xff]
    %v1157 = vld [vmem:[%s556 + $0x40] sm:$0xff]
    %v1158 = vld [vmem:[%s556 + $0x48] sm:$0xff]
    %v1159 = vld [vmem:[%s556 + $0x50] sm:$0xff]
    %v1160 = vld [vmem:[%s556 + $0x58] sm:$0xff]
    %v1161 = vld [vmem:[%s556 + $0x60] sm:$0xff]
    %v1162 = vld [vmem:[%s556 + $0x68] sm:$0xff]
    %v1163 = vld [vmem:[%s556 + $0x70] sm:$0xff]
    %v1164 = vld [vmem:[%s556 + $0x78] sm:$0xff]
    %v1165 = vld [vmem:[%s556 + $0x80] sm:$0xff]
    %v1166 = vld [vmem:[%s556 + $0x88] sm:$0xff]
    %v1167 = vld [vmem:[%s556 + $0x90] sm:$0xff]
    %v1168 = vld [vmem:[%s556 + $0x98] sm:$0xff]
    %v1169 = vld [vmem:[%s556 + $0xa0] sm:$0xff]
    %v1170 = vld [vmem:[%s556 + $0xa8] sm:$0xff]
    %v1171 = vld [vmem:[%s556 + $0xb0] sm:$0xff]
    %v1172 = vld [vmem:[%s556 + $0xb8] sm:$0xff]
    %v1173 = vld [vmem:[%s556 + $0xc0] sm:$0xff]
    %v1174 = vld [vmem:[%s556 + $0xc8] sm:$0xff]
    %v1175 = vld [vmem:[%s556 + $0xd0] sm:$0xff]
    %v1176 = vld [vmem:[%s556 + $0xd8] sm:$0xff]
    %v1177 = vld [vmem:[%s556 + $0xe0] sm:$0xff]
    %v1178 = vld [vmem:[%s556 + $0xe8] sm:$0xff]
    %v1179 = vld [vmem:[%s556 + $0xf0] sm:$0xff]
    %v1180 = vld [vmem:[%s556 + $0xf8] sm:$0xff]
    %s1181 = scalar_lea.vmem [#allocation9], 1024
    %v1182 = vld [vmem:[%s1181] sm:$0xff]
    %v1183 = vld [vmem:[%s1181 + $0x8] sm:$0xff]
    %v1184 = vld [vmem:[%s1181 + $0x10] sm:$0xff]
    %v1185 = vld [vmem:[%s1181 + $0x18] sm:$0xff]
    %v1186 = vld [vmem:[%s1181 + $0x20] sm:$0xff]
    %v1187 = vld [vmem:[%s1181 + $0x28] sm:$0xff]
    %v1188 = vld [vmem:[%s1181 + $0x30] sm:$0xff]
    %v1189 = vld [vmem:[%s1181 + $0x38] sm:$0xff]
    %v1190 = vld [vmem:[%s1181 + $0x40] sm:$0xff]
    %v1191 = vld [vmem:[%s1181 + $0x48] sm:$0xff]
    %v1192 = vld [vmem:[%s1181 + $0x50] sm:$0xff]
    %v1193 = vld [vmem:[%s1181 + $0x58] sm:$0xff]
    %v1194 = vld [vmem:[%s1181 + $0x60] sm:$0xff]
    %v1195 = vld [vmem:[%s1181 + $0x68] sm:$0xff]
    %v1196 = vld [vmem:[%s1181 + $0x70] sm:$0xff]
    %v1197 = vld [vmem:[%s1181 + $0x78] sm:$0xff]
    %v1198 = vld [vmem:[%s1181 + $0x80] sm:$0xff]
    %v1199 = vld [vmem:[%s1181 + $0x88] sm:$0xff]
    %v1200 = vld [vmem:[%s1181 + $0x90] sm:$0xff]
    %v1201 = vld [vmem:[%s1181 + $0x98] sm:$0xff]
    %v1202 = vld [vmem:[%s1181 + $0xa0] sm:$0xff]
    %v1203 = vld [vmem:[%s1181 + $0xa8] sm:$0xff]
    %v1204 = vld [vmem:[%s1181 + $0xb0] sm:$0xff]
    %v1205 = vld [vmem:[%s1181 + $0xb8] sm:$0xff]
    %v1206 = vld [vmem:[%s1181 + $0xc0] sm:$0xff]
    %v1207 = vld [vmem:[%s1181 + $0xc8] sm:$0xff]
    %v1208 = vld [vmem:[%s1181 + $0xd0] sm:$0xff]
    %v1209 = vld [vmem:[%s1181 + $0xd8] sm:$0xff]
    %v1210 = vld [vmem:[%s1181 + $0xe0] sm:$0xff]
    %v1211 = vld [vmem:[%s1181 + $0xe8] sm:$0xff]
    %v1212 = vld [vmem:[%s1181 + $0xf0] sm:$0xff]
    %v1213 = vld [vmem:[%s1181 + $0xf8] sm:$0xff]
    %v1214 = vld [vmem:[%s1181 + $0x100] sm:$0xff]
    %v1215 = vld [vmem:[%s1181 + $0x108] sm:$0xff]
    %v1216 = vld [vmem:[%s1181 + $0x110] sm:$0xff]
    %v1217 = vld [vmem:[%s1181 + $0x118] sm:$0xff]
    %v1218 = vld [vmem:[%s1181 + $0x120] sm:$0xff]
    %v1219 = vld [vmem:[%s1181 + $0x128] sm:$0xff]
    %v1220 = vld [vmem:[%s1181 + $0x130] sm:$0xff]
    %v1221 = vld [vmem:[%s1181 + $0x138] sm:$0xff]
    %v1222 = vld [vmem:[%s1181 + $0x140] sm:$0xff]
    %v1223 = vld [vmem:[%s1181 + $0x148] sm:$0xff]
    %v1224 = vld [vmem:[%s1181 + $0x150] sm:$0xff]
    %v1225 = vld [vmem:[%s1181 + $0x158] sm:$0xff]
    %v1226 = vld [vmem:[%s1181 + $0x160] sm:$0xff]
    %v1227 = vld [vmem:[%s1181 + $0x168] sm:$0xff]
    %v1228 = vld [vmem:[%s1181 + $0x170] sm:$0xff]
    %v1229 = vld [vmem:[%s1181 + $0x178] sm:$0xff]
    %v1230 = vld [vmem:[%s1181 + $0x180] sm:$0xff]
    %v1231 = vld [vmem:[%s1181 + $0x188] sm:$0xff]
    %v1232 = vld [vmem:[%s1181 + $0x190] sm:$0xff]
    %v1233 = vld [vmem:[%s1181 + $0x198] sm:$0xff]
    %v1234 = vld [vmem:[%s1181 + $0x1a0] sm:$0xff]
    %v1235 = vld [vmem:[%s1181 + $0x1a8] sm:$0xff]
    %v1236 = vld [vmem:[%s1181 + $0x1b0] sm:$0xff]
    %v1237 = vld [vmem:[%s1181 + $0x1b8] sm:$0xff]
    %v1238 = vld [vmem:[%s1181 + $0x1c0] sm:$0xff]
    %v1239 = vld [vmem:[%s1181 + $0x1c8] sm:$0xff]
    %v1240 = vld [vmem:[%s1181 + $0x1d0] sm:$0xff]
    %v1241 = vld [vmem:[%s1181 + $0x1d8] sm:$0xff]
    %v1242 = vld [vmem:[%s1181 + $0x1e0] sm:$0xff]
    %v1243 = vld [vmem:[%s1181 + $0x1e8] sm:$0xff]
    %v1244 = vld [vmem:[%s1181 + $0x1f0] sm:$0xff]
    %v1245 = vld [vmem:[%s1181 + $0x1f8] sm:$0xff]
    %1246 = vmatprep.subr.mxu0 %v1183
    %1247 = vmatpush1.msra.mxu0 %v1182
    %1248 = vmatprep.subr.mxu0 %v1185
    %1249 = vmatpush1.msra.mxu0 %v1184
    %1250 = vmatprep.subr.mxu0 %v1187
    %1251 = vmatpush1.msra.mxu0 %v1186
    %1252 = vmatprep.subr.mxu0 %v1189
    %1253 = vmatpush1.msra.mxu0 %v1188
    %1254 = vmatprep.subr.mxu0 %v1191
    %1255 = vmatpush1.msra.mxu0 %v1190
    %1256 = vmatprep.subr.mxu0 %v1193
    %1257 = vmatpush1.msra.mxu0 %v1192
    %1258 = vmatprep.subr.mxu0 %v1195
    %1259 = vmatpush1.msra.mxu0 %v1194
    %1260 = vmatprep.subr.mxu0 %v1197
    %1261 = vmatpush1.msra.mxu0 %v1196
    %1262 = vmatprep.subr.mxu0 %v1199
    %1263 = vmatpush1.msra.mxu0 %v1198
    %1264 = vmatprep.subr.mxu0 %v1201
    %1265 = vmatpush1.msra.mxu0 %v1200
    %1266 = vmatprep.subr.mxu0 %v1203
    %1267 = vmatpush1.msra.mxu0 %v1202
    %1268 = vmatprep.subr.mxu0 %v1205
    %1269 = vmatpush1.msra.mxu0 %v1204
    %1270 = vmatprep.subr.mxu0 %v1207
    %1271 = vmatpush1.msra.mxu0 %v1206
    %1272 = vmatprep.subr.mxu0 %v1209
    %1273 = vmatpush1.msra.mxu0 %v1208
    %1274 = vmatprep.subr.mxu0 %v1211
    %1275 = vmatpush1.msra.mxu0 %v1210
    %1276 = vmatprep.subr.mxu0 %v1213
    %1277 = vmatpush1.msra.mxu0 %v1212
    %1278 = vmatprep.subr.mxu0 %v1215
    %1279 = vmatpush1.msra.mxu0 %v1214
    %1280 = vmatprep.subr.mxu0 %v1217
    %1281 = vmatpush1.msra.mxu0 %v1216
    %1282 = vmatprep.subr.mxu0 %v1219
    %1283 = vmatpush1.msra.mxu0 %v1218
    %1284 = vmatprep.subr.mxu0 %v1221
    %1285 = vmatpush1.msra.mxu0 %v1220
    %1286 = vmatprep.subr.mxu0 %v1223
    %1287 = vmatpush1.msra.mxu0 %v1222
    %1288 = vmatprep.subr.mxu0 %v1225
    %1289 = vmatpush1.msra.mxu0 %v1224
    %1290 = vmatprep.subr.mxu0 %v1227
    %1291 = vmatpush1.msra.mxu0 %v1226
    %1292 = vmatprep.subr.mxu0 %v1229
    %1293 = vmatpush1.msra.mxu0 %v1228
    %1294 = vmatprep.subr.mxu0 %v1231
    %1295 = vmatpush1.msra.mxu0 %v1230
    %1296 = vmatprep.subr.mxu0 %v1233
    %1297 = vmatpush1.msra.mxu0 %v1232
    %1298 = vmatprep.subr.mxu0 %v1235
    %1299 = vmatpush1.msra.mxu0 %v1234
    %1300 = vmatprep.subr.mxu0 %v1237
    %1301 = vmatpush1.msra.mxu0 %v1236
    %1302 = vmatprep.subr.mxu0 %v1239
    %1303 = vmatpush1.msra.mxu0 %v1238
    %1304 = vmatprep.subr.mxu0 %v1241
    %1305 = vmatpush1.msra.mxu0 %v1240
    %1306 = vmatprep.subr.mxu0 %v1243
    %1307 = vmatpush1.msra.mxu0 %v1242
    %1308 = vmatprep.subr.mxu0 %v1245
    %1309 = vmatpush1.msra.mxu0 %v1244
    %1310 = vmatprep.mubr.f32.mxu0 %v1150
    %1311 = vmatmul.mubr.f32.gmra.mrb[0].mxu0 %v1149
    %v1312 = vpop.f32.mrb[0].mxu0
    %v1313 = vadd.f32 0.0, %v1312
    %v1314 = vpop.f32.mrb[0].mxu0
    %v1315 = vadd.f32 0.0, %v1314
    %1316 = vmatprep.mubr.f32.mxu0 %v1152
    %1317 = vmatmul.mubr.f32.gmra.mrb[0].mxu0 %v1151
    %v1318 = vpop.f32.mrb[0].mxu0
    %v1319 = vadd.f32 0.0, %v1318
    %v1320 = vpop.f32.mrb[0].mxu0
    %v1321 = vadd.f32 0.0, %v1320
    %1322 = vmatprep.mubr.f32.mxu0 %v1154
    %1323 = vmatmul.mubr.f32.gmra.mrb[0].mxu0 %v1153
    %v1324 = vpop.f32.mrb[0].mxu0
    %v1325 = vadd.f32 0.0, %v1324
    %v1326 = vpop.f32.mrb[0].mxu0
    %v1327 = vadd.f32 0.0, %v1326
    %1328 = vmatprep.mubr.f32.mxu0 %v1156
    %1329 = vmatmul.mubr.f32.gmra.mrb[0].mxu0 %v1155
    %v1330 = vpop.f32.mrb[0].mxu0
    %v1331 = vadd.f32 0.0, %v1330
    %v1332 = vpop.f32.mrb[0].mxu0
    %v1333 = vadd.f32 0.0, %v1332
    %1334 = vmatprep.mubr.f32.mxu0 %v1158
    %1335 = vmatmul.mubr.f32.gmra.mrb[0].mxu0 %v1157
    %v1336 = vpop.f32.mrb[0].mxu0
    %v1337 = vadd.f32 0.0, %v1336
    %v1338 = vpop.f32.mrb[0].mxu0
    %v1339 = vadd.f32 0.0, %v1338
    %1340 = vmatprep.mubr.f32.mxu0 %v1160
    %1341 = vmatmul.mubr.f32.gmra.mrb[0].mxu0 %v1159
    %v1342 = vpop.f32.mrb[0].mxu0
    %v1343 = vadd.f32 0.0, %v1342
    %v1344 = vpop.f32.mrb[0].mxu0
    %v1345 = vadd.f32 0.0, %v1344
    %1346 = vmatprep.mubr.f32.mxu0 %v1162
    %1347 = vmatmul.mubr.f32.gmra.mrb[0].mxu0 %v1161
    %v1348 = vpop.f32.mrb[0].mxu0
    %v1349 = vadd.f32 0.0, %v1348
    %v1350 = vpop.f32.mrb[0].mxu0
    %v1351 = vadd.f32 0.0, %v1350
    %1352 = vmatprep.mubr.f32.mxu0 %v1164
    %1353 = vmatmul.mubr.f32.gmra.mrb[0].mxu0 %v1163
    %v1354 = vpop.f32.mrb[0].mxu0
    %v1355 = vadd.f32 0.0, %v1354
    %v1356 = vpop.f32.mrb[0].mxu0
    %v1357 = vadd.f32 0.0, %v1356
    %1358 = vmatprep.mubr.f32.mxu0 %v1166
    %1359 = vmatmul.mubr.f32.gmra.mrb[0].mxu0 %v1165
    %v1360 = vpop.f32.mrb[0].mxu0
    %v1361 = vadd.f32 0.0, %v1360
    %v1362 = vpop.f32.mrb[0].mxu0
    %v1363 = vadd.f32 0.0, %v1362
    %1364 = vmatprep.mubr.f32.mxu0 %v1168
    %1365 = vmatmul.mubr.f32.gmra.mrb[0].mxu0 %v1167
    %v1366 = vpop.f32.mrb[0].mxu0
    %v1367 = vadd.f32 0.0, %v1366
    %v1368 = vpop.f32.mrb[0].mxu0
    %v1369 = vadd.f32 0.0, %v1368
    %1370 = vmatprep.mubr.f32.mxu0 %v1170
    %1371 = vmatmul.mubr.f32.gmra.mrb[0].mxu0 %v1169
    %v1372 = vpop.f32.mrb[0].mxu0
    %v1373 = vadd.f32 0.0, %v1372
    %v1374 = vpop.f32.mrb[0].mxu0
    %v1375 = vadd.f32 0.0, %v1374
    %1376 = vmatprep.mubr.f32.mxu0 %v1172
    %1377 = vmatmul.mubr.f32.gmra.mrb[0].mxu0 %v1171
    %v1378 = vpop.f32.mrb[0].mxu0
    %v1379 = vadd.f32 0.0, %v1378
    %v1380 = vpop.f32.mrb[0].mxu0
    %v1381 = vadd.f32 0.0, %v1380
    %1382 = vmatprep.mubr.f32.mxu0 %v1174
    %1383 = vmatmul.mubr.f32.gmra.mrb[0].mxu0 %v1173
    %v1384 = vpop.f32.mrb[0].mxu0
    %v1385 = vadd.f32 0.0, %v1384
    %v1386 = vpop.f32.mrb[0].mxu0
    %v1387 = vadd.f32 0.0, %v1386
    %1388 = vmatprep.mubr.f32.mxu0 %v1176
    %1389 = vmatmul.mubr.f32.gmra.mrb[0].mxu0 %v1175
    %v1390 = vpop.f32.mrb[0].mxu0
    %v1391 = vadd.f32 0.0, %v1390
    %v1392 = vpop.f32.mrb[0].mxu0
    %v1393 = vadd.f32 0.0, %v1392
    %1394 = vmatprep.mubr.f32.mxu0 %v1178
    %1395 = vmatmul.mubr.f32.gmra.mrb[0].mxu0 %v1177
    %v1396 = vpop.f32.mrb[0].mxu0
    %v1397 = vadd.f32 0.0, %v1396
    %v1398 = vpop.f32.mrb[0].mxu0
    %v1399 = vadd.f32 0.0, %v1398
    %1400 = vmatprep.mubr.f32.mxu0 %v1180
    %1401 = vmatmul.mubr.f32.gmra.mrb[0].mxu0 %v1179
    %v1402 = vpop.f32.mrb[0].mxu0
    %v1403 = vadd.f32 0.0, %v1402
    %v1404 = vpop.f32.mrb[0].mxu0
    %v1405 = vadd.f32 0.0, %v1404
    %1406 = vdwg.mxu0
    %v1407 = vadd.f32 %v1117, %v1313
    %v1408 = vadd.f32 %v1118, %v1315
    %v1409 = vadd.f32 %v1119, %v1319
    %v1410 = vadd.f32 %v1120, %v1321
    %v1411 = vadd.f32 %v1121, %v1325
    %v1412 = vadd.f32 %v1122, %v1327
    %v1413 = vadd.f32 %v1123, %v1331
    %v1414 = vadd.f32 %v1124, %v1333
    %v1415 = vadd.f32 %v1125, %v1337
    %v1416 = vadd.f32 %v1126, %v1339
    %v1417 = vadd.f32 %v1127, %v1343
    %v1418 = vadd.f32 %v1128, %v1345
    %v1419 = vadd.f32 %v1129, %v1349
    %v1420 = vadd.f32 %v1130, %v1351
    %v1421 = vadd.f32 %v1131, %v1355
    %v1422 = vadd.f32 %v1132, %v1357
    %v1423 = vadd.f32 %v1133, %v1361
    %v1424 = vadd.f32 %v1134, %v1363
    %v1425 = vadd.f32 %v1135, %v1367
    %v1426 = vadd.f32 %v1136, %v1369
    %v1427 = vadd.f32 %v1137, %v1373
    %v1428 = vadd.f32 %v1138, %v1375
    %v1429 = vadd.f32 %v1139, %v1379
    %v1430 = vadd.f32 %v1140, %v1381
    %v1431 = vadd.f32 %v1141, %v1385
    %v1432 = vadd.f32 %v1142, %v1387
    %v1433 = vadd.f32 %v1143, %v1391
    %v1434 = vadd.f32 %v1144, %v1393
    %v1435 = vadd.f32 %v1145, %v1397
    %v1436 = vadd.f32 %v1146, %v1399
    %v1437 = vadd.f32 %v1147, %v1403
    %v1438 = vadd.f32 %v1148, %v1405
    %s1439 = scalar_lea.vmem [#allocation2], 48
    %v1440 = vld [vmem:[%s1439] sm:$0xff]
    %v1441 = vld [vmem:[%s1439 + $0x8] sm:$0xff]
    %v1442 = vld [vmem:[%s1439 + $0x10] sm:$0xff]
    %v1443 = vld [vmem:[%s1439 + $0x18] sm:$0xff]
    %v1444 = vld [vmem:[%s1439 + $0x20] sm:$0xff]
    %v1445 = vld [vmem:[%s1439 + $0x28] sm:$0xff]
    %v1446 = vld [vmem:[%s1439 + $0x30] sm:$0xff]
    %v1447 = vld [vmem:[%s1439 + $0x38] sm:$0xff]
    %v1448 = vld [vmem:[%s1439 + $0x40] sm:$0xff]
    %v1449 = vld [vmem:[%s1439 + $0x48] sm:$0xff]
    %v1450 = vld [vmem:[%s1439 + $0x50] sm:$0xff]
    %v1451 = vld [vmem:[%s1439 + $0x58] sm:$0xff]
    %v1452 = vld [vmem:[%s1439 + $0x60] sm:$0xff]
    %v1453 = vld [vmem:[%s1439 + $0x68] sm:$0xff]
    %v1454 = vld [vmem:[%s1439 + $0x70] sm:$0xff]
    %v1455 = vld [vmem:[%s1439 + $0x78] sm:$0xff]
    %v1456 = vld [vmem:[%s1439 + $0x80] sm:$0xff]
    %v1457 = vld [vmem:[%s1439 + $0x88] sm:$0xff]
    %v1458 = vld [vmem:[%s1439 + $0x90] sm:$0xff]
    %v1459 = vld [vmem:[%s1439 + $0x98] sm:$0xff]
    %v1460 = vld [vmem:[%s1439 + $0xa0] sm:$0xff]
    %v1461 = vld [vmem:[%s1439 + $0xa8] sm:$0xff]
    %v1462 = vld [vmem:[%s1439 + $0xb0] sm:$0xff]
    %v1463 = vld [vmem:[%s1439 + $0xb8] sm:$0xff]
    %v1464 = vld [vmem:[%s1439 + $0xc0] sm:$0xff]
    %v1465 = vld [vmem:[%s1439 + $0xc8] sm:$0xff]
    %v1466 = vld [vmem:[%s1439 + $0xd0] sm:$0xff]
    %v1467 = vld [vmem:[%s1439 + $0xd8] sm:$0xff]
    %v1468 = vld [vmem:[%s1439 + $0xe0] sm:$0xff]
    %v1469 = vld [vmem:[%s1439 + $0xe8] sm:$0xff]
    %v1470 = vld [vmem:[%s1439 + $0xf0] sm:$0xff]
    %v1471 = vld [vmem:[%s1439 + $0xf8] sm:$0xff]
    %s1472 = scalar_lea.vmem [#allocation9], 1536
    %v1473 = vld [vmem:[%s1472] sm:$0xff]
    %v1474 = vld [vmem:[%s1472 + $0x8] sm:$0xff]
    %v1475 = vld [vmem:[%s1472 + $0x10] sm:$0xff]
    %v1476 = vld [vmem:[%s1472 + $0x18] sm:$0xff]
    %v1477 = vld [vmem:[%s1472 + $0x20] sm:$0xff]
    %v1478 = vld [vmem:[%s1472 + $0x28] sm:$0xff]
    %v1479 = vld [vmem:[%s1472 + $0x30] sm:$0xff]
    %v1480 = vld [vmem:[%s1472 + $0x38] sm:$0xff]
    %v1481 = vld [vmem:[%s1472 + $0x40] sm:$0xff]
    %v1482 = vld [vmem:[%s1472 + $0x48] sm:$0xff]
    %v1483 = vld [vmem:[%s1472 + $0x50] sm:$0xff]
    %v1484 = vld [vmem:[%s1472 + $0x58] sm:$0xff]
    %v1485 = vld [vmem:[%s1472 + $0x60] sm:$0xff]
    %v1486 = vld [vmem:[%s1472 + $0x68] sm:$0xff]
    %v1487 = vld [vmem:[%s1472 + $0x70] sm:$0xff]
    %v1488 = vld [vmem:[%s1472 + $0x78] sm:$0xff]
    %v1489 = vld [vmem:[%s1472 + $0x80] sm:$0xff]
    %v1490 = vld [vmem:[%s1472 + $0x88] sm:$0xff]
    %v1491 = vld [vmem:[%s1472 + $0x90] sm:$0xff]
    %v1492 = vld [vmem:[%s1472 + $0x98] sm:$0xff]
    %v1493 = vld [vmem:[%s1472 + $0xa0] sm:$0xff]
    %v1494 = vld [vmem:[%s1472 + $0xa8] sm:$0xff]
    %v1495 = vld [vmem:[%s1472 + $0xb0] sm:$0xff]
    %v1496 = vld [vmem:[%s1472 + $0xb8] sm:$0xff]
    %v1497 = vld [vmem:[%s1472 + $0xc0] sm:$0xff]
    %v1498 = vld [vmem:[%s1472 + $0xc8] sm:$0xff]
    %v1499 = vld [vmem:[%s1472 + $0xd0] sm:$0xff]
    %v1500 = vld [vmem:[%s1472 + $0xd8] sm:$0xff]
    %v1501 = vld [vmem:[%s1472 + $0xe0] sm:$0xff]
    %v1502 = vld [vmem:[%s1472 + $0xe8] sm:$0xff]
    %v1503 = vld [vmem:[%s1472 + $0xf0] sm:$0xff]
    %v1504 = vld [vmem:[%s1472 + $0xf8] sm:$0xff]
    %v1505 = vld [vmem:[%s1472 + $0x100] sm:$0xff]
    %v1506 = vld [vmem:[%s1472 + $0x108] sm:$0xff]
    %v1507 = vld [vmem:[%s1472 + $0x110] sm:$0xff]
    %v1508 = vld [vmem:[%s1472 + $0x118] sm:$0xff]
    %v1509 = vld [vmem:[%s1472 + $0x120] sm:$0xff]
    %v1510 = vld [vmem:[%s1472 + $0x128] sm:$0xff]
    %v1511 = vld [vmem:[%s1472 + $0x130] sm:$0xff]
    %v1512 = vld [vmem:[%s1472 + $0x138] sm:$0xff]
    %v1513 = vld [vmem:[%s1472 + $0x140] sm:$0xff]
    %v1514 = vld [vmem:[%s1472 + $0x148] sm:$0xff]
    %v1515 = vld [vmem:[%s1472 + $0x150] sm:$0xff]
    %v1516 = vld [vmem:[%s1472 + $0x158] sm:$0xff]
    %v1517 = vld [vmem:[%s1472 + $0x160] sm:$0xff]
    %v1518 = vld [vmem:[%s1472 + $0x168] sm:$0xff]
    %v1519 = vld [vmem:[%s1472 + $0x170] sm:$0xff]
    %v1520 = vld [vmem:[%s1472 + $0x178] sm:$0xff]
    %v1521 = vld [vmem:[%s1472 + $0x180] sm:$0xff]
    %v1522 = vld [vmem:[%s1472 + $0x188] sm:$0xff]
    %v1523 = vld [vmem:[%s1472 + $0x190] sm:$0xff]
    %v1524 = vld [vmem:[%s1472 + $0x198] sm:$0xff]
    %v1525 = vld [vmem:[%s1472 + $0x1a0] sm:$0xff]
    %v1526 = vld [vmem:[%s1472 + $0x1a8] sm:$0xff]
    %v1527 = vld [vmem:[%s1472 + $0x1b0] sm:$0xff]
    %v1528 = vld [vmem:[%s1472 + $0x1b8] sm:$0xff]
    %v1529 = vld [vmem:[%s1472 + $0x1c0] sm:$0xff]
    %v1530 = vld [vmem:[%s1472 + $0x1c8] sm:$0xff]
    %v1531 = vld [vmem:[%s1472 + $0x1d0] sm:$0xff]
    %v1532 = vld [vmem:[%s1472 + $0x1d8] sm:$0xff]
    %v1533 = vld [vmem:[%s1472 + $0x1e0] sm:$0xff]
    %v1534 = vld [vmem:[%s1472 + $0x1e8] sm:$0xff]
    %v1535 = vld [vmem:[%s1472 + $0x1f0] sm:$0xff]
    %v1536 = vld [vmem:[%s1472 + $0x1f8] sm:$0xff]
    %1537 = vmatprep.subr.mxu0 %v1474
    %1538 = vmatpush1.msra.mxu0 %v1473
    %1539 = vmatprep.subr.mxu0 %v1476
    %1540 = vmatpush1.msra.mxu0 %v1475
    %1541 = vmatprep.subr.mxu0 %v1478
    %1542 = vmatpush1.msra.mxu0 %v1477
    %1543 = vmatprep.subr.mxu0 %v1480
    %1544 = vmatpush1.msra.mxu0 %v1479
    %1545 = vmatprep.subr.mxu0 %v1482
    %1546 = vmatpush1.msra.mxu0 %v1481
    %1547 = vmatprep.subr.mxu0 %v1484
    %1548 = vmatpush1.msra.mxu0 %v1483
    %1549 = vmatprep.subr.mxu0 %v1486
    %1550 = vmatpush1.msra.mxu0 %v1485
    %1551 = vmatprep.subr.mxu0 %v1488
    %1552 = vmatpush1.msra.mxu0 %v1487
    %1553 = vmatprep.subr.mxu0 %v1490
    %1554 = vmatpush1.msra.mxu0 %v1489
    %1555 = vmatprep.subr.mxu0 %v1492
    %1556 = vmatpush1.msra.mxu0 %v1491
    %1557 = vmatprep.subr.mxu0 %v1494
    %1558 = vmatpush1.msra.mxu0 %v1493
    %1559 = vmatprep.subr.mxu0 %v1496
    %1560 = vmatpush1.msra.mxu0 %v1495
    %1561 = vmatprep.subr.mxu0 %v1498
    %1562 = vmatpush1.msra.mxu0 %v1497
    %1563 = vmatprep.subr.mxu0 %v1500
    %1564 = vmatpush1.msra.mxu0 %v1499
    %1565 = vmatprep.subr.mxu0 %v1502
    %1566 = vmatpush1.msra.mxu0 %v1501
    %1567 = vmatprep.subr.mxu0 %v1504
    %1568 = vmatpush1.msra.mxu0 %v1503
    %1569 = vmatprep.subr.mxu0 %v1506
    %1570 = vmatpush1.msra.mxu0 %v1505
    %1571 = vmatprep.subr.mxu0 %v1508
    %1572 = vmatpush1.msra.mxu0 %v1507
    %1573 = vmatprep.subr.mxu0 %v1510
    %1574 = vmatpush1.msra.mxu0 %v1509
    %1575 = vmatprep.subr.mxu0 %v1512
    %1576 = vmatpush1.msra.mxu0 %v1511
    %1577 = vmatprep.subr.mxu0 %v1514
    %1578 = vmatpush1.msra.mxu0 %v1513
    %1579 = vmatprep.subr.mxu0 %v1516
    %1580 = vmatpush1.msra.mxu0 %v1515
    %1581 = vmatprep.subr.mxu0 %v1518
    %1582 = vmatpush1.msra.mxu0 %v1517
    %1583 = vmatprep.subr.mxu0 %v1520
    %1584 = vmatpush1.msra.mxu0 %v1519
    %1585 = vmatprep.subr.mxu0 %v1522
    %1586 = vmatpush1.msra.mxu0 %v1521
    %1587 = vmatprep.subr.mxu0 %v1524
    %1588 = vmatpush1.msra.mxu0 %v1523
    %1589 = vmatprep.subr.mxu0 %v1526
    %1590 = vmatpush1.msra.mxu0 %v1525
    %1591 = vmatprep.subr.mxu0 %v1528
    %1592 = vmatpush1.msra.mxu0 %v1527
    %1593 = vmatprep.subr.mxu0 %v1530
    %1594 = vmatpush1.msra.mxu0 %v1529
    %1595 = vmatprep.subr.mxu0 %v1532
    %1596 = vmatpush1.msra.mxu0 %v1531
    %1597 = vmatprep.subr.mxu0 %v1534
    %1598 = vmatpush1.msra.mxu0 %v1533
    %1599 = vmatprep.subr.mxu0 %v1536
    %1600 = vmatpush1.msra.mxu0 %v1535
    %1601 = vmatprep.mubr.f32.mxu0 %v1441
    %1602 = vmatmul.mubr.f32.gmra.mrb[0].mxu0 %v1440
    %v1603 = vpop.f32.mrb[0].mxu0
    %v1604 = vadd.f32 0.0, %v1603
    %v1605 = vpop.f32.mrb[0].mxu0
    %v1606 = vadd.f32 0.0, %v1605
    %1607 = vmatprep.mubr.f32.mxu0 %v1443
    %1608 = vmatmul.mubr.f32.gmra.mrb[0].mxu0 %v1442
    %v1609 = vpop.f32.mrb[0].mxu0
    %v1610 = vadd.f32 0.0, %v1609
    %v1611 = vpop.f32.mrb[0].mxu0
    %v1612 = vadd.f32 0.0, %v1611
    %1613 = vmatprep.mubr.f32.mxu0 %v1445
    %1614 = vmatmul.mubr.f32.gmra.mrb[0].mxu0 %v1444
    %v1615 = vpop.f32.mrb[0].mxu0
    %v1616 = vadd.f32 0.0, %v1615
    %v1617 = vpop.f32.mrb[0].mxu0
    %v1618 = vadd.f32 0.0, %v1617
    %1619 = vmatprep.mubr.f32.mxu0 %v1447
    %1620 = vmatmul.mubr.f32.gmra.mrb[0].mxu0 %v1446
    %v1621 = vpop.f32.mrb[0].mxu0
    %v1622 = vadd.f32 0.0, %v1621
    %v1623 = vpop.f32.mrb[0].mxu0
    %v1624 = vadd.f32 0.0, %v1623
    %1625 = vmatprep.mubr.f32.mxu0 %v1449
    %1626 = vmatmul.mubr.f32.gmra.mrb[0].mxu0 %v1448
    %v1627 = vpop.f32.mrb[0].mxu0
    %v1628 = vadd.f32 0.0, %v1627
    %v1629 = vpop.f32.mrb[0].mxu0
    %v1630 = vadd.f32 0.0, %v1629
    %1631 = vmatprep.mubr.f32.mxu0 %v1451
    %1632 = vmatmul.mubr.f32.gmra.mrb[0].mxu0 %v1450
    %v1633 = vpop.f32.mrb[0].mxu0
    %v1634 = vadd.f32 0.0, %v1633
    %v1635 = vpop.f32.mrb[0].mxu0
    %v1636 = vadd.f32 0.0, %v1635
    %1637 = vmatprep.mubr.f32.mxu0 %v1453
    %1638 = vmatmul.mubr.f32.gmra.mrb[0].mxu0 %v1452
    %v1639 = vpop.f32.mrb[0].mxu0
    %v1640 = vadd.f32 0.0, %v1639
    %v1641 = vpop.f32.mrb[0].mxu0
    %v1642 = vadd.f32 0.0, %v1641
    %1643 = vmatprep.mubr.f32.mxu0 %v1455
    %1644 = vmatmul.mubr.f32.gmra.mrb[0].mxu0 %v1454
    %v1645 = vpop.f32.mrb[0].mxu0
    %v1646 = vadd.f32 0.0, %v1645
    %v1647 = vpop.f32.mrb[0].mxu0
    %v1648 = vadd.f32 0.0, %v1647
    %1649 = vmatprep.mubr.f32.mxu0 %v1457
    %1650 = vmatmul.mubr.f32.gmra.mrb[0].mxu0 %v1456
    %v1651 = vpop.f32.mrb[0].mxu0
    %v1652 = vadd.f32 0.0, %v1651
    %v1653 = vpop.f32.mrb[0].mxu0
    %v1654 = vadd.f32 0.0, %v1653
    %1655 = vmatprep.mubr.f32.mxu0 %v1459
    %1656 = vmatmul.mubr.f32.gmra.mrb[0].mxu0 %v1458
    %v1657 = vpop.f32.mrb[0].mxu0
    %v1658 = vadd.f32 0.0, %v1657
    %v1659 = vpop.f32.mrb[0].mxu0
    %v1660 = vadd.f32 0.0, %v1659
    %1661 = vmatprep.mubr.f32.mxu0 %v1461
    %1662 = vmatmul.mubr.f32.gmra.mrb[0].mxu0 %v1460
    %v1663 = vpop.f32.mrb[0].mxu0
    %v1664 = vadd.f32 0.0, %v1663
    %v1665 = vpop.f32.mrb[0].mxu0
    %v1666 = vadd.f32 0.0, %v1665
    %1667 = vmatprep.mubr.f32.mxu0 %v1463
    %1668 = vmatmul.mubr.f32.gmra.mrb[0].mxu0 %v1462
    %v1669 = vpop.f32.mrb[0].mxu0
    %v1670 = vadd.f32 0.0, %v1669
    %v1671 = vpop.f32.mrb[0].mxu0
    %v1672 = vadd.f32 0.0, %v1671
    %1673 = vmatprep.mubr.f32.mxu0 %v1465
    %1674 = vmatmul.mubr.f32.gmra.mrb[0].mxu0 %v1464
    %v1675 = vpop.f32.mrb[0].mxu0
    %v1676 = vadd.f32 0.0, %v1675
    %v1677 = vpop.f32.mrb[0].mxu0
    %v1678 = vadd.f32 0.0, %v1677
    %1679 = vmatprep.mubr.f32.mxu0 %v1467
    %1680 = vmatmul.mubr.f32.gmra.mrb[0].mxu0 %v1466
    %v1681 = vpop.f32.mrb[0].mxu0
    %v1682 = vadd.f32 0.0, %v1681
    %v1683 = vpop.f32.mrb[0].mxu0
    %v1684 = vadd.f32 0.0, %v1683
    %1685 = vmatprep.mubr.f32.mxu0 %v1469
    %1686 = vmatmul.mubr.f32.gmra.mrb[0].mxu0 %v1468
    %v1687 = vpop.f32.mrb[0].mxu0
    %v1688 = vadd.f32 0.0, %v1687
    %v1689 = vpop.f32.mrb[0].mxu0
    %v1690 = vadd.f32 0.0, %v1689
    %1691 = vmatprep.mubr.f32.mxu0 %v1471
    %1692 = vmatmul.mubr.f32.gmra.mrb[0].mxu0 %v1470
    %v1693 = vpop.f32.mrb[0].mxu0
    %v1694 = vadd.f32 0.0, %v1693
    %v1695 = vpop.f32.mrb[0].mxu0
    %v1696 = vadd.f32 0.0, %v1695
    %1697 = vdwg.mxu0
    %v1698 = vadd.f32 %v1407, %v1604
    %v1699 = vadd.f32 %v1408, %v1606
    %v1700 = vadd.f32 %v1409, %v1610
    %v1701 = vadd.f32 %v1410, %v1612
    %v1702 = vadd.f32 %v1411, %v1616
    %v1703 = vadd.f32 %v1412, %v1618
    %v1704 = vadd.f32 %v1413, %v1622
    %v1705 = vadd.f32 %v1414, %v1624
    %v1706 = vadd.f32 %v1415, %v1628
    %v1707 = vadd.f32 %v1416, %v1630
    %v1708 = vadd.f32 %v1417, %v1634
    %v1709 = vadd.f32 %v1418, %v1636
    %v1710 = vadd.f32 %v1419, %v1640
    %v1711 = vadd.f32 %v1420, %v1642
    %v1712 = vadd.f32 %v1421, %v1646
    %v1713 = vadd.f32 %v1422, %v1648
    %v1714 = vadd.f32 %v1423, %v1652
    %v1715 = vadd.f32 %v1424, %v1654
    %v1716 = vadd.f32 %v1425, %v1658
    %v1717 = vadd.f32 %v1426, %v1660
    %v1718 = vadd.f32 %v1427, %v1664
    %v1719 = vadd.f32 %v1428, %v1666
    %v1720 = vadd.f32 %v1429, %v1670
    %v1721 = vadd.f32 %v1430, %v1672
    %v1722 = vadd.f32 %v1431, %v1676
    %v1723 = vadd.f32 %v1432, %v1678
    %v1724 = vadd.f32 %v1433, %v1682
    %v1725 = vadd.f32 %v1434, %v1684
    %v1726 = vadd.f32 %v1435, %v1688
    %v1727 = vadd.f32 %v1436, %v1690
    %v1728 = vadd.f32 %v1437, %v1694
    %v1729 = vadd.f32 %v1438, %v1696
    %s1730 = scalar_lea.vmem [#allocation2], 64
    %v1731 = vld [vmem:[%s1730] sm:$0xff]
    %v1732 = vld [vmem:[%s1730 + $0x8] sm:$0xff]
    %v1733 = vld [vmem:[%s1730 + $0x10] sm:$0xff]
    %v1734 = vld [vmem:[%s1730 + $0x18] sm:$0xff]
    %v1735 = vld [vmem:[%s1730 + $0x20] sm:$0xff]
    %v1736 = vld [vmem:[%s1730 + $0x28] sm:$0xff]
    %v1737 = vld [vmem:[%s1730 + $0x30] sm:$0xff]
    %v1738 = vld [vmem:[%s1730 + $0x38] sm:$0xff]
    %v1739 = vld [vmem:[%s1730 + $0x40] sm:$0xff]
    %v1740 = vld [vmem:[%s1730 + $0x48] sm:$0xff]
    %v1741 = vld [vmem:[%s1730 + $0x50] sm:$0xff]
    %v1742 = vld [vmem:[%s1730 + $0x58] sm:$0xff]
    %v1743 = vld [vmem:[%s1730 + $0x60] sm:$0xff]
    %v1744 = vld [vmem:[%s1730 + $0x68] sm:$0xff]
    %v1745 = vld [vmem:[%s1730 + $0x70] sm:$0xff]
    %v1746 = vld [vmem:[%s1730 + $0x78] sm:$0xff]
    %v1747 = vld [vmem:[%s1730 + $0x80] sm:$0xff]
    %v1748 = vld [vmem:[%s1730 + $0x88] sm:$0xff]
    %v1749 = vld [vmem:[%s1730 + $0x90] sm:$0xff]
    %v1750 = vld [vmem:[%s1730 + $0x98] sm:$0xff]
    %v1751 = vld [vmem:[%s1730 + $0xa0] sm:$0xff]
    %v1752 = vld [vmem:[%s1730 + $0xa8] sm:$0xff]
    %v1753 = vld [vmem:[%s1730 + $0xb0] sm:$0xff]
    %v1754 = vld [vmem:[%s1730 + $0xb8] sm:$0xff]
    %v1755 = vld [vmem:[%s1730 + $0xc0] sm:$0xff]
    %v1756 = vld [vmem:[%s1730 + $0xc8] sm:$0xff]
    %v1757 = vld [vmem:[%s1730 + $0xd0] sm:$0xff]
    %v1758 = vld [vmem:[%s1730 + $0xd8] sm:$0xff]
    %v1759 = vld [vmem:[%s1730 + $0xe0] sm:$0xff]
    %v1760 = vld [vmem:[%s1730 + $0xe8] sm:$0xff]
    %v1761 = vld [vmem:[%s1730 + $0xf0] sm:$0xff]
    %v1762 = vld [vmem:[%s1730 + $0xf8] sm:$0xff]
    %s1763 = scalar_lea.vmem [#allocation9], 2048
    %v1764 = vld [vmem:[%s1763] sm:$0xff]
    %v1765 = vld [vmem:[%s1763 + $0x8] sm:$0xff]
    %v1766 = vld [vmem:[%s1763 + $0x10] sm:$0xff]
    %v1767 = vld [vmem:[%s1763 + $0x18] sm:$0xff]
    %v1768 = vld [vmem:[%s1763 + $0x20] sm:$0xff]
    %v1769 = vld [vmem:[%s1763 + $0x28] sm:$0xff]
    %v1770 = vld [vmem:[%s1763 + $0x30] sm:$0xff]
    %v1771 = vld [vmem:[%s1763 + $0x38] sm:$0xff]
    %v1772 = vld [vmem:[%s1763 + $0x40] sm:$0xff]
    %v1773 = vld [vmem:[%s1763 + $0x48] sm:$0xff]
    %v1774 = vld [vmem:[%s1763 + $0x50] sm:$0xff]
    %v1775 = vld [vmem:[%s1763 + $0x58] sm:$0xff]
    %v1776 = vld [vmem:[%s1763 + $0x60] sm:$0xff]
    %v1777 = vld [vmem:[%s1763 + $0x68] sm:$0xff]
    %v1778 = vld [vmem:[%s1763 + $0x70] sm:$0xff]
    %v1779 = vld [vmem:[%s1763 + $0x78] sm:$0xff]
    %v1780 = vld [vmem:[%s1763 + $0x80] sm:$0xff]
    %v1781 = vld [vmem:[%s1763 + $0x88] sm:$0xff]
    %v1782 = vld [vmem:[%s1763 + $0x90] sm:$0xff]
    %v1783 = vld [vmem:[%s1763 + $0x98] sm:$0xff]
    %v1784 = vld [vmem:[%s1763 + $0xa0] sm:$0xff]
    %v1785 = vld [vmem:[%s1763 + $0xa8] sm:$0xff]
    %v1786 = vld [vmem:[%s1763 + $0xb0] sm:$0xff]
    %v1787 = vld [vmem:[%s1763 + $0xb8] sm:$0xff]
    %v1788 = vld [vmem:[%s1763 + $0xc0] sm:$0xff]
    %v1789 = vld [vmem:[%s1763 + $0xc8] sm:$0xff]
    %v1790 = vld [vmem:[%s1763 + $0xd0] sm:$0xff]
    %v1791 = vld [vmem:[%s1763 + $0xd8] sm:$0xff]
    %v1792 = vld [vmem:[%s1763 + $0xe0] sm:$0xff]
    %v1793 = vld [vmem:[%s1763 + $0xe8] sm:$0xff]
    %v1794 = vld [vmem:[%s1763 + $0xf0] sm:$0xff]
    %v1795 = vld [vmem:[%s1763 + $0xf8] sm:$0xff]
    %v1796 = vld [vmem:[%s1763 + $0x100] sm:$0xff]
    %v1797 = vld [vmem:[%s1763 + $0x108] sm:$0xff]
    %v1798 = vld [vmem:[%s1763 + $0x110] sm:$0xff]
    %v1799 = vld [vmem:[%s1763 + $0x118] sm:$0xff]
    %v1800 = vld [vmem:[%s1763 + $0x120] sm:$0xff]
    %v1801 = vld [vmem:[%s1763 + $0x128] sm:$0xff]
    %v1802 = vld [vmem:[%s1763 + $0x130] sm:$0xff]
    %v1803 = vld [vmem:[%s1763 + $0x138] sm:$0xff]
    %v1804 = vld [vmem:[%s1763 + $0x140] sm:$0xff]
    %v1805 = vld [vmem:[%s1763 + $0x148] sm:$0xff]
    %v1806 = vld [vmem:[%s1763 + $0x150] sm:$0xff]
    %v1807 = vld [vmem:[%s1763 + $0x158] sm:$0xff]
    %v1808 = vld [vmem:[%s1763 + $0x160] sm:$0xff]
    %v1809 = vld [vmem:[%s1763 + $0x168] sm:$0xff]
    %v1810 = vld [vmem:[%s1763 + $0x170] sm:$0xff]
    %v1811 = vld [vmem:[%s1763 + $0x178] sm:$0xff]
    %v1812 = vld [vmem:[%s1763 + $0x180] sm:$0xff]
    %v1813 = vld [vmem:[%s1763 + $0x188] sm:$0xff]
    %v1814 = vld [vmem:[%s1763 + $0x190] sm:$0xff]
    %v1815 = vld [vmem:[%s1763 + $0x198] sm:$0xff]
    %v1816 = vld [vmem:[%s1763 + $0x1a0] sm:$0xff]
    %v1817 = vld [vmem:[%s1763 + $0x1a8] sm:$0xff]
    %v1818 = vld [vmem:[%s1763 + $0x1b0] sm:$0xff]
    %v1819 = vld [vmem:[%s1763 + $0x1b8] sm:$0xff]
    %v1820 = vld [vmem:[%s1763 + $0x1c0] sm:$0xff]
    %v1821 = vld [vmem:[%s1763 + $0x1c8] sm:$0xff]
    %v1822 = vld [vmem:[%s1763 + $0x1d0] sm:$0xff]
    %v1823 = vld [vmem:[%s1763 + $0x1d8] sm:$0xff]
    %v1824 = vld [vmem:[%s1763 + $0x1e0] sm:$0xff]
    %v1825 = vld [vmem:[%s1763 + $0x1e8] sm:$0xff]
    %v1826 = vld [vmem:[%s1763 + $0x1f0] sm:$0xff]
    %v1827 = vld [vmem:[%s1763 + $0x1f8] sm:$0xff]
    %1828 = vmatprep.subr.mxu0 %v1765
    %1829 = vmatpush1.msra.mxu0 %v1764
    %1830 = vmatprep.subr.mxu0 %v1767
    %1831 = vmatpush1.msra.mxu0 %v1766
    %1832 = vmatprep.subr.mxu0 %v1769
    %1833 = vmatpush1.msra.mxu0 %v1768
    %1834 = vmatprep.subr.mxu0 %v1771
    %1835 = vmatpush1.msra.mxu0 %v1770
    %1836 = vmatprep.subr.mxu0 %v1773
    %1837 = vmatpush1.msra.mxu0 %v1772
    %1838 = vmatprep.subr.mxu0 %v1775
    %1839 = vmatpush1.msra.mxu0 %v1774
    %1840 = vmatprep.subr.mxu0 %v1777
    %1841 = vmatpush1.msra.mxu0 %v1776
    %1842 = vmatprep.subr.mxu0 %v1779
    %1843 = vmatpush1.msra.mxu0 %v1778
    %1844 = vmatprep.subr.mxu0 %v1781
    %1845 = vmatpush1.msra.mxu0 %v1780
    %1846 = vmatprep.subr.mxu0 %v1783
    %1847 = vmatpush1.msra.mxu0 %v1782
    %1848 = vmatprep.subr.mxu0 %v1785
    %1849 = vmatpush1.msra.mxu0 %v1784
    %1850 = vmatprep.subr.mxu0 %v1787
    %1851 = vmatpush1.msra.mxu0 %v1786
    %1852 = vmatprep.subr.mxu0 %v1789
    %1853 = vmatpush1.msra.mxu0 %v1788
    %1854 = vmatprep.subr.mxu0 %v1791
    %1855 = vmatpush1.msra.mxu0 %v1790
    %1856 = vmatprep.subr.mxu0 %v1793
    %1857 = vmatpush1.msra.mxu0 %v1792
    %1858 = vmatprep.subr.mxu0 %v1795
    %1859 = vmatpush1.msra.mxu0 %v1794
    %1860 = vmatprep.subr.mxu0 %v1797
    %1861 = vmatpush1.msra.mxu0 %v1796
    %1862 = vmatprep.subr.mxu0 %v1799
    %1863 = vmatpush1.msra.mxu0 %v1798
    %1864 = vmatprep.subr.mxu0 %v1801
    %1865 = vmatpush1.msra.mxu0 %v1800
    %1866 = vmatprep.subr.mxu0 %v1803
    %1867 = vmatpush1.msra.mxu0 %v1802
    %1868 = vmatprep.subr.mxu0 %v1805
    %1869 = vmatpush1.msra.mxu0 %v1804
    %1870 = vmatprep.subr.mxu0 %v1807
    %1871 = vmatpush1.msra.mxu0 %v1806
    %1872 = vmatprep.subr.mxu0 %v1809
    %1873 = vmatpush1.msra.mxu0 %v1808
    %1874 = vmatprep.subr.mxu0 %v1811
    %1875 = vmatpush1.msra.mxu0 %v1810
    %1876 = vmatprep.subr.mxu0 %v1813
    %1877 = vmatpush1.msra.mxu0 %v1812
    %1878 = vmatprep.subr.mxu0 %v1815
    %1879 = vmatpush1.msra.mxu0 %v1814
    %1880 = vmatprep.subr.mxu0 %v1817
    %1881 = vmatpush1.msra.mxu0 %v1816
    %1882 = vmatprep.subr.mxu0 %v1819
    %1883 = vmatpush1.msra.mxu0 %v1818
    %1884 = vmatprep.subr.mxu0 %v1821
    %1885 = vmatpush1.msra.mxu0 %v1820
    %1886 = vmatprep.subr.mxu0 %v1823
    %1887 = vmatpush1.msra.mxu0 %v1822
    %1888 = vmatprep.subr.mxu0 %v1825
    %1889 = vmatpush1.msra.mxu0 %v1824
    %1890 = vmatprep.subr.mxu0 %v1827
    %1891 = vmatpush1.msra.mxu0 %v1826
    %1892 = vmatprep.mubr.f32.mxu0 %v1732
    %1893 = vmatmul.mubr.f32.gmra.mrb[0].mxu0 %v1731
    %v1894 = vpop.f32.mrb[0].mxu0
    %v1895 = vadd.f32 0.0, %v1894
    %v1896 = vpop.f32.mrb[0].mxu0
    %v1897 = vadd.f32 0.0, %v1896
    %1898 = vmatprep.mubr.f32.mxu0 %v1734
    %1899 = vmatmul.mubr.f32.gmra.mrb[0].mxu0 %v1733
    %v1900 = vpop.f32.mrb[0].mxu0
    %v1901 = vadd.f32 0.0, %v1900
    %v1902 = vpop.f32.mrb[0].mxu0
    %v1903 = vadd.f32 0.0, %v1902
    %1904 = vmatprep.mubr.f32.mxu0 %v1736
    %1905 = vmatmul.mubr.f32.gmra.mrb[0].mxu0 %v1735
    %v1906 = vpop.f32.mrb[0].mxu0
    %v1907 = vadd.f32 0.0, %v1906
    %v1908 = vpop.f32.mrb[0].mxu0
    %v1909 = vadd.f32 0.0, %v1908
    %1910 = vmatprep.mubr.f32.mxu0 %v1738
    %1911 = vmatmul.mubr.f32.gmra.mrb[0].mxu0 %v1737
    %v1912 = vpop.f32.mrb[0].mxu0
    %v1913 = vadd.f32 0.0, %v1912
    %v1914 = vpop.f32.mrb[0].mxu0
    %v1915 = vadd.f32 0.0, %v1914
    %1916 = vmatprep.mubr.f32.mxu0 %v1740
    %1917 = vmatmul.mubr.f32.gmra.mrb[0].mxu0 %v1739
    %v1918 = vpop.f32.mrb[0].mxu0
    %v1919 = vadd.f32 0.0, %v1918
    %v1920 = vpop.f32.mrb[0].mxu0
    %v1921 = vadd.f32 0.0, %v1920
    %1922 = vmatprep.mubr.f32.mxu0 %v1742
    %1923 = vmatmul.mubr.f32.gmra.mrb[0].mxu0 %v1741
    %v1924 = vpop.f32.mrb[0].mxu0
    %v1925 = vadd.f32 0.0, %v1924
    %v1926 = vpop.f32.mrb[0].mxu0
    %v1927 = vadd.f32 0.0, %v1926
    %1928 = vmatprep.mubr.f32.mxu0 %v1744
    %1929 = vmatmul.mubr.f32.gmra.mrb[0].mxu0 %v1743
    %v1930 = vpop.f32.mrb[0].mxu0
    %v1931 = vadd.f32 0.0, %v1930
    %v1932 = vpop.f32.mrb[0].mxu0
    %v1933 = vadd.f32 0.0, %v1932
    %1934 = vmatprep.mubr.f32.mxu0 %v1746
    %1935 = vmatmul.mubr.f32.gmra.mrb[0].mxu0 %v1745
    %v1936 = vpop.f32.mrb[0].mxu0
    %v1937 = vadd.f32 0.0, %v1936
    %v1938 = vpop.f32.mrb[0].mxu0
    %v1939 = vadd.f32 0.0, %v1938
    %1940 = vmatprep.mubr.f32.mxu0 %v1748
    %1941 = vmatmul.mubr.f32.gmra.mrb[0].mxu0 %v1747
    %v1942 = vpop.f32.mrb[0].mxu0
    %v1943 = vadd.f32 0.0, %v1942
    %v1944 = vpop.f32.mrb[0].mxu0
    %v1945 = vadd.f32 0.0, %v1944
    %1946 = vmatprep.mubr.f32.mxu0 %v1750
    %1947 = vmatmul.mubr.f32.gmra.mrb[0].mxu0 %v1749
    %v1948 = vpop.f32.mrb[0].mxu0
    %v1949 = vadd.f32 0.0, %v1948
    %v1950 = vpop.f32.mrb[0].mxu0
    %v1951 = vadd.f32 0.0, %v1950
    %1952 = vmatprep.mubr.f32.mxu0 %v1752
    %1953 = vmatmul.mubr.f32.gmra.mrb[0].mxu0 %v1751
    %v1954 = vpop.f32.mrb[0].mxu0
    %v1955 = vadd.f32 0.0, %v1954
    %v1956 = vpop.f32.mrb[0].mxu0
    %v1957 = vadd.f32 0.0, %v1956
    %1958 = vmatprep.mubr.f32.mxu0 %v1754
    %1959 = vmatmul.mubr.f32.gmra.mrb[0].mxu0 %v1753
    %v1960 = vpop.f32.mrb[0].mxu0
    %v1961 = vadd.f32 0.0, %v1960
    %v1962 = vpop.f32.mrb[0].mxu0
    %v1963 = vadd.f32 0.0, %v1962
    %1964 = vmatprep.mubr.f32.mxu0 %v1756
    %1965 = vmatmul.mubr.f32.gmra.mrb[0].mxu0 %v1755
    %v1966 = vpop.f32.mrb[0].mxu0
    %v1967 = vadd.f32 0.0, %v1966
    %v1968 = vpop.f32.mrb[0].mxu0
    %v1969 = vadd.f32 0.0, %v1968
    %1970 = vmatprep.mubr.f32.mxu0 %v1758
    %1971 = vmatmul.mubr.f32.gmra.mrb[0].mxu0 %v1757
    %v1972 = vpop.f32.mrb[0].mxu0
    %v1973 = vadd.f32 0.0, %v1972
    %v1974 = vpop.f32.mrb[0].mxu0
    %v1975 = vadd.f32 0.0, %v1974
    %1976 = vmatprep.mubr.f32.mxu0 %v1760
    %1977 = vmatmul.mubr.f32.gmra.mrb[0].mxu0 %v1759
    %v1978 = vpop.f32.mrb[0].mxu0
    %v1979 = vadd.f32 0.0, %v1978
    %v1980 = vpop.f32.mrb[0].mxu0
    %v1981 = vadd.f32 0.0, %v1980
    %1982 = vmatprep.mubr.f32.mxu0 %v1762
    %1983 = vmatmul.mubr.f32.gmra.mrb[0].mxu0 %v1761
    %v1984 = vpop.f32.mrb[0].mxu0
    %v1985 = vadd.f32 0.0, %v1984
    %v1986 = vpop.f32.mrb[0].mxu0
    %v1987 = vadd.f32 0.0, %v1986
    %1988 = vdwg.mxu0
    %v1989 = vadd.f32 %v1698, %v1895
    %v1990 = vadd.f32 %v1699, %v1897
    %v1991 = vadd.f32 %v1700, %v1901
    %v1992 = vadd.f32 %v1701, %v1903
    %v1993 = vadd.f32 %v1702, %v1907
    %v1994 = vadd.f32 %v1703, %v1909
    %v1995 = vadd.f32 %v1704, %v1913
    %v1996 = vadd.f32 %v1705, %v1915
    %v1997 = vadd.f32 %v1706, %v1919
    %v1998 = vadd.f32 %v1707, %v1921
    %v1999 = vadd.f32 %v1708, %v1925
    %v2000 = vadd.f32 %v1709, %v1927
    %v2001 = vadd.f32 %v1710, %v1931
    %v2002 = vadd.f32 %v1711, %v1933
    %v2003 = vadd.f32 %v1712, %v1937
    %v2004 = vadd.f32 %v1713, %v1939
    %v2005 = vadd.f32 %v1714, %v1943
    %v2006 = vadd.f32 %v1715, %v1945
    %v2007 = vadd.f32 %v1716, %v1949
    %v2008 = vadd.f32 %v1717, %v1951
    %v2009 = vadd.f32 %v1718, %v1955
    %v2010 = vadd.f32 %v1719, %v1957
    %v2011 = vadd.f32 %v1720, %v1961
    %v2012 = vadd.f32 %v1721, %v1963
    %v2013 = vadd.f32 %v1722, %v1967
    %v2014 = vadd.f32 %v1723, %v1969
    %v2015 = vadd.f32 %v1724, %v1973
    %v2016 = vadd.f32 %v1725, %v1975
    %v2017 = vadd.f32 %v1726, %v1979
    %v2018 = vadd.f32 %v1727, %v1981
    %v2019 = vadd.f32 %v1728, %v1985
    %v2020 = vadd.f32 %v1729, %v1987
    %vm2021 = vcmp.gt.f32.partialorder %v1989, 0.0
    %vm2022 = vcmp.gt.f32.partialorder %v1990, 0.0
    %vm2023 = vcmp.gt.f32.partialorder %v1991, 0.0
    %vm2024 = vcmp.gt.f32.partialorder %v1992, 0.0
    %vm2025 = vcmp.gt.f32.partialorder %v1993, 0.0
    %vm2026 = vcmp.gt.f32.partialorder %v1994, 0.0
    %vm2027 = vcmp.gt.f32.partialorder %v1995, 0.0
    %vm2028 = vcmp.gt.f32.partialorder %v1996, 0.0
    %vm2029 = vcmp.gt.f32.partialorder %v1997, 0.0
    %vm2030 = vcmp.gt.f32.partialorder %v1998, 0.0
    %vm2031 = vcmp.gt.f32.partialorder %v1999, 0.0
    %vm2032 = vcmp.gt.f32.partialorder %v2000, 0.0
    %vm2033 = vcmp.gt.f32.partialorder %v2001, 0.0
    %vm2034 = vcmp.gt.f32.partialorder %v2002, 0.0
    %vm2035 = vcmp.gt.f32.partialorder %v2003, 0.0
    %vm2036 = vcmp.gt.f32.partialorder %v2004, 0.0
    %vm2037 = vcmp.gt.f32.partialorder %v2005, 0.0
    %vm2038 = vcmp.gt.f32.partialorder %v2006, 0.0
    %vm2039 = vcmp.gt.f32.partialorder %v2007, 0.0
    %vm2040 = vcmp.gt.f32.partialorder %v2008, 0.0
    %vm2041 = vcmp.gt.f32.partialorder %v2009, 0.0
    %vm2042 = vcmp.gt.f32.partialorder %v2010, 0.0
    %vm2043 = vcmp.gt.f32.partialorder %v2011, 0.0
    %vm2044 = vcmp.gt.f32.partialorder %v2012, 0.0
    %vm2045 = vcmp.gt.f32.partialorder %v2013, 0.0
    %vm2046 = vcmp.gt.f32.partialorder %v2014, 0.0
    %vm2047 = vcmp.gt.f32.partialorder %v2015, 0.0
    %vm2048 = vcmp.gt.f32.partialorder %v2016, 0.0
    %vm2049 = vcmp.gt.f32.partialorder %v2017, 0.0
    %vm2050 = vcmp.gt.f32.partialorder %v2018, 0.0
    %vm2051 = vcmp.gt.f32.partialorder %v2019, 0.0
    %vm2052 = vcmp.gt.f32.partialorder %v2020, 0.0
    %v2053 = vmin.f32 %v1989, 0.0
    %v2054 = vmin.f32 %v1990, 0.0
    %v2055 = vmin.f32 %v1991, 0.0
    %v2056 = vmin.f32 %v1992, 0.0
    %v2057 = vmin.f32 %v1993, 0.0
    %v2058 = vmin.f32 %v1994, 0.0
    %v2059 = vmin.f32 %v1995, 0.0
    %v2060 = vmin.f32 %v1996, 0.0
    %v2061 = vmin.f32 %v1997, 0.0
    %v2062 = vmin.f32 %v1998, 0.0
    %v2063 = vmin.f32 %v1999, 0.0
    %v2064 = vmin.f32 %v2000, 0.0
    %v2065 = vmin.f32 %v2001, 0.0
    %v2066 = vmin.f32 %v2002, 0.0
    %v2067 = vmin.f32 %v2003, 0.0
    %v2068 = vmin.f32 %v2004, 0.0
    %v2069 = vmin.f32 %v2005, 0.0
    %v2070 = vmin.f32 %v2006, 0.0
    %v2071 = vmin.f32 %v2007, 0.0
    %v2072 = vmin.f32 %v2008, 0.0
    %v2073 = vmin.f32 %v2009, 0.0
    %v2074 = vmin.f32 %v2010, 0.0
    %v2075 = vmin.f32 %v2011, 0.0
    %v2076 = vmin.f32 %v2012, 0.0
    %v2077 = vmin.f32 %v2013, 0.0
    %v2078 = vmin.f32 %v2014, 0.0
    %v2079 = vmin.f32 %v2015, 0.0
    %v2080 = vmin.f32 %v2016, 0.0
    %v2081 = vmin.f32 %v2017, 0.0
    %v2082 = vmin.f32 %v2018, 0.0
    %v2083 = vmin.f32 %v2019, 0.0
    %v2084 = vmin.f32 %v2020, 0.0
    %v2085 = vmul.f32 %v2053, 1.442695
    %v2086 = vpow.pop %v2085
    %v2087 = vmul.f32 %v2054, 1.442695
    %v2088 = vpow.pop %v2087
    %v2089 = vmul.f32 %v2055, 1.442695
    %v2090 = vpow.pop %v2089
    %v2091 = vmul.f32 %v2056, 1.442695
    %v2092 = vpow.pop %v2091
    %v2093 = vmul.f32 %v2057, 1.442695
    %v2094 = vpow.pop %v2093
    %v2095 = vmul.f32 %v2058, 1.442695
    %v2096 = vpow.pop %v2095
    %v2097 = vmul.f32 %v2059, 1.442695
    %v2098 = vpow.pop %v2097
    %v2099 = vmul.f32 %v2060, 1.442695
    %v2100 = vpow.pop %v2099
    %v2101 = vmul.f32 %v2061, 1.442695
    %v2102 = vpow.pop %v2101
    %v2103 = vmul.f32 %v2062, 1.442695
    %v2104 = vpow.pop %v2103
    %v2105 = vmul.f32 %v2063, 1.442695
    %v2106 = vpow.pop %v2105
    %v2107 = vmul.f32 %v2064, 1.442695
    %v2108 = vpow.pop %v2107
    %v2109 = vmul.f32 %v2065, 1.442695
    %v2110 = vpow.pop %v2109
    %v2111 = vmul.f32 %v2066, 1.442695
    %v2112 = vpow.pop %v2111
    %v2113 = vmul.f32 %v2067, 1.442695
    %v2114 = vpow.pop %v2113
    %v2115 = vmul.f32 %v2068, 1.442695
    %v2116 = vpow.pop %v2115
    %v2117 = vmul.f32 %v2069, 1.442695
    %v2118 = vpow.pop %v2117
    %v2119 = vmul.f32 %v2070, 1.442695
    %v2120 = vpow.pop %v2119
    %v2121 = vmul.f32 %v2071, 1.442695
    %v2122 = vpow.pop %v2121
    %v2123 = vmul.f32 %v2072, 1.442695
    %v2124 = vpow.pop %v2123
    %v2125 = vmul.f32 %v2073, 1.442695
    %v2126 = vpow.pop %v2125
    %v2127 = vmul.f32 %v2074, 1.442695
    %v2128 = vpow.pop %v2127
    %v2129 = vmul.f32 %v2075, 1.442695
    %v2130 = vpow.pop %v2129
    %v2131 = vmul.f32 %v2076, 1.442695
    %v2132 = vpow.pop %v2131
    %v2133 = vmul.f32 %v2077, 1.442695
    %v2134 = vpow.pop %v2133
    %v2135 = vmul.f32 %v2078, 1.442695
    %v2136 = vpow.pop %v2135
    %v2137 = vmul.f32 %v2079, 1.442695
    %v2138 = vpow.pop %v2137
    %v2139 = vmul.f32 %v2080, 1.442695
    %v2140 = vpow.pop %v2139
    %v2141 = vmul.f32 %v2081, 1.442695
    %v2142 = vpow.pop %v2141
    %v2143 = vmul.f32 %v2082, 1.442695
    %v2144 = vpow.pop %v2143
    %v2145 = vmul.f32 %v2083, 1.442695
    %v2146 = vpow.pop %v2145
    %v2147 = vmul.f32 %v2084, 1.442695
    %v2148 = vpow.pop %v2147
    %v2149 = vsub.f32 %v2086, 1.0
    %v2150 = vsub.f32 %v2088, 1.0
    %v2151 = vsub.f32 %v2090, 1.0
    %v2152 = vsub.f32 %v2092, 1.0
    %v2153 = vsub.f32 %v2094, 1.0
    %v2154 = vsub.f32 %v2096, 1.0
    %v2155 = vsub.f32 %v2098, 1.0
    %v2156 = vsub.f32 %v2100, 1.0
    %v2157 = vsub.f32 %v2102, 1.0
    %v2158 = vsub.f32 %v2104, 1.0
    %v2159 = vsub.f32 %v2106, 1.0
    %v2160 = vsub.f32 %v2108, 1.0
    %v2161 = vsub.f32 %v2110, 1.0
    %v2162 = vsub.f32 %v2112, 1.0
    %v2163 = vsub.f32 %v2114, 1.0
    %v2164 = vsub.f32 %v2116, 1.0
    %v2165 = vsub.f32 %v2118, 1.0
    %v2166 = vsub.f32 %v2120, 1.0
    %v2167 = vsub.f32 %v2122, 1.0
    %v2168 = vsub.f32 %v2124, 1.0
    %v2169 = vsub.f32 %v2126, 1.0
    %v2170 = vsub.f32 %v2128, 1.0
    %v2171 = vsub.f32 %v2130, 1.0
    %v2172 = vsub.f32 %v2132, 1.0
    %v2173 = vsub.f32 %v2134, 1.0
    %v2174 = vsub.f32 %v2136, 1.0
    %v2175 = vsub.f32 %v2138, 1.0
    %v2176 = vsub.f32 %v2140, 1.0
    %v2177 = vsub.f32 %v2142, 1.0
    %v2178 = vsub.f32 %v2144, 1.0
    %v2179 = vsub.f32 %v2146, 1.0
    %v2180 = vsub.f32 %v2148, 1.0
    %v2181 = vsel %vm2021, %v1989, %v2149
    %v2182 = vsel %vm2022, %v1990, %v2150
    %v2183 = vsel %vm2023, %v1991, %v2151
    %v2184 = vsel %vm2024, %v1992, %v2152
    %v2185 = vsel %vm2025, %v1993, %v2153
    %v2186 = vsel %vm2026, %v1994, %v2154
    %v2187 = vsel %vm2027, %v1995, %v2155
    %v2188 = vsel %vm2028, %v1996, %v2156
    %v2189 = vsel %vm2029, %v1997, %v2157
    %v2190 = vsel %vm2030, %v1998, %v2158
    %v2191 = vsel %vm2031, %v1999, %v2159
    %v2192 = vsel %vm2032, %v2000, %v2160
    %v2193 = vsel %vm2033, %v2001, %v2161
    %v2194 = vsel %vm2034, %v2002, %v2162
    %v2195 = vsel %vm2035, %v2003, %v2163
    %v2196 = vsel %vm2036, %v2004, %v2164
    %v2197 = vsel %vm2037, %v2005, %v2165
    %v2198 = vsel %vm2038, %v2006, %v2166
    %v2199 = vsel %vm2039, %v2007, %v2167
    %v2200 = vsel %vm2040, %v2008, %v2168
    %v2201 = vsel %vm2041, %v2009, %v2169
    %v2202 = vsel %vm2042, %v2010, %v2170
    %v2203 = vsel %vm2043, %v2011, %v2171
    %v2204 = vsel %vm2044, %v2012, %v2172
    %v2205 = vsel %vm2045, %v2013, %v2173
    %v2206 = vsel %vm2046, %v2014, %v2174
    %v2207 = vsel %vm2047, %v2015, %v2175
    %v2208 = vsel %vm2048, %v2016, %v2176
    %v2209 = vsel %vm2049, %v2017, %v2177
    %v2210 = vsel %vm2050, %v2018, %v2178
    %v2211 = vsel %vm2051, %v2019, %v2179
    %v2212 = vsel %vm2052, %v2020, %v2180
    %2213 = vst [vmem:[%s556] sm:$0xff] %v2181
    %2214 = vst [vmem:[%s556 + $0x8] sm:$0xff] %v2182
    %2215 = vst [vmem:[%s556 + $0x10] sm:$0xff] %v2183
    %2216 = vst [vmem:[%s556 + $0x18] sm:$0xff] %v2184
    %2217 = vst [vmem:[%s556 + $0x20] sm:$0xff] %v2185
    %2218 = vst [vmem:[%s556 + $0x28] sm:$0xff] %v2186
    %2219 = vst [vmem:[%s556 + $0x30] sm:$0xff] %v2187
    %2220 = vst [vmem:[%s556 + $0x38] sm:$0xff] %v2188
    %2221 = vst [vmem:[%s556 + $0x40] sm:$0xff] %v2189
    %2222 = vst [vmem:[%s556 + $0x48] sm:$0xff] %v2190
    %2223 = vst [vmem:[%s556 + $0x50] sm:$0xff] %v2191
    %2224 = vst [vmem:[%s556 + $0x58] sm:$0xff] %v2192
    %2225 = vst [vmem:[%s556 + $0x60] sm:$0xff] %v2193
    %2226 = vst [vmem:[%s556 + $0x68] sm:$0xff] %v2194
    %2227 = vst [vmem:[%s556 + $0x70] sm:$0xff] %v2195
    %2228 = vst [vmem:[%s556 + $0x78] sm:$0xff] %v2196
    %2229 = vst [vmem:[%s556 + $0x80] sm:$0xff] %v2197
    %2230 = vst [vmem:[%s556 + $0x88] sm:$0xff] %v2198
    %2231 = vst [vmem:[%s556 + $0x90] sm:$0xff] %v2199
    %2232 = vst [vmem:[%s556 + $0x98] sm:$0xff] %v2200
    %2233 = vst [vmem:[%s556 + $0xa0] sm:$0xff] %v2201
    %2234 = vst [vmem:[%s556 + $0xa8] sm:$0xff] %v2202
    %2235 = vst [vmem:[%s556 + $0xb0] sm:$0xff] %v2203
    %2236 = vst [vmem:[%s556 + $0xb8] sm:$0xff] %v2204
    %2237 = vst [vmem:[%s556 + $0xc0] sm:$0xff] %v2205
    %2238 = vst [vmem:[%s556 + $0xc8] sm:$0xff] %v2206
    %2239 = vst [vmem:[%s556 + $0xd0] sm:$0xff] %v2207
    %2240 = vst [vmem:[%s556 + $0xd8] sm:$0xff] %v2208
    %2241 = vst [vmem:[%s556 + $0xe0] sm:$0xff] %v2209
    %2242 = vst [vmem:[%s556 + $0xe8] sm:$0xff] %v2210
    %2243 = vst [vmem:[%s556 + $0xf0] sm:$0xff] %v2211
    %2244 = vst [vmem:[%s556 + $0xf8] sm:$0xff] %v2212
    %v2245 = vld [vmem:[#allocation2] sm:$0xff]
    %v2246 = vld [vmem:[#allocation2 + $0x8] sm:$0xff]
    %v2247 = vld [vmem:[#allocation2 + $0x10] sm:$0xff]
    %v2248 = vld [vmem:[#allocation2 + $0x18] sm:$0xff]
    %v2249 = vld [vmem:[#allocation2 + $0x20] sm:$0xff]
    %v2250 = vld [vmem:[#allocation2 + $0x28] sm:$0xff]
    %v2251 = vld [vmem:[#allocation2 + $0x30] sm:$0xff]
    %v2252 = vld [vmem:[#allocation2 + $0x38] sm:$0xff]
    %v2253 = vld [vmem:[#allocation2 + $0x40] sm:$0xff]
    %v2254 = vld [vmem:[#allocation2 + $0x48] sm:$0xff]
    %v2255 = vld [vmem:[#allocation2 + $0x50] sm:$0xff]
    %v2256 = vld [vmem:[#allocation2 + $0x58] sm:$0xff]
    %v2257 = vld [vmem:[#allocation2 + $0x60] sm:$0xff]
    %v2258 = vld [vmem:[#allocation2 + $0x68] sm:$0xff]
    %v2259 = vld [vmem:[#allocation2 + $0x70] sm:$0xff]
    %v2260 = vld [vmem:[#allocation2 + $0x78] sm:$0xff]
    %v2261 = vld [vmem:[#allocation2 + $0x80] sm:$0xff]
    %v2262 = vld [vmem:[#allocation2 + $0x88] sm:$0xff]
    %v2263 = vld [vmem:[#allocation2 + $0x90] sm:$0xff]
    %v2264 = vld [vmem:[#allocation2 + $0x98] sm:$0xff]
    %v2265 = vld [vmem:[#allocation2 + $0xa0] sm:$0xff]
    %v2266 = vld [vmem:[#allocation2 + $0xa8] sm:$0xff]
    %v2267 = vld [vmem:[#allocation2 + $0xb0] sm:$0xff]
    %v2268 = vld [vmem:[#allocation2 + $0xb8] sm:$0xff]
    %v2269 = vld [vmem:[#allocation2 + $0xc0] sm:$0xff]
    %v2270 = vld [vmem:[#allocation2 + $0xc8] sm:$0xff]
    %v2271 = vld [vmem:[#allocation2 + $0xd0] sm:$0xff]
    %v2272 = vld [vmem:[#allocation2 + $0xd8] sm:$0xff]
    %v2273 = vld [vmem:[#allocation2 + $0xe0] sm:$0xff]
    %v2274 = vld [vmem:[#allocation2 + $0xe8] sm:$0xff]
    %v2275 = vld [vmem:[#allocation2 + $0xf0] sm:$0xff]
    %v2276 = vld [vmem:[#allocation2 + $0xf8] sm:$0xff]
    %v2277 = vld [vmem:[#allocation12] sm:$0xff]
    %v2278 = vld [vmem:[#allocation12 + $0x8] sm:$0xff]
    %v2279 = vld [vmem:[#allocation12 + $0x10] sm:$0xff]
    %v2280 = vld [vmem:[#allocation12 + $0x18] sm:$0xff]
    %v2281 = vld [vmem:[#allocation12 + $0x20] sm:$0xff]
    %v2282 = vld [vmem:[#allocation12 + $0x28] sm:$0xff]
    %v2283 = vld [vmem:[#allocation12 + $0x30] sm:$0xff]
    %v2284 = vld [vmem:[#allocation12 + $0x38] sm:$0xff]
    %v2285 = vld [vmem:[#allocation12 + $0x40] sm:$0xff]
    %v2286 = vld [vmem:[#allocation12 + $0x48] sm:$0xff]
    %v2287 = vld [vmem:[#allocation12 + $0x50] sm:$0xff]
    %v2288 = vld [vmem:[#allocation12 + $0x58] sm:$0xff]
    %v2289 = vld [vmem:[#allocation12 + $0x60] sm:$0xff]
    %v2290 = vld [vmem:[#allocation12 + $0x68] sm:$0xff]
    %v2291 = vld [vmem:[#allocation12 + $0x70] sm:$0xff]
    %v2292 = vld [vmem:[#allocation12 + $0x78] sm:$0xff]
    %v2293 = vld [vmem:[#allocation12 + $0x80] sm:$0xff]
    %v2294 = vld [vmem:[#allocation12 + $0x88] sm:$0xff]
    %v2295 = vld [vmem:[#allocation12 + $0x90] sm:$0xff]
    %v2296 = vld [vmem:[#allocation12 + $0x98] sm:$0xff]
    %v2297 = vld [vmem:[#allocation12 + $0xa0] sm:$0xff]
    %v2298 = vld [vmem:[#allocation12 + $0xa8] sm:$0xff]
    %v2299 = vld [vmem:[#allocation12 + $0xb0] sm:$0xff]
    %v2300 = vld [vmem:[#allocation12 + $0xb8] sm:$0xff]
    %v2301 = vld [vmem:[#allocation12 + $0xc0] sm:$0xff]
    %v2302 = vld [vmem:[#allocation12 + $0xc8] sm:$0xff]
    %v2303 = vld [vmem:[#allocation12 + $0xd0] sm:$0xff]
    %v2304 = vld [vmem:[#allocation12 + $0xd8] sm:$0xff]
    %v2305 = vld [vmem:[#allocation12 + $0xe0] sm:$0xff]
    %v2306 = vld [vmem:[#allocation12 + $0xe8] sm:$0xff]
    %v2307 = vld [vmem:[#allocation12 + $0xf0] sm:$0xff]
    %v2308 = vld [vmem:[#allocation12 + $0xf8] sm:$0xff]
    %v2309 = vld [vmem:[#allocation12 + $0x100] sm:$0xff]
    %v2310 = vld [vmem:[#allocation12 + $0x108] sm:$0xff]
    %v2311 = vld [vmem:[#allocation12 + $0x110] sm:$0xff]
    %v2312 = vld [vmem:[#allocation12 + $0x118] sm:$0xff]
    %v2313 = vld [vmem:[#allocation12 + $0x120] sm:$0xff]
    %v2314 = vld [vmem:[#allocation12 + $0x128] sm:$0xff]
    %v2315 = vld [vmem:[#allocation12 + $0x130] sm:$0xff]
    %v2316 = vld [vmem:[#allocation12 + $0x138] sm:$0xff]
    %v2317 = vld [vmem:[#allocation12 + $0x140] sm:$0xff]
    %v2318 = vld [vmem:[#allocation12 + $0x148] sm:$0xff]
    %v2319 = vld [vmem:[#allocation12 + $0x150] sm:$0xff]
    %v2320 = vld [vmem:[#allocation12 + $0x158] sm:$0xff]
    %v2321 = vld [vmem:[#allocation12 + $0x160] sm:$0xff]
    %v2322 = vld [vmem:[#allocation12 + $0x168] sm:$0xff]
    %v2323 = vld [vmem:[#allocation12 + $0x170] sm:$0xff]
    %v2324 = vld [vmem:[#allocation12 + $0x178] sm:$0xff]
    %v2325 = vld [vmem:[#allocation12 + $0x180] sm:$0xff]
    %v2326 = vld [vmem:[#allocation12 + $0x188] sm:$0xff]
    %v2327 = vld [vmem:[#allocation12 + $0x190] sm:$0xff]
    %v2328 = vld [vmem:[#allocation12 + $0x198] sm:$0xff]
    %v2329 = vld [vmem:[#allocation12 + $0x1a0] sm:$0xff]
    %v2330 = vld [vmem:[#allocation12 + $0x1a8] sm:$0xff]
    %v2331 = vld [vmem:[#allocation12 + $0x1b0] sm:$0xff]
    %v2332 = vld [vmem:[#allocation12 + $0x1b8] sm:$0xff]
    %v2333 = vld [vmem:[#allocation12 + $0x1c0] sm:$0xff]
    %v2334 = vld [vmem:[#allocation12 + $0x1c8] sm:$0xff]
    %v2335 = vld [vmem:[#allocation12 + $0x1d0] sm:$0xff]
    %v2336 = vld [vmem:[#allocation12 + $0x1d8] sm:$0xff]
    %v2337 = vld [vmem:[#allocation12 + $0x1e0] sm:$0xff]
    %v2338 = vld [vmem:[#allocation12 + $0x1e8] sm:$0xff]
    %v2339 = vld [vmem:[#allocation12 + $0x1f0] sm:$0xff]
    %v2340 = vld [vmem:[#allocation12 + $0x1f8] sm:$0xff]
    %v2341 = vld [vmem:[#allocation14] sm:$0x3]
    %v2343 = vlaneseq
    %v2344 = vshrl.u32 %v2343, 7
    %v2345 = vsub.s32 0, %v2344
    %v2346 = vrot.slane %v2341, %v2345
    %v2347 = vlaneseq
    %v2348 = vshrl.u32 %v2347, 7
    %v2349 = vsub.s32 1, %v2348
    %v2350 = vrot.slane %v2341, %v2349
    %2353 = vmatprep.subr.mxu0 %v2278
    %2354 = vmatpush1.msra.mxu0 %v2277
    %2355 = vmatprep.subr.mxu0 %v2280
    %2356 = vmatpush1.msra.mxu0 %v2279
    %2357 = vmatprep.subr.mxu0 %v2282
    %2358 = vmatpush1.msra.mxu0 %v2281
    %2359 = vmatprep.subr.mxu0 %v2284
    %2360 = vmatpush1.msra.mxu0 %v2283
    %2361 = vmatprep.subr.mxu0 %v2286
    %2362 = vmatpush1.msra.mxu0 %v2285
    %2363 = vmatprep.subr.mxu0 %v2288
    %2364 = vmatpush1.msra.mxu0 %v2287
    %2365 = vmatprep.subr.mxu0 %v2290
    %2366 = vmatpush1.msra.mxu0 %v2289
    %2367 = vmatprep.subr.mxu0 %v2292
    %2368 = vmatpush1.msra.mxu0 %v2291
    %2369 = vmatprep.subr.mxu0 %v2294
    %2370 = vmatpush1.msra.mxu0 %v2293
    %2371 = vmatprep.subr.mxu0 %v2296
    %2372 = vmatpush1.msra.mxu0 %v2295
    %2373 = vmatprep.subr.mxu0 %v2298
    %2374 = vmatpush1.msra.mxu0 %v2297
    %2375 = vmatprep.subr.mxu0 %v2300
    %2376 = vmatpush1.msra.mxu0 %v2299
    %2377 = vmatprep.subr.mxu0 %v2302
    %2378 = vmatpush1.msra.mxu0 %v2301
    %2379 = vmatprep.subr.mxu0 %v2304
    %2380 = vmatpush1.msra.mxu0 %v2303
    %2381 = vmatprep.subr.mxu0 %v2306
    %2382 = vmatpush1.msra.mxu0 %v2305
    %2383 = vmatprep.subr.mxu0 %v2308
    %2384 = vmatpush1.msra.mxu0 %v2307
    %2385 = vmatprep.subr.mxu0 %v2310
    %2386 = vmatpush1.msra.mxu0 %v2309
    %2387 = vmatprep.subr.mxu0 %v2312
    %2388 = vmatpush1.msra.mxu0 %v2311
    %2389 = vmatprep.subr.mxu0 %v2314
    %2390 = vmatpush1.msra.mxu0 %v2313
    %2391 = vmatprep.subr.mxu0 %v2316
    %2392 = vmatpush1.msra.mxu0 %v2315
    %2393 = vmatprep.subr.mxu0 %v2318
    %2394 = vmatpush1.msra.mxu0 %v2317
    %2395 = vmatprep.subr.mxu0 %v2320
    %2396 = vmatpush1.msra.mxu0 %v2319
    %2397 = vmatprep.subr.mxu0 %v2322
    %2398 = vmatpush1.msra.mxu0 %v2321
    %2399 = vmatprep.subr.mxu0 %v2324
    %2400 = vmatpush1.msra.mxu0 %v2323
    %2401 = vmatprep.subr.mxu0 %v2326
    %2402 = vmatpush1.msra.mxu0 %v2325
    %2403 = vmatprep.subr.mxu0 %v2328
    %2404 = vmatpush1.msra.mxu0 %v2327
    %2405 = vmatprep.subr.mxu0 %v2330
    %2406 = vmatpush1.msra.mxu0 %v2329
    %2407 = vmatprep.subr.mxu0 %v2332
    %2408 = vmatpush1.msra.mxu0 %v2331
    %2409 = vmatprep.subr.mxu0 %v2334
    %2410 = vmatpush1.msra.mxu0 %v2333
    %2411 = vmatprep.subr.mxu0 %v2336
    %2412 = vmatpush1.msra.mxu0 %v2335
    %2413 = vmatprep.subr.mxu0 %v2338
    %2414 = vmatpush1.msra.mxu0 %v2337
    %2415 = vmatprep.subr.mxu0 %v2340
    %2416 = vmatpush1.msra.mxu0 %v2339
    %2417 = vmatprep.mubr.f32.mxu0 %v2246
    %2418 = vmatmul.mubr.f32.gmra.mrb[0].mxu0 %v2245
    %v2419 = vpop.f32.mrb[0].mxu0
    %v2420 = vadd.f32 %v2346, %v2419
    %v2421 = vpop.f32.mrb[0].mxu0
    %v2422 = vadd.f32 %v2350, %v2421
    %2423 = vmatprep.mubr.f32.mxu0 %v2248
    %2424 = vmatmul.mubr.f32.gmra.mrb[0].mxu0 %v2247
    %v2425 = vpop.f32.mrb[0].mxu0
    %v2426 = vadd.f32 %v2346, %v2425
    %v2427 = vpop.f32.mrb[0].mxu0
    %v2428 = vadd.f32 %v2350, %v2427
    %2429 = vmatprep.mubr.f32.mxu0 %v2250
    %2430 = vmatmul.mubr.f32.gmra.mrb[0].mxu0 %v2249
    %v2431 = vpop.f32.mrb[0].mxu0
    %v2432 = vadd.f32 %v2346, %v2431
    %v2433 = vpop.f32.mrb[0].mxu0
    %v2434 = vadd.f32 %v2350, %v2433
    %2435 = vmatprep.mubr.f32.mxu0 %v2252
    %2436 = vmatmul.mubr.f32.gmra.mrb[0].mxu0 %v2251
    %v2437 = vpop.f32.mrb[0].mxu0
    %v2438 = vadd.f32 %v2346, %v2437
    %v2439 = vpop.f32.mrb[0].mxu0
    %v2440 = vadd.f32 %v2350, %v2439
    %2441 = vmatprep.mubr.f32.mxu0 %v2254
    %2442 = vmatmul.mubr.f32.gmra.mrb[0].mxu0 %v2253
    %v2443 = vpop.f32.mrb[0].mxu0
    %v2444 = vadd.f32 %v2346, %v2443
    %v2445 = vpop.f32.mrb[0].mxu0
    %v2446 = vadd.f32 %v2350, %v2445
    %2447 = vmatprep.mubr.f32.mxu0 %v2256
    %2448 = vmatmul.mubr.f32.gmra.mrb[0].mxu0 %v2255
    %v2449 = vpop.f32.mrb[0].mxu0
    %v2450 = vadd.f32 %v2346, %v2449
    %v2451 = vpop.f32.mrb[0].mxu0
    %v2452 = vadd.f32 %v2350, %v2451
    %2453 = vmatprep.mubr.f32.mxu0 %v2258
    %2454 = vmatmul.mubr.f32.gmra.mrb[0].mxu0 %v2257
    %v2455 = vpop.f32.mrb[0].mxu0
    %v2456 = vadd.f32 %v2346, %v2455
    %v2457 = vpop.f32.mrb[0].mxu0
    %v2458 = vadd.f32 %v2350, %v2457
    %2459 = vmatprep.mubr.f32.mxu0 %v2260
    %2460 = vmatmul.mubr.f32.gmra.mrb[0].mxu0 %v2259
    %v2461 = vpop.f32.mrb[0].mxu0
    %v2462 = vadd.f32 %v2346, %v2461
    %v2463 = vpop.f32.mrb[0].mxu0
    %v2464 = vadd.f32 %v2350, %v2463
    %2465 = vmatprep.mubr.f32.mxu0 %v2262
    %2466 = vmatmul.mubr.f32.gmra.mrb[0].mxu0 %v2261
    %v2467 = vpop.f32.mrb[0].mxu0
    %v2468 = vadd.f32 %v2346, %v2467
    %v2469 = vpop.f32.mrb[0].mxu0
    %v2470 = vadd.f32 %v2350, %v2469
    %2471 = vmatprep.mubr.f32.mxu0 %v2264
    %2472 = vmatmul.mubr.f32.gmra.mrb[0].mxu0 %v2263
    %v2473 = vpop.f32.mrb[0].mxu0
    %v2474 = vadd.f32 %v2346, %v2473
    %v2475 = vpop.f32.mrb[0].mxu0
    %v2476 = vadd.f32 %v2350, %v2475
    %2477 = vmatprep.mubr.f32.mxu0 %v2266
    %2478 = vmatmul.mubr.f32.gmra.mrb[0].mxu0 %v2265
    %v2479 = vpop.f32.mrb[0].mxu0
    %v2480 = vadd.f32 %v2346, %v2479
    %v2481 = vpop.f32.mrb[0].mxu0
    %v2482 = vadd.f32 %v2350, %v2481
    %2483 = vmatprep.mubr.f32.mxu0 %v2268
    %2484 = vmatmul.mubr.f32.gmra.mrb[0].mxu0 %v2267
    %v2485 = vpop.f32.mrb[0].mxu0
    %v2486 = vadd.f32 %v2346, %v2485
    %v2487 = vpop.f32.mrb[0].mxu0
    %v2488 = vadd.f32 %v2350, %v2487
    %2489 = vmatprep.mubr.f32.mxu0 %v2270
    %2490 = vmatmul.mubr.f32.gmra.mrb[0].mxu0 %v2269
    %v2491 = vpop.f32.mrb[0].mxu0
    %v2492 = vadd.f32 %v2346, %v2491
    %v2493 = vpop.f32.mrb[0].mxu0
    %v2494 = vadd.f32 %v2350, %v2493
    %2495 = vmatprep.mubr.f32.mxu0 %v2272
    %2496 = vmatmul.mubr.f32.gmra.mrb[0].mxu0 %v2271
    %v2497 = vpop.f32.mrb[0].mxu0
    %v2498 = vadd.f32 %v2346, %v2497
    %v2499 = vpop.f32.mrb[0].mxu0
    %v2500 = vadd.f32 %v2350, %v2499
    %2501 = vmatprep.mubr.f32.mxu0 %v2274
    %2502 = vmatmul.mubr.f32.gmra.mrb[0].mxu0 %v2273
    %v2503 = vpop.f32.mrb[0].mxu0
    %v2504 = vadd.f32 %v2346, %v2503
    %v2505 = vpop.f32.mrb[0].mxu0
    %v2506 = vadd.f32 %v2350, %v2505
    %2507 = vmatprep.mubr.f32.mxu0 %v2276
    %2508 = vmatmul.mubr.f32.gmra.mrb[0].mxu0 %v2275
    %v2509 = vpop.f32.mrb[0].mxu0
    %v2510 = vadd.f32 %v2346, %v2509
    %v2511 = vpop.f32.mrb[0].mxu0
    %v2512 = vadd.f32 %v2350, %v2511
    %2513 = vdwg.mxu0
    %v2514 = vld [vmem:[%s858] sm:$0xff]
    %v2515 = vld [vmem:[%s858 + $0x8] sm:$0xff]
    %v2516 = vld [vmem:[%s858 + $0x10] sm:$0xff]
    %v2517 = vld [vmem:[%s858 + $0x18] sm:$0xff]
    %v2518 = vld [vmem:[%s858 + $0x20] sm:$0xff]
    %v2519 = vld [vmem:[%s858 + $0x28] sm:$0xff]
    %v2520 = vld [vmem:[%s858 + $0x30] sm:$0xff]
    %v2521 = vld [vmem:[%s858 + $0x38] sm:$0xff]
    %v2522 = vld [vmem:[%s858 + $0x40] sm:$0xff]
    %v2523 = vld [vmem:[%s858 + $0x48] sm:$0xff]
    %v2524 = vld [vmem:[%s858 + $0x50] sm:$0xff]
    %v2525 = vld [vmem:[%s858 + $0x58] sm:$0xff]
    %v2526 = vld [vmem:[%s858 + $0x60] sm:$0xff]
    %v2527 = vld [vmem:[%s858 + $0x68] sm:$0xff]
    %v2528 = vld [vmem:[%s858 + $0x70] sm:$0xff]
    %v2529 = vld [vmem:[%s858 + $0x78] sm:$0xff]
    %v2530 = vld [vmem:[%s858 + $0x80] sm:$0xff]
    %v2531 = vld [vmem:[%s858 + $0x88] sm:$0xff]
    %v2532 = vld [vmem:[%s858 + $0x90] sm:$0xff]
    %v2533 = vld [vmem:[%s858 + $0x98] sm:$0xff]
    %v2534 = vld [vmem:[%s858 + $0xa0] sm:$0xff]
    %v2535 = vld [vmem:[%s858 + $0xa8] sm:$0xff]
    %v2536 = vld [vmem:[%s858 + $0xb0] sm:$0xff]
    %v2537 = vld [vmem:[%s858 + $0xb8] sm:$0xff]
    %v2538 = vld [vmem:[%s858 + $0xc0] sm:$0xff]
    %v2539 = vld [vmem:[%s858 + $0xc8] sm:$0xff]
    %v2540 = vld [vmem:[%s858 + $0xd0] sm:$0xff]
    %v2541 = vld [vmem:[%s858 + $0xd8] sm:$0xff]
    %v2542 = vld [vmem:[%s858 + $0xe0] sm:$0xff]
    %v2543 = vld [vmem:[%s858 + $0xe8] sm:$0xff]
    %v2544 = vld [vmem:[%s858 + $0xf0] sm:$0xff]
    %v2545 = vld [vmem:[%s858 + $0xf8] sm:$0xff]
    %s2546 = scalar_lea.vmem [#allocation12], 512
    %v2547 = vld [vmem:[%s2546] sm:$0xff]
    %v2548 = vld [vmem:[%s2546 + $0x8] sm:$0xff]
    %v2549 = vld [vmem:[%s2546 + $0x10] sm:$0xff]
    %v2550 = vld [vmem:[%s2546 + $0x18] sm:$0xff]
    %v2551 = vld [vmem:[%s2546 + $0x20] sm:$0xff]
    %v2552 = vld [vmem:[%s2546 + $0x28] sm:$0xff]
    %v2553 = vld [vmem:[%s2546 + $0x30] sm:$0xff]
    %v2554 = vld [vmem:[%s2546 + $0x38] sm:$0xff]
    %v2555 = vld [vmem:[%s2546 + $0x40] sm:$0xff]
    %v2556 = vld [vmem:[%s2546 + $0x48] sm:$0xff]
    %v2557 = vld [vmem:[%s2546 + $0x50] sm:$0xff]
    %v2558 = vld [vmem:[%s2546 + $0x58] sm:$0xff]
    %v2559 = vld [vmem:[%s2546 + $0x60] sm:$0xff]
    %v2560 = vld [vmem:[%s2546 + $0x68] sm:$0xff]
    %v2561 = vld [vmem:[%s2546 + $0x70] sm:$0xff]
    %v2562 = vld [vmem:[%s2546 + $0x78] sm:$0xff]
    %v2563 = vld [vmem:[%s2546 + $0x80] sm:$0xff]
    %v2564 = vld [vmem:[%s2546 + $0x88] sm:$0xff]
    %v2565 = vld [vmem:[%s2546 + $0x90] sm:$0xff]
    %v2566 = vld [vmem:[%s2546 + $0x98] sm:$0xff]
    %v2567 = vld [vmem:[%s2546 + $0xa0] sm:$0xff]
    %v2568 = vld [vmem:[%s2546 + $0xa8] sm:$0xff]
    %v2569 = vld [vmem:[%s2546 + $0xb0] sm:$0xff]
    %v2570 = vld [vmem:[%s2546 + $0xb8] sm:$0xff]
    %v2571 = vld [vmem:[%s2546 + $0xc0] sm:$0xff]
    %v2572 = vld [vmem:[%s2546 + $0xc8] sm:$0xff]
    %v2573 = vld [vmem:[%s2546 + $0xd0] sm:$0xff]
    %v2574 = vld [vmem:[%s2546 + $0xd8] sm:$0xff]
    %v2575 = vld [vmem:[%s2546 + $0xe0] sm:$0xff]
    %v2576 = vld [vmem:[%s2546 + $0xe8] sm:$0xff]
    %v2577 = vld [vmem:[%s2546 + $0xf0] sm:$0xff]
    %v2578 = vld [vmem:[%s2546 + $0xf8] sm:$0xff]
    %v2579 = vld [vmem:[%s2546 + $0x100] sm:$0xff]
    %v2580 = vld [vmem:[%s2546 + $0x108] sm:$0xff]
    %v2581 = vld [vmem:[%s2546 + $0x110] sm:$0xff]
    %v2582 = vld [vmem:[%s2546 + $0x118] sm:$0xff]
    %v2583 = vld [vmem:[%s2546 + $0x120] sm:$0xff]
    %v2584 = vld [vmem:[%s2546 + $0x128] sm:$0xff]
    %v2585 = vld [vmem:[%s2546 + $0x130] sm:$0xff]
    %v2586 = vld [vmem:[%s2546 + $0x138] sm:$0xff]
    %v2587 = vld [vmem:[%s2546 + $0x140] sm:$0xff]
    %v2588 = vld [vmem:[%s2546 + $0x148] sm:$0xff]
    %v2589 = vld [vmem:[%s2546 + $0x150] sm:$0xff]
    %v2590 = vld [vmem:[%s2546 + $0x158] sm:$0xff]
    %v2591 = vld [vmem:[%s2546 + $0x160] sm:$0xff]
    %v2592 = vld [vmem:[%s2546 + $0x168] sm:$0xff]
    %v2593 = vld [vmem:[%s2546 + $0x170] sm:$0xff]
    %v2594 = vld [vmem:[%s2546 + $0x178] sm:$0xff]
    %v2595 = vld [vmem:[%s2546 + $0x180] sm:$0xff]
    %v2596 = vld [vmem:[%s2546 + $0x188] sm:$0xff]
    %v2597 = vld [vmem:[%s2546 + $0x190] sm:$0xff]
    %v2598 = vld [vmem:[%s2546 + $0x198] sm:$0xff]
    %v2599 = vld [vmem:[%s2546 + $0x1a0] sm:$0xff]
    %v2600 = vld [vmem:[%s2546 + $0x1a8] sm:$0xff]
    %v2601 = vld [vmem:[%s2546 + $0x1b0] sm:$0xff]
    %v2602 = vld [vmem:[%s2546 + $0x1b8] sm:$0xff]
    %v2603 = vld [vmem:[%s2546 + $0x1c0] sm:$0xff]
    %v2604 = vld [vmem:[%s2546 + $0x1c8] sm:$0xff]
    %v2605 = vld [vmem:[%s2546 + $0x1d0] sm:$0xff]
    %v2606 = vld [vmem:[%s2546 + $0x1d8] sm:$0xff]
    %v2607 = vld [vmem:[%s2546 + $0x1e0] sm:$0xff]
    %v2608 = vld [vmem:[%s2546 + $0x1e8] sm:$0xff]
    %v2609 = vld [vmem:[%s2546 + $0x1f0] sm:$0xff]
    %v2610 = vld [vmem:[%s2546 + $0x1f8] sm:$0xff]
    %2611 = vmatprep.subr.mxu0 %v2548
    %2612 = vmatpush1.msra.mxu0 %v2547
    %2613 = vmatprep.subr.mxu0 %v2550
    %2614 = vmatpush1.msra.mxu0 %v2549
    %2615 = vmatprep.subr.mxu0 %v2552
    %2616 = vmatpush1.msra.mxu0 %v2551
    %2617 = vmatprep.subr.mxu0 %v2554
    %2618 = vmatpush1.msra.mxu0 %v2553
    %2619 = vmatprep.subr.mxu0 %v2556
    %2620 = vmatpush1.msra.mxu0 %v2555
    %2621 = vmatprep.subr.mxu0 %v2558
    %2622 = vmatpush1.msra.mxu0 %v2557
    %2623 = vmatprep.subr.mxu0 %v2560
    %2624 = vmatpush1.msra.mxu0 %v2559
    %2625 = vmatprep.subr.mxu0 %v2562
    %2626 = vmatpush1.msra.mxu0 %v2561
    %2627 = vmatprep.subr.mxu0 %v2564
    %2628 = vmatpush1.msra.mxu0 %v2563
    %2629 = vmatprep.subr.mxu0 %v2566
    %2630 = vmatpush1.msra.mxu0 %v2565
    %2631 = vmatprep.subr.mxu0 %v2568
    %2632 = vmatpush1.msra.mxu0 %v2567
    %2633 = vmatprep.subr.mxu0 %v2570
    %2634 = vmatpush1.msra.mxu0 %v2569
    %2635 = vmatprep.subr.mxu0 %v2572
    %2636 = vmatpush1.msra.mxu0 %v2571
    %2637 = vmatprep.subr.mxu0 %v2574
    %2638 = vmatpush1.msra.mxu0 %v2573
    %2639 = vmatprep.subr.mxu0 %v2576
    %2640 = vmatpush1.msra.mxu0 %v2575
    %2641 = vmatprep.subr.mxu0 %v2578
    %2642 = vmatpush1.msra.mxu0 %v2577
    %2643 = vmatprep.subr.mxu0 %v2580
    %2644 = vmatpush1.msra.mxu0 %v2579
    %2645 = vmatprep.subr.mxu0 %v2582
    %2646 = vmatpush1.msra.mxu0 %v2581
    %2647 = vmatprep.subr.mxu0 %v2584
    %2648 = vmatpush1.msra.mxu0 %v2583
    %2649 = vmatprep.subr.mxu0 %v2586
    %2650 = vmatpush1.msra.mxu0 %v2585
    %2651 = vmatprep.subr.mxu0 %v2588
    %2652 = vmatpush1.msra.mxu0 %v2587
    %2653 = vmatprep.subr.mxu0 %v2590
    %2654 = vmatpush1.msra.mxu0 %v2589
    %2655 = vmatprep.subr.mxu0 %v2592
    %2656 = vmatpush1.msra.mxu0 %v2591
    %2657 = vmatprep.subr.mxu0 %v2594
    %2658 = vmatpush1.msra.mxu0 %v2593
    %2659 = vmatprep.subr.mxu0 %v2596
    %2660 = vmatpush1.msra.mxu0 %v2595
    %2661 = vmatprep.subr.mxu0 %v2598
    %2662 = vmatpush1.msra.mxu0 %v2597
    %2663 = vmatprep.subr.mxu0 %v2600
    %2664 = vmatpush1.msra.mxu0 %v2599
    %2665 = vmatprep.subr.mxu0 %v2602
    %2666 = vmatpush1.msra.mxu0 %v2601
    %2667 = vmatprep.subr.mxu0 %v2604
    %2668 = vmatpush1.msra.mxu0 %v2603
    %2669 = vmatprep.subr.mxu0 %v2606
    %2670 = vmatpush1.msra.mxu0 %v2605
    %2671 = vmatprep.subr.mxu0 %v2608
    %2672 = vmatpush1.msra.mxu0 %v2607
    %2673 = vmatprep.subr.mxu0 %v2610
    %2674 = vmatpush1.msra.mxu0 %v2609
    %2675 = vmatprep.mubr.f32.mxu0 %v2515
    %2676 = vmatmul.mubr.f32.gmra.mrb[0].mxu0 %v2514
    %v2677 = vpop.f32.mrb[0].mxu0
    %v2678 = vadd.f32 0.0, %v2677
    %v2679 = vpop.f32.mrb[0].mxu0
    %v2680 = vadd.f32 0.0, %v2679
    %2681 = vmatprep.mubr.f32.mxu0 %v2517
    %2682 = vmatmul.mubr.f32.gmra.mrb[0].mxu0 %v2516
    %v2683 = vpop.f32.mrb[0].mxu0
    %v2684 = vadd.f32 0.0, %v2683
    %v2685 = vpop.f32.mrb[0].mxu0
    %v2686 = vadd.f32 0.0, %v2685
    %2687 = vmatprep.mubr.f32.mxu0 %v2519
    %2688 = vmatmul.mubr.f32.gmra.mrb[0].mxu0 %v2518
    %v2689 = vpop.f32.mrb[0].mxu0
    %v2690 = vadd.f32 0.0, %v2689
    %v2691 = vpop.f32.mrb[0].mxu0
    %v2692 = vadd.f32 0.0, %v2691
    %2693 = vmatprep.mubr.f32.mxu0 %v2521
    %2694 = vmatmul.mubr.f32.gmra.mrb[0].mxu0 %v2520
    %v2695 = vpop.f32.mrb[0].mxu0
    %v2696 = vadd.f32 0.0, %v2695
    %v2697 = vpop.f32.mrb[0].mxu0
    %v2698 = vadd.f32 0.0, %v2697
    %2699 = vmatprep.mubr.f32.mxu0 %v2523
    %2700 = vmatmul.mubr.f32.gmra.mrb[0].mxu0 %v2522
    %v2701 = vpop.f32.mrb[0].mxu0
    %v2702 = vadd.f32 0.0, %v2701
    %v2703 = vpop.f32.mrb[0].mxu0
    %v2704 = vadd.f32 0.0, %v2703
    %2705 = vmatprep.mubr.f32.mxu0 %v2525
    %2706 = vmatmul.mubr.f32.gmra.mrb[0].mxu0 %v2524
    %v2707 = vpop.f32.mrb[0].mxu0
    %v2708 = vadd.f32 0.0, %v2707
    %v2709 = vpop.f32.mrb[0].mxu0
    %v2710 = vadd.f32 0.0, %v2709
    %2711 = vmatprep.mubr.f32.mxu0 %v2527
    %2712 = vmatmul.mubr.f32.gmra.mrb[0].mxu0 %v2526
    %v2713 = vpop.f32.mrb[0].mxu0
    %v2714 = vadd.f32 0.0, %v2713
    %v2715 = vpop.f32.mrb[0].mxu0
    %v2716 = vadd.f32 0.0, %v2715
    %2717 = vmatprep.mubr.f32.mxu0 %v2529
    %2718 = vmatmul.mubr.f32.gmra.mrb[0].mxu0 %v2528
    %v2719 = vpop.f32.mrb[0].mxu0
    %v2720 = vadd.f32 0.0, %v2719
    %v2721 = vpop.f32.mrb[0].mxu0
    %v2722 = vadd.f32 0.0, %v2721
    %2723 = vmatprep.mubr.f32.mxu0 %v2531
    %2724 = vmatmul.mubr.f32.gmra.mrb[0].mxu0 %v2530
    %v2725 = vpop.f32.mrb[0].mxu0
    %v2726 = vadd.f32 0.0, %v2725
    %v2727 = vpop.f32.mrb[0].mxu0
    %v2728 = vadd.f32 0.0, %v2727
    %2729 = vmatprep.mubr.f32.mxu0 %v2533
    %2730 = vmatmul.mubr.f32.gmra.mrb[0].mxu0 %v2532
    %v2731 = vpop.f32.mrb[0].mxu0
    %v2732 = vadd.f32 0.0, %v2731
    %v2733 = vpop.f32.mrb[0].mxu0
    %v2734 = vadd.f32 0.0, %v2733
    %2735 = vmatprep.mubr.f32.mxu0 %v2535
    %2736 = vmatmul.mubr.f32.gmra.mrb[0].mxu0 %v2534
    %v2737 = vpop.f32.mrb[0].mxu0
    %v2738 = vadd.f32 0.0, %v2737
    %v2739 = vpop.f32.mrb[0].mxu0
    %v2740 = vadd.f32 0.0, %v2739
    %2741 = vmatprep.mubr.f32.mxu0 %v2537
    %2742 = vmatmul.mubr.f32.gmra.mrb[0].mxu0 %v2536
    %v2743 = vpop.f32.mrb[0].mxu0
    %v2744 = vadd.f32 0.0, %v2743
    %v2745 = vpop.f32.mrb[0].mxu0
    %v2746 = vadd.f32 0.0, %v2745
    %2747 = vmatprep.mubr.f32.mxu0 %v2539
    %2748 = vmatmul.mubr.f32.gmra.mrb[0].mxu0 %v2538
    %v2749 = vpop.f32.mrb[0].mxu0
    %v2750 = vadd.f32 0.0, %v2749
    %v2751 = vpop.f32.mrb[0].mxu0
    %v2752 = vadd.f32 0.0, %v2751
    %2753 = vmatprep.mubr.f32.mxu0 %v2541
    %2754 = vmatmul.mubr.f32.gmra.mrb[0].mxu0 %v2540
    %v2755 = vpop.f32.mrb[0].mxu0
    %v2756 = vadd.f32 0.0, %v2755
    %v2757 = vpop.f32.mrb[0].mxu0
    %v2758 = vadd.f32 0.0, %v2757
    %2759 = vmatprep.mubr.f32.mxu0 %v2543
    %2760 = vmatmul.mubr.f32.gmra.mrb[0].mxu0 %v2542
    %v2761 = vpop.f32.mrb[0].mxu0
    %v2762 = vadd.f32 0.0, %v2761
    %v2763 = vpop.f32.mrb[0].mxu0
    %v2764 = vadd.f32 0.0, %v2763
    %2765 = vmatprep.mubr.f32.mxu0 %v2545
    %2766 = vmatmul.mubr.f32.gmra.mrb[0].mxu0 %v2544
    %v2767 = vpop.f32.mrb[0].mxu0
    %v2768 = vadd.f32 0.0, %v2767
    %v2769 = vpop.f32.mrb[0].mxu0
    %v2770 = vadd.f32 0.0, %v2769
    %2771 = vdwg.mxu0
    %v2772 = vadd.f32 %v2420, %v2678
    %v2773 = vadd.f32 %v2422, %v2680
    %v2774 = vadd.f32 %v2426, %v2684
    %v2775 = vadd.f32 %v2428, %v2686
    %v2776 = vadd.f32 %v2432, %v2690
    %v2777 = vadd.f32 %v2434, %v2692
    %v2778 = vadd.f32 %v2438, %v2696
    %v2779 = vadd.f32 %v2440, %v2698
    %v2780 = vadd.f32 %v2444, %v2702
    %v2781 = vadd.f32 %v2446, %v2704
    %v2782 = vadd.f32 %v2450, %v2708
    %v2783 = vadd.f32 %v2452, %v2710
    %v2784 = vadd.f32 %v2456, %v2714
    %v2785 = vadd.f32 %v2458, %v2716
    %v2786 = vadd.f32 %v2462, %v2720
    %v2787 = vadd.f32 %v2464, %v2722
    %v2788 = vadd.f32 %v2468, %v2726
    %v2789 = vadd.f32 %v2470, %v2728
    %v2790 = vadd.f32 %v2474, %v2732
    %v2791 = vadd.f32 %v2476, %v2734
    %v2792 = vadd.f32 %v2480, %v2738
    %v2793 = vadd.f32 %v2482, %v2740
    %v2794 = vadd.f32 %v2486, %v2744
    %v2795 = vadd.f32 %v2488, %v2746
    %v2796 = vadd.f32 %v2492, %v2750
    %v2797 = vadd.f32 %v2494, %v2752
    %v2798 = vadd.f32 %v2498, %v2756
    %v2799 = vadd.f32 %v2500, %v2758
    %v2800 = vadd.f32 %v2504, %v2762
    %v2801 = vadd.f32 %v2506, %v2764
    %v2802 = vadd.f32 %v2510, %v2768
    %v2803 = vadd.f32 %v2512, %v2770
    %v2804 = vld [vmem:[%s556] sm:$0xff]
    %v2805 = vld [vmem:[%s556 + $0x8] sm:$0xff]
    %v2806 = vld [vmem:[%s556 + $0x10] sm:$0xff]
    %v2807 = vld [vmem:[%s556 + $0x18] sm:$0xff]
    %v2808 = vld [vmem:[%s556 + $0x20] sm:$0xff]
    %v2809 = vld [vmem:[%s556 + $0x28] sm:$0xff]
    %v2810 = vld [vmem:[%s556 + $0x30] sm:$0xff]
    %v2811 = vld [vmem:[%s556 + $0x38] sm:$0xff]
    %v2812 = vld [vmem:[%s556 + $0x40] sm:$0xff]
    %v2813 = vld [vmem:[%s556 + $0x48] sm:$0xff]
    %v2814 = vld [vmem:[%s556 + $0x50] sm:$0xff]
    %v2815 = vld [vmem:[%s556 + $0x58] sm:$0xff]
    %v2816 = vld [vmem:[%s556 + $0x60] sm:$0xff]
    %v2817 = vld [vmem:[%s556 + $0x68] sm:$0xff]
    %v2818 = vld [vmem:[%s556 + $0x70] sm:$0xff]
    %v2819 = vld [vmem:[%s556 + $0x78] sm:$0xff]
    %v2820 = vld [vmem:[%s556 + $0x80] sm:$0xff]
    %v2821 = vld [vmem:[%s556 + $0x88] sm:$0xff]
    %v2822 = vld [vmem:[%s556 + $0x90] sm:$0xff]
    %v2823 = vld [vmem:[%s556 + $0x98] sm:$0xff]
    %v2824 = vld [vmem:[%s556 + $0xa0] sm:$0xff]
    %v2825 = vld [vmem:[%s556 + $0xa8] sm:$0xff]
    %v2826 = vld [vmem:[%s556 + $0xb0] sm:$0xff]
    %v2827 = vld [vmem:[%s556 + $0xb8] sm:$0xff]
    %v2828 = vld [vmem:[%s556 + $0xc0] sm:$0xff]
    %v2829 = vld [vmem:[%s556 + $0xc8] sm:$0xff]
    %v2830 = vld [vmem:[%s556 + $0xd0] sm:$0xff]
    %v2831 = vld [vmem:[%s556 + $0xd8] sm:$0xff]
    %v2832 = vld [vmem:[%s556 + $0xe0] sm:$0xff]
    %v2833 = vld [vmem:[%s556 + $0xe8] sm:$0xff]
    %v2834 = vld [vmem:[%s556 + $0xf0] sm:$0xff]
    %v2835 = vld [vmem:[%s556 + $0xf8] sm:$0xff]
    %s2836 = scalar_lea.vmem [#allocation12], 1024
    %v2837 = vld [vmem:[%s2836] sm:$0xff]
    %v2838 = vld [vmem:[%s2836 + $0x8] sm:$0xff]
    %v2839 = vld [vmem:[%s2836 + $0x10] sm:$0xff]
    %v2840 = vld [vmem:[%s2836 + $0x18] sm:$0xff]
    %v2841 = vld [vmem:[%s2836 + $0x20] sm:$0xff]
    %v2842 = vld [vmem:[%s2836 + $0x28] sm:$0xff]
    %v2843 = vld [vmem:[%s2836 + $0x30] sm:$0xff]
    %v2844 = vld [vmem:[%s2836 + $0x38] sm:$0xff]
    %v2845 = vld [vmem:[%s2836 + $0x40] sm:$0xff]
    %v2846 = vld [vmem:[%s2836 + $0x48] sm:$0xff]
    %v2847 = vld [vmem:[%s2836 + $0x50] sm:$0xff]
    %v2848 = vld [vmem:[%s2836 + $0x58] sm:$0xff]
    %v2849 = vld [vmem:[%s2836 + $0x60] sm:$0xff]
    %v2850 = vld [vmem:[%s2836 + $0x68] sm:$0xff]
    %v2851 = vld [vmem:[%s2836 + $0x70] sm:$0xff]
    %v2852 = vld [vmem:[%s2836 + $0x78] sm:$0xff]
    %v2853 = vld [vmem:[%s2836 + $0x80] sm:$0xff]
    %v2854 = vld [vmem:[%s2836 + $0x88] sm:$0xff]
    %v2855 = vld [vmem:[%s2836 + $0x90] sm:$0xff]
    %v2856 = vld [vmem:[%s2836 + $0x98] sm:$0xff]
    %v2857 = vld [vmem:[%s2836 + $0xa0] sm:$0xff]
    %v2858 = vld [vmem:[%s2836 + $0xa8] sm:$0xff]
    %v2859 = vld [vmem:[%s2836 + $0xb0] sm:$0xff]
    %v2860 = vld [vmem:[%s2836 + $0xb8] sm:$0xff]
    %v2861 = vld [vmem:[%s2836 + $0xc0] sm:$0xff]
    %v2862 = vld [vmem:[%s2836 + $0xc8] sm:$0xff]
    %v2863 = vld [vmem:[%s2836 + $0xd0] sm:$0xff]
    %v2864 = vld [vmem:[%s2836 + $0xd8] sm:$0xff]
    %v2865 = vld [vmem:[%s2836 + $0xe0] sm:$0xff]
    %v2866 = vld [vmem:[%s2836 + $0xe8] sm:$0xff]
    %v2867 = vld [vmem:[%s2836 + $0xf0] sm:$0xff]
    %v2868 = vld [vmem:[%s2836 + $0xf8] sm:$0xff]
    %v2869 = vld [vmem:[%s2836 + $0x100] sm:$0xff]
    %v2870 = vld [vmem:[%s2836 + $0x108] sm:$0xff]
    %v2871 = vld [vmem:[%s2836 + $0x110] sm:$0xff]
    %v2872 = vld [vmem:[%s2836 + $0x118] sm:$0xff]
    %v2873 = vld [vmem:[%s2836 + $0x120] sm:$0xff]
    %v2874 = vld [vmem:[%s2836 + $0x128] sm:$0xff]
    %v2875 = vld [vmem:[%s2836 + $0x130] sm:$0xff]
    %v2876 = vld [vmem:[%s2836 + $0x138] sm:$0xff]
    %v2877 = vld [vmem:[%s2836 + $0x140] sm:$0xff]
    %v2878 = vld [vmem:[%s2836 + $0x148] sm:$0xff]
    %v2879 = vld [vmem:[%s2836 + $0x150] sm:$0xff]
    %v2880 = vld [vmem:[%s2836 + $0x158] sm:$0xff]
    %v2881 = vld [vmem:[%s2836 + $0x160] sm:$0xff]
    %v2882 = vld [vmem:[%s2836 + $0x168] sm:$0xff]
    %v2883 = vld [vmem:[%s2836 + $0x170] sm:$0xff]
    %v2884 = vld [vmem:[%s2836 + $0x178] sm:$0xff]
    %v2885 = vld [vmem:[%s2836 + $0x180] sm:$0xff]
    %v2886 = vld [vmem:[%s2836 + $0x188] sm:$0xff]
    %v2887 = vld [vmem:[%s2836 + $0x190] sm:$0xff]
    %v2888 = vld [vmem:[%s2836 + $0x198] sm:$0xff]
    %v2889 = vld [vmem:[%s2836 + $0x1a0] sm:$0xff]
    %v2890 = vld [vmem:[%s2836 + $0x1a8] sm:$0xff]
    %v2891 = vld [vmem:[%s2836 + $0x1b0] sm:$0xff]
    %v2892 = vld [vmem:[%s2836 + $0x1b8] sm:$0xff]
    %v2893 = vld [vmem:[%s2836 + $0x1c0] sm:$0xff]
    %v2894 = vld [vmem:[%s2836 + $0x1c8] sm:$0xff]
    %v2895 = vld [vmem:[%s2836 + $0x1d0] sm:$0xff]
    %v2896 = vld [vmem:[%s2836 + $0x1d8] sm:$0xff]
    %v2897 = vld [vmem:[%s2836 + $0x1e0] sm:$0xff]
    %v2898 = vld [vmem:[%s2836 + $0x1e8] sm:$0xff]
    %v2899 = vld [vmem:[%s2836 + $0x1f0] sm:$0xff]
    %v2900 = vld [vmem:[%s2836 + $0x1f8] sm:$0xff]
    %2901 = vmatprep.subr.mxu0 %v2838
    %2902 = vmatpush1.msra.mxu0 %v2837
    %2903 = vmatprep.subr.mxu0 %v2840
    %2904 = vmatpush1.msra.mxu0 %v2839
    %2905 = vmatprep.subr.mxu0 %v2842
    %2906 = vmatpush1.msra.mxu0 %v2841
    %2907 = vmatprep.subr.mxu0 %v2844
    %2908 = vmatpush1.msra.mxu0 %v2843
    %2909 = vmatprep.subr.mxu0 %v2846
    %2910 = vmatpush1.msra.mxu0 %v2845
    %2911 = vmatprep.subr.mxu0 %v2848
    %2912 = vmatpush1.msra.mxu0 %v2847
    %2913 = vmatprep.subr.mxu0 %v2850
    %2914 = vmatpush1.msra.mxu0 %v2849
    %2915 = vmatprep.subr.mxu0 %v2852
    %2916 = vmatpush1.msra.mxu0 %v2851
    %2917 = vmatprep.subr.mxu0 %v2854
    %2918 = vmatpush1.msra.mxu0 %v2853
    %2919 = vmatprep.subr.mxu0 %v2856
    %2920 = vmatpush1.msra.mxu0 %v2855
    %2921 = vmatprep.subr.mxu0 %v2858
    %2922 = vmatpush1.msra.mxu0 %v2857
    %2923 = vmatprep.subr.mxu0 %v2860
    %2924 = vmatpush1.msra.mxu0 %v2859
    %2925 = vmatprep.subr.mxu0 %v2862
    %2926 = vmatpush1.msra.mxu0 %v2861
    %2927 = vmatprep.subr.mxu0 %v2864
    %2928 = vmatpush1.msra.mxu0 %v2863
    %2929 = vmatprep.subr.mxu0 %v2866
    %2930 = vmatpush1.msra.mxu0 %v2865
    %2931 = vmatprep.subr.mxu0 %v2868
    %2932 = vmatpush1.msra.mxu0 %v2867
    %2933 = vmatprep.subr.mxu0 %v2870
    %2934 = vmatpush1.msra.mxu0 %v2869
    %2935 = vmatprep.subr.mxu0 %v2872
    %2936 = vmatpush1.msra.mxu0 %v2871
    %2937 = vmatprep.subr.mxu0 %v2874
    %2938 = vmatpush1.msra.mxu0 %v2873
    %2939 = vmatprep.subr.mxu0 %v2876
    %2940 = vmatpush1.msra.mxu0 %v2875
    %2941 = vmatprep.subr.mxu0 %v2878
    %2942 = vmatpush1.msra.mxu0 %v2877
    %2943 = vmatprep.subr.mxu0 %v2880
    %2944 = vmatpush1.msra.mxu0 %v2879
    %2945 = vmatprep.subr.mxu0 %v2882
    %2946 = vmatpush1.msra.mxu0 %v2881
    %2947 = vmatprep.subr.mxu0 %v2884
    %2948 = vmatpush1.msra.mxu0 %v2883
    %2949 = vmatprep.subr.mxu0 %v2886
    %2950 = vmatpush1.msra.mxu0 %v2885
    %2951 = vmatprep.subr.mxu0 %v2888
    %2952 = vmatpush1.msra.mxu0 %v2887
    %2953 = vmatprep.subr.mxu0 %v2890
    %2954 = vmatpush1.msra.mxu0 %v2889
    %2955 = vmatprep.subr.mxu0 %v2892
    %2956 = vmatpush1.msra.mxu0 %v2891
    %2957 = vmatprep.subr.mxu0 %v2894
    %2958 = vmatpush1.msra.mxu0 %v2893
    %2959 = vmatprep.subr.mxu0 %v2896
    %2960 = vmatpush1.msra.mxu0 %v2895
    %2961 = vmatprep.subr.mxu0 %v2898
    %2962 = vmatpush1.msra.mxu0 %v2897
    %2963 = vmatprep.subr.mxu0 %v2900
    %2964 = vmatpush1.msra.mxu0 %v2899
    %2965 = vmatprep.mubr.f32.mxu0 %v2805
    %2966 = vmatmul.mubr.f32.gmra.mrb[0].mxu0 %v2804
    %v2967 = vpop.f32.mrb[0].mxu0
    %v2968 = vadd.f32 0.0, %v2967
    %v2969 = vpop.f32.mrb[0].mxu0
    %v2970 = vadd.f32 0.0, %v2969
    %2971 = vmatprep.mubr.f32.mxu0 %v2807
    %2972 = vmatmul.mubr.f32.gmra.mrb[0].mxu0 %v2806
    %v2973 = vpop.f32.mrb[0].mxu0
    %v2974 = vadd.f32 0.0, %v2973
    %v2975 = vpop.f32.mrb[0].mxu0
    %v2976 = vadd.f32 0.0, %v2975
    %2977 = vmatprep.mubr.f32.mxu0 %v2809
    %2978 = vmatmul.mubr.f32.gmra.mrb[0].mxu0 %v2808
    %v2979 = vpop.f32.mrb[0].mxu0
    %v2980 = vadd.f32 0.0, %v2979
    %v2981 = vpop.f32.mrb[0].mxu0
    %v2982 = vadd.f32 0.0, %v2981
    %2983 = vmatprep.mubr.f32.mxu0 %v2811
    %2984 = vmatmul.mubr.f32.gmra.mrb[0].mxu0 %v2810
    %v2985 = vpop.f32.mrb[0].mxu0
    %v2986 = vadd.f32 0.0, %v2985
    %v2987 = vpop.f32.mrb[0].mxu0
    %v2988 = vadd.f32 0.0, %v2987
    %2989 = vmatprep.mubr.f32.mxu0 %v2813
    %2990 = vmatmul.mubr.f32.gmra.mrb[0].mxu0 %v2812
    %v2991 = vpop.f32.mrb[0].mxu0
    %v2992 = vadd.f32 0.0, %v2991
    %v2993 = vpop.f32.mrb[0].mxu0
    %v2994 = vadd.f32 0.0, %v2993
    %2995 = vmatprep.mubr.f32.mxu0 %v2815
    %2996 = vmatmul.mubr.f32.gmra.mrb[0].mxu0 %v2814
    %v2997 = vpop.f32.mrb[0].mxu0
    %v2998 = vadd.f32 0.0, %v2997
    %v2999 = vpop.f32.mrb[0].mxu0
    %v3000 = vadd.f32 0.0, %v2999
    %3001 = vmatprep.mubr.f32.mxu0 %v2817
    %3002 = vmatmul.mubr.f32.gmra.mrb[0].mxu0 %v2816
    %v3003 = vpop.f32.mrb[0].mxu0
    %v3004 = vadd.f32 0.0, %v3003
    %v3005 = vpop.f32.mrb[0].mxu0
    %v3006 = vadd.f32 0.0, %v3005
    %3007 = vmatprep.mubr.f32.mxu0 %v2819
    %3008 = vmatmul.mubr.f32.gmra.mrb[0].mxu0 %v2818
    %v3009 = vpop.f32.mrb[0].mxu0
    %v3010 = vadd.f32 0.0, %v3009
    %v3011 = vpop.f32.mrb[0].mxu0
    %v3012 = vadd.f32 0.0, %v3011
    %3013 = vmatprep.mubr.f32.mxu0 %v2821
    %3014 = vmatmul.mubr.f32.gmra.mrb[0].mxu0 %v2820
    %v3015 = vpop.f32.mrb[0].mxu0
    %v3016 = vadd.f32 0.0, %v3015
    %v3017 = vpop.f32.mrb[0].mxu0
    %v3018 = vadd.f32 0.0, %v3017
    %3019 = vmatprep.mubr.f32.mxu0 %v2823
    %3020 = vmatmul.mubr.f32.gmra.mrb[0].mxu0 %v2822
    %v3021 = vpop.f32.mrb[0].mxu0
    %v3022 = vadd.f32 0.0, %v3021
    %v3023 = vpop.f32.mrb[0].mxu0
    %v3024 = vadd.f32 0.0, %v3023
    %3025 = vmatprep.mubr.f32.mxu0 %v2825
    %3026 = vmatmul.mubr.f32.gmra.mrb[0].mxu0 %v2824
    %v3027 = vpop.f32.mrb[0].mxu0
    %v3028 = vadd.f32 0.0, %v3027
    %v3029 = vpop.f32.mrb[0].mxu0
    %v3030 = vadd.f32 0.0, %v3029
    %3031 = vmatprep.mubr.f32.mxu0 %v2827
    %3032 = vmatmul.mubr.f32.gmra.mrb[0].mxu0 %v2826
    %v3033 = vpop.f32.mrb[0].mxu0
    %v3034 = vadd.f32 0.0, %v3033
    %v3035 = vpop.f32.mrb[0].mxu0
    %v3036 = vadd.f32 0.0, %v3035
    %3037 = vmatprep.mubr.f32.mxu0 %v2829
    %3038 = vmatmul.mubr.f32.gmra.mrb[0].mxu0 %v2828
    %v3039 = vpop.f32.mrb[0].mxu0
    %v3040 = vadd.f32 0.0, %v3039
    %v3041 = vpop.f32.mrb[0].mxu0
    %v3042 = vadd.f32 0.0, %v3041
    %3043 = vmatprep.mubr.f32.mxu0 %v2831
    %3044 = vmatmul.mubr.f32.gmra.mrb[0].mxu0 %v2830
    %v3045 = vpop.f32.mrb[0].mxu0
    %v3046 = vadd.f32 0.0, %v3045
    %v3047 = vpop.f32.mrb[0].mxu0
    %v3048 = vadd.f32 0.0, %v3047
    %3049 = vmatprep.mubr.f32.mxu0 %v2833
    %3050 = vmatmul.mubr.f32.gmra.mrb[0].mxu0 %v2832
    %v3051 = vpop.f32.mrb[0].mxu0
    %v3052 = vadd.f32 0.0, %v3051
    %v3053 = vpop.f32.mrb[0].mxu0
    %v3054 = vadd.f32 0.0, %v3053
    %3055 = vmatprep.mubr.f32.mxu0 %v2835
    %3056 = vmatmul.mubr.f32.gmra.mrb[0].mxu0 %v2834
    %v3057 = vpop.f32.mrb[0].mxu0
    %v3058 = vadd.f32 0.0, %v3057
    %v3059 = vpop.f32.mrb[0].mxu0
    %v3060 = vadd.f32 0.0, %v3059
    %3061 = vdwg.mxu0
    %v3062 = vadd.f32 %v2772, %v2968
    %v3063 = vadd.f32 %v2773, %v2970
    %v3064 = vadd.f32 %v2774, %v2974
    %v3065 = vadd.f32 %v2775, %v2976
    %v3066 = vadd.f32 %v2776, %v2980
    %v3067 = vadd.f32 %v2777, %v2982
    %v3068 = vadd.f32 %v2778, %v2986
    %v3069 = vadd.f32 %v2779, %v2988
    %v3070 = vadd.f32 %v2780, %v2992
    %v3071 = vadd.f32 %v2781, %v2994
    %v3072 = vadd.f32 %v2782, %v2998
    %v3073 = vadd.f32 %v2783, %v3000
    %v3074 = vadd.f32 %v2784, %v3004
    %v3075 = vadd.f32 %v2785, %v3006
    %v3076 = vadd.f32 %v2786, %v3010
    %v3077 = vadd.f32 %v2787, %v3012
    %v3078 = vadd.f32 %v2788, %v3016
    %v3079 = vadd.f32 %v2789, %v3018
    %v3080 = vadd.f32 %v2790, %v3022
    %v3081 = vadd.f32 %v2791, %v3024
    %v3082 = vadd.f32 %v2792, %v3028
    %v3083 = vadd.f32 %v2793, %v3030
    %v3084 = vadd.f32 %v2794, %v3034
    %v3085 = vadd.f32 %v2795, %v3036
    %v3086 = vadd.f32 %v2796, %v3040
    %v3087 = vadd.f32 %v2797, %v3042
    %v3088 = vadd.f32 %v2798, %v3046
    %v3089 = vadd.f32 %v2799, %v3048
    %v3090 = vadd.f32 %v2800, %v3052
    %v3091 = vadd.f32 %v2801, %v3054
    %v3092 = vadd.f32 %v2802, %v3058
    %v3093 = vadd.f32 %v2803, %v3060
    %v3094 = vld [vmem:[%s1439] sm:$0xff]
    %v3095 = vld [vmem:[%s1439 + $0x8] sm:$0xff]
    %v3096 = vld [vmem:[%s1439 + $0x10] sm:$0xff]
    %v3097 = vld [vmem:[%s1439 + $0x18] sm:$0xff]
    %v3098 = vld [vmem:[%s1439 + $0x20] sm:$0xff]
    %v3099 = vld [vmem:[%s1439 + $0x28] sm:$0xff]
    %v3100 = vld [vmem:[%s1439 + $0x30] sm:$0xff]
    %v3101 = vld [vmem:[%s1439 + $0x38] sm:$0xff]
    %v3102 = vld [vmem:[%s1439 + $0x40] sm:$0xff]
    %v3103 = vld [vmem:[%s1439 + $0x48] sm:$0xff]
    %v3104 = vld [vmem:[%s1439 + $0x50] sm:$0xff]
    %v3105 = vld [vmem:[%s1439 + $0x58] sm:$0xff]
    %v3106 = vld [vmem:[%s1439 + $0x60] sm:$0xff]
    %v3107 = vld [vmem:[%s1439 + $0x68] sm:$0xff]
    %v3108 = vld [vmem:[%s1439 + $0x70] sm:$0xff]
    %v3109 = vld [vmem:[%s1439 + $0x78] sm:$0xff]
    %v3110 = vld [vmem:[%s1439 + $0x80] sm:$0xff]
    %v3111 = vld [vmem:[%s1439 + $0x88] sm:$0xff]
    %v3112 = vld [vmem:[%s1439 + $0x90] sm:$0xff]
    %v3113 = vld [vmem:[%s1439 + $0x98] sm:$0xff]
    %v3114 = vld [vmem:[%s1439 + $0xa0] sm:$0xff]
    %v3115 = vld [vmem:[%s1439 + $0xa8] sm:$0xff]
    %v3116 = vld [vmem:[%s1439 + $0xb0] sm:$0xff]
    %v3117 = vld [vmem:[%s1439 + $0xb8] sm:$0xff]
    %v3118 = vld [vmem:[%s1439 + $0xc0] sm:$0xff]
    %v3119 = vld [vmem:[%s1439 + $0xc8] sm:$0xff]
    %v3120 = vld [vmem:[%s1439 + $0xd0] sm:$0xff]
    %v3121 = vld [vmem:[%s1439 + $0xd8] sm:$0xff]
    %v3122 = vld [vmem:[%s1439 + $0xe0] sm:$0xff]
    %v3123 = vld [vmem:[%s1439 + $0xe8] sm:$0xff]
    %v3124 = vld [vmem:[%s1439 + $0xf0] sm:$0xff]
    %v3125 = vld [vmem:[%s1439 + $0xf8] sm:$0xff]
    %s3126 = scalar_lea.vmem [#allocation12], 1536
    %v3127 = vld [vmem:[%s3126] sm:$0xff]
    %v3128 = vld [vmem:[%s3126 + $0x8] sm:$0xff]
    %v3129 = vld [vmem:[%s3126 + $0x10] sm:$0xff]
    %v3130 = vld [vmem:[%s3126 + $0x18] sm:$0xff]
    %v3131 = vld [vmem:[%s3126 + $0x20] sm:$0xff]
    %v3132 = vld [vmem:[%s3126 + $0x28] sm:$0xff]
    %v3133 = vld [vmem:[%s3126 + $0x30] sm:$0xff]
    %v3134 = vld [vmem:[%s3126 + $0x38] sm:$0xff]
    %v3135 = vld [vmem:[%s3126 + $0x40] sm:$0xff]
    %v3136 = vld [vmem:[%s3126 + $0x48] sm:$0xff]
    %v3137 = vld [vmem:[%s3126 + $0x50] sm:$0xff]
    %v3138 = vld [vmem:[%s3126 + $0x58] sm:$0xff]
    %v3139 = vld [vmem:[%s3126 + $0x60] sm:$0xff]
    %v3140 = vld [vmem:[%s3126 + $0x68] sm:$0xff]
    %v3141 = vld [vmem:[%s3126 + $0x70] sm:$0xff]
    %v3142 = vld [vmem:[%s3126 + $0x78] sm:$0xff]
    %v3143 = vld [vmem:[%s3126 + $0x80] sm:$0xff]
    %v3144 = vld [vmem:[%s3126 + $0x88] sm:$0xff]
    %v3145 = vld [vmem:[%s3126 + $0x90] sm:$0xff]
    %v3146 = vld [vmem:[%s3126 + $0x98] sm:$0xff]
    %v3147 = vld [vmem:[%s3126 + $0xa0] sm:$0xff]
    %v3148 = vld [vmem:[%s3126 + $0xa8] sm:$0xff]
    %v3149 = vld [vmem:[%s3126 + $0xb0] sm:$0xff]
    %v3150 = vld [vmem:[%s3126 + $0xb8] sm:$0xff]
    %v3151 = vld [vmem:[%s3126 + $0xc0] sm:$0xff]
    %v3152 = vld [vmem:[%s3126 + $0xc8] sm:$0xff]
    %v3153 = vld [vmem:[%s3126 + $0xd0] sm:$0xff]
    %v3154 = vld [vmem:[%s3126 + $0xd8] sm:$0xff]
    %v3155 = vld [vmem:[%s3126 + $0xe0] sm:$0xff]
    %v3156 = vld [vmem:[%s3126 + $0xe8] sm:$0xff]
    %v3157 = vld [vmem:[%s3126 + $0xf0] sm:$0xff]
    %v3158 = vld [vmem:[%s3126 + $0xf8] sm:$0xff]
    %v3159 = vld [vmem:[%s3126 + $0x100] sm:$0xff]
    %v3160 = vld [vmem:[%s3126 + $0x108] sm:$0xff]
    %v3161 = vld [vmem:[%s3126 + $0x110] sm:$0xff]
    %v3162 = vld [vmem:[%s3126 + $0x118] sm:$0xff]
    %v3163 = vld [vmem:[%s3126 + $0x120] sm:$0xff]
    %v3164 = vld [vmem:[%s3126 + $0x128] sm:$0xff]
    %v3165 = vld [vmem:[%s3126 + $0x130] sm:$0xff]
    %v3166 = vld [vmem:[%s3126 + $0x138] sm:$0xff]
    %v3167 = vld [vmem:[%s3126 + $0x140] sm:$0xff]
    %v3168 = vld [vmem:[%s3126 + $0x148] sm:$0xff]
    %v3169 = vld [vmem:[%s3126 + $0x150] sm:$0xff]
    %v3170 = vld [vmem:[%s3126 + $0x158] sm:$0xff]
    %v3171 = vld [vmem:[%s3126 + $0x160] sm:$0xff]
    %v3172 = vld [vmem:[%s3126 + $0x168] sm:$0xff]
    %v3173 = vld [vmem:[%s3126 + $0x170] sm:$0xff]
    %v3174 = vld [vmem:[%s3126 + $0x178] sm:$0xff]
    %v3175 = vld [vmem:[%s3126 + $0x180] sm:$0xff]
    %v3176 = vld [vmem:[%s3126 + $0x188] sm:$0xff]
    %v3177 = vld [vmem:[%s3126 + $0x190] sm:$0xff]
    %v3178 = vld [vmem:[%s3126 + $0x198] sm:$0xff]
    %v3179 = vld [vmem:[%s3126 + $0x1a0] sm:$0xff]
    %v3180 = vld [vmem:[%s3126 + $0x1a8] sm:$0xff]
    %v3181 = vld [vmem:[%s3126 + $0x1b0] sm:$0xff]
    %v3182 = vld [vmem:[%s3126 + $0x1b8] sm:$0xff]
    %v3183 = vld [vmem:[%s3126 + $0x1c0] sm:$0xff]
    %v3184 = vld [vmem:[%s3126 + $0x1c8] sm:$0xff]
    %v3185 = vld [vmem:[%s3126 + $0x1d0] sm:$0xff]
    %v3186 = vld [vmem:[%s3126 + $0x1d8] sm:$0xff]
    %v3187 = vld [vmem:[%s3126 + $0x1e0] sm:$0xff]
    %v3188 = vld [vmem:[%s3126 + $0x1e8] sm:$0xff]
    %v3189 = vld [vmem:[%s3126 + $0x1f0] sm:$0xff]
    %v3190 = vld [vmem:[%s3126 + $0x1f8] sm:$0xff]
    %3191 = vmatprep.subr.mxu0 %v3128
    %3192 = vmatpush1.msra.mxu0 %v3127
    %3193 = vmatprep.subr.mxu0 %v3130
    %3194 = vmatpush1.msra.mxu0 %v3129
    %3195 = vmatprep.subr.mxu0 %v3132
    %3196 = vmatpush1.msra.mxu0 %v3131
    %3197 = vmatprep.subr.mxu0 %v3134
    %3198 = vmatpush1.msra.mxu0 %v3133
    %3199 = vmatprep.subr.mxu0 %v3136
    %3200 = vmatpush1.msra.mxu0 %v3135
    %3201 = vmatprep.subr.mxu0 %v3138
    %3202 = vmatpush1.msra.mxu0 %v3137
    %3203 = vmatprep.subr.mxu0 %v3140
    %3204 = vmatpush1.msra.mxu0 %v3139
    %3205 = vmatprep.subr.mxu0 %v3142
    %3206 = vmatpush1.msra.mxu0 %v3141
    %3207 = vmatprep.subr.mxu0 %v3144
    %3208 = vmatpush1.msra.mxu0 %v3143
    %3209 = vmatprep.subr.mxu0 %v3146
    %3210 = vmatpush1.msra.mxu0 %v3145
    %3211 = vmatprep.subr.mxu0 %v3148
    %3212 = vmatpush1.msra.mxu0 %v3147
    %3213 = vmatprep.subr.mxu0 %v3150
    %3214 = vmatpush1.msra.mxu0 %v3149
    %3215 = vmatprep.subr.mxu0 %v3152
    %3216 = vmatpush1.msra.mxu0 %v3151
    %3217 = vmatprep.subr.mxu0 %v3154
    %3218 = vmatpush1.msra.mxu0 %v3153
    %3219 = vmatprep.subr.mxu0 %v3156
    %3220 = vmatpush1.msra.mxu0 %v3155
    %3221 = vmatprep.subr.mxu0 %v3158
    %3222 = vmatpush1.msra.mxu0 %v3157
    %3223 = vmatprep.subr.mxu0 %v3160
    %3224 = vmatpush1.msra.mxu0 %v3159
    %3225 = vmatprep.subr.mxu0 %v3162
    %3226 = vmatpush1.msra.mxu0 %v3161
    %3227 = vmatprep.subr.mxu0 %v3164
    %3228 = vmatpush1.msra.mxu0 %v3163
    %3229 = vmatprep.subr.mxu0 %v3166
    %3230 = vmatpush1.msra.mxu0 %v3165
    %3231 = vmatprep.subr.mxu0 %v3168
    %3232 = vmatpush1.msra.mxu0 %v3167
    %3233 = vmatprep.subr.mxu0 %v3170
    %3234 = vmatpush1.msra.mxu0 %v3169
    %3235 = vmatprep.subr.mxu0 %v3172
    %3236 = vmatpush1.msra.mxu0 %v3171
    %3237 = vmatprep.subr.mxu0 %v3174
    %3238 = vmatpush1.msra.mxu0 %v3173
    %3239 = vmatprep.subr.mxu0 %v3176
    %3240 = vmatpush1.msra.mxu0 %v3175
    %3241 = vmatprep.subr.mxu0 %v3178
    %3242 = vmatpush1.msra.mxu0 %v3177
    %3243 = vmatprep.subr.mxu0 %v3180
    %3244 = vmatpush1.msra.mxu0 %v3179
    %3245 = vmatprep.subr.mxu0 %v3182
    %3246 = vmatpush1.msra.mxu0 %v3181
    %3247 = vmatprep.subr.mxu0 %v3184
    %3248 = vmatpush1.msra.mxu0 %v3183
    %3249 = vmatprep.subr.mxu0 %v3186
    %3250 = vmatpush1.msra.mxu0 %v3185
    %3251 = vmatprep.subr.mxu0 %v3188
    %3252 = vmatpush1.msra.mxu0 %v3187
    %3253 = vmatprep.subr.mxu0 %v3190
    %3254 = vmatpush1.msra.mxu0 %v3189
    %3255 = vmatprep.mubr.f32.mxu0 %v3095
    %3256 = vmatmul.mubr.f32.gmra.mrb[0].mxu0 %v3094
    %v3257 = vpop.f32.mrb[0].mxu0
    %v3258 = vadd.f32 0.0, %v3257
    %v3259 = vpop.f32.mrb[0].mxu0
    %v3260 = vadd.f32 0.0, %v3259
    %3261 = vmatprep.mubr.f32.mxu0 %v3097
    %3262 = vmatmul.mubr.f32.gmra.mrb[0].mxu0 %v3096
    %v3263 = vpop.f32.mrb[0].mxu0
    %v3264 = vadd.f32 0.0, %v3263
    %v3265 = vpop.f32.mrb[0].mxu0
    %v3266 = vadd.f32 0.0, %v3265
    %3267 = vmatprep.mubr.f32.mxu0 %v3099
    %3268 = vmatmul.mubr.f32.gmra.mrb[0].mxu0 %v3098
    %v3269 = vpop.f32.mrb[0].mxu0
    %v3270 = vadd.f32 0.0, %v3269
    %v3271 = vpop.f32.mrb[0].mxu0
    %v3272 = vadd.f32 0.0, %v3271
    %3273 = vmatprep.mubr.f32.mxu0 %v3101
    %3274 = vmatmul.mubr.f32.gmra.mrb[0].mxu0 %v3100
    %v3275 = vpop.f32.mrb[0].mxu0
    %v3276 = vadd.f32 0.0, %v3275
    %v3277 = vpop.f32.mrb[0].mxu0
    %v3278 = vadd.f32 0.0, %v3277
    %3279 = vmatprep.mubr.f32.mxu0 %v3103
    %3280 = vmatmul.mubr.f32.gmra.mrb[0].mxu0 %v3102
    %v3281 = vpop.f32.mrb[0].mxu0
    %v3282 = vadd.f32 0.0, %v3281
    %v3283 = vpop.f32.mrb[0].mxu0
    %v3284 = vadd.f32 0.0, %v3283
    %3285 = vmatprep.mubr.f32.mxu0 %v3105
    %3286 = vmatmul.mubr.f32.gmra.mrb[0].mxu0 %v3104
    %v3287 = vpop.f32.mrb[0].mxu0
    %v3288 = vadd.f32 0.0, %v3287
    %v3289 = vpop.f32.mrb[0].mxu0
    %v3290 = vadd.f32 0.0, %v3289
    %3291 = vmatprep.mubr.f32.mxu0 %v3107
    %3292 = vmatmul.mubr.f32.gmra.mrb[0].mxu0 %v3106
    %v3293 = vpop.f32.mrb[0].mxu0
    %v3294 = vadd.f32 0.0, %v3293
    %v3295 = vpop.f32.mrb[0].mxu0
    %v3296 = vadd.f32 0.0, %v3295
    %3297 = vmatprep.mubr.f32.mxu0 %v3109
    %3298 = vmatmul.mubr.f32.gmra.mrb[0].mxu0 %v3108
    %v3299 = vpop.f32.mrb[0].mxu0
    %v3300 = vadd.f32 0.0, %v3299
    %v3301 = vpop.f32.mrb[0].mxu0
    %v3302 = vadd.f32 0.0, %v3301
    %3303 = vmatprep.mubr.f32.mxu0 %v3111
    %3304 = vmatmul.mubr.f32.gmra.mrb[0].mxu0 %v3110
    %v3305 = vpop.f32.mrb[0].mxu0
    %v3306 = vadd.f32 0.0, %v3305
    %v3307 = vpop.f32.mrb[0].mxu0
    %v3308 = vadd.f32 0.0, %v3307
    %3309 = vmatprep.mubr.f32.mxu0 %v3113
    %3310 = vmatmul.mubr.f32.gmra.mrb[0].mxu0 %v3112
    %v3311 = vpop.f32.mrb[0].mxu0
    %v3312 = vadd.f32 0.0, %v3311
    %v3313 = vpop.f32.mrb[0].mxu0
    %v3314 = vadd.f32 0.0, %v3313
    %3315 = vmatprep.mubr.f32.mxu0 %v3115
    %3316 = vmatmul.mubr.f32.gmra.mrb[0].mxu0 %v3114
    %v3317 = vpop.f32.mrb[0].mxu0
    %v3318 = vadd.f32 0.0, %v3317
    %v3319 = vpop.f32.mrb[0].mxu0
    %v3320 = vadd.f32 0.0, %v3319
    %3321 = vmatprep.mubr.f32.mxu0 %v3117
    %3322 = vmatmul.mubr.f32.gmra.mrb[0].mxu0 %v3116
    %v3323 = vpop.f32.mrb[0].mxu0
    %v3324 = vadd.f32 0.0, %v3323
    %v3325 = vpop.f32.mrb[0].mxu0
    %v3326 = vadd.f32 0.0, %v3325
    %3327 = vmatprep.mubr.f32.mxu0 %v3119
    %3328 = vmatmul.mubr.f32.gmra.mrb[0].mxu0 %v3118
    %v3329 = vpop.f32.mrb[0].mxu0
    %v3330 = vadd.f32 0.0, %v3329
    %v3331 = vpop.f32.mrb[0].mxu0
    %v3332 = vadd.f32 0.0, %v3331
    %3333 = vmatprep.mubr.f32.mxu0 %v3121
    %3334 = vmatmul.mubr.f32.gmra.mrb[0].mxu0 %v3120
    %v3335 = vpop.f32.mrb[0].mxu0
    %v3336 = vadd.f32 0.0, %v3335
    %v3337 = vpop.f32.mrb[0].mxu0
    %v3338 = vadd.f32 0.0, %v3337
    %3339 = vmatprep.mubr.f32.mxu0 %v3123
    %3340 = vmatmul.mubr.f32.gmra.mrb[0].mxu0 %v3122
    %v3341 = vpop.f32.mrb[0].mxu0
    %v3342 = vadd.f32 0.0, %v3341
    %v3343 = vpop.f32.mrb[0].mxu0
    %v3344 = vadd.f32 0.0, %v3343
    %3345 = vmatprep.mubr.f32.mxu0 %v3125
    %3346 = vmatmul.mubr.f32.gmra.mrb[0].mxu0 %v3124
    %v3347 = vpop.f32.mrb[0].mxu0
    %v3348 = vadd.f32 0.0, %v3347
    %v3349 = vpop.f32.mrb[0].mxu0
    %v3350 = vadd.f32 0.0, %v3349
    %3351 = vdwg.mxu0
    %v3352 = vadd.f32 %v3062, %v3258
    %v3353 = vadd.f32 %v3063, %v3260
    %v3354 = vadd.f32 %v3064, %v3264
    %v3355 = vadd.f32 %v3065, %v3266
    %v3356 = vadd.f32 %v3066, %v3270
    %v3357 = vadd.f32 %v3067, %v3272
    %v3358 = vadd.f32 %v3068, %v3276
    %v3359 = vadd.f32 %v3069, %v3278
    %v3360 = vadd.f32 %v3070, %v3282
    %v3361 = vadd.f32 %v3071, %v3284
    %v3362 = vadd.f32 %v3072, %v3288
    %v3363 = vadd.f32 %v3073, %v3290
    %v3364 = vadd.f32 %v3074, %v3294
    %v3365 = vadd.f32 %v3075, %v3296
    %v3366 = vadd.f32 %v3076, %v3300
    %v3367 = vadd.f32 %v3077, %v3302
    %v3368 = vadd.f32 %v3078, %v3306
    %v3369 = vadd.f32 %v3079, %v3308
    %v3370 = vadd.f32 %v3080, %v3312
    %v3371 = vadd.f32 %v3081, %v3314
    %v3372 = vadd.f32 %v3082, %v3318
    %v3373 = vadd.f32 %v3083, %v3320
    %v3374 = vadd.f32 %v3084, %v3324
    %v3375 = vadd.f32 %v3085, %v3326
    %v3376 = vadd.f32 %v3086, %v3330
    %v3377 = vadd.f32 %v3087, %v3332
    %v3378 = vadd.f32 %v3088, %v3336
    %v3379 = vadd.f32 %v3089, %v3338
    %v3380 = vadd.f32 %v3090, %v3342
    %v3381 = vadd.f32 %v3091, %v3344
    %v3382 = vadd.f32 %v3092, %v3348
    %v3383 = vadd.f32 %v3093, %v3350
    %v3384 = vld [vmem:[%s1730] sm:$0xff]
    %v3385 = vld [vmem:[%s1730 + $0x8] sm:$0xff]
    %v3386 = vld [vmem:[%s1730 + $0x10] sm:$0xff]
    %v3387 = vld [vmem:[%s1730 + $0x18] sm:$0xff]
    %v3388 = vld [vmem:[%s1730 + $0x20] sm:$0xff]
    %v3389 = vld [vmem:[%s1730 + $0x28] sm:$0xff]
    %v3390 = vld [vmem:[%s1730 + $0x30] sm:$0xff]
    %v3391 = vld [vmem:[%s1730 + $0x38] sm:$0xff]
    %v3392 = vld [vmem:[%s1730 + $0x40] sm:$0xff]
    %v3393 = vld [vmem:[%s1730 + $0x48] sm:$0xff]
    %v3394 = vld [vmem:[%s1730 + $0x50] sm:$0xff]
    %v3395 = vld [vmem:[%s1730 + $0x58] sm:$0xff]
    %v3396 = vld [vmem:[%s1730 + $0x60] sm:$0xff]
    %v3397 = vld [vmem:[%s1730 + $0x68] sm:$0xff]
    %v3398 = vld [vmem:[%s1730 + $0x70] sm:$0xff]
    %v3399 = vld [vmem:[%s1730 + $0x78] sm:$0xff]
    %v3400 = vld [vmem:[%s1730 + $0x80] sm:$0xff]
    %v3401 = vld [vmem:[%s1730 + $0x88] sm:$0xff]
    %v3402 = vld [vmem:[%s1730 + $0x90] sm:$0xff]
    %v3403 = vld [vmem:[%s1730 + $0x98] sm:$0xff]
    %v3404 = vld [vmem:[%s1730 + $0xa0] sm:$0xff]
    %v3405 = vld [vmem:[%s1730 + $0xa8] sm:$0xff]
    %v3406 = vld [vmem:[%s1730 + $0xb0] sm:$0xff]
    %v3407 = vld [vmem:[%s1730 + $0xb8] sm:$0xff]
    %v3408 = vld [vmem:[%s1730 + $0xc0] sm:$0xff]
    %v3409 = vld [vmem:[%s1730 + $0xc8] sm:$0xff]
    %v3410 = vld [vmem:[%s1730 + $0xd0] sm:$0xff]
    %v3411 = vld [vmem:[%s1730 + $0xd8] sm:$0xff]
    %v3412 = vld [vmem:[%s1730 + $0xe0] sm:$0xff]
    %v3413 = vld [vmem:[%s1730 + $0xe8] sm:$0xff]
    %v3414 = vld [vmem:[%s1730 + $0xf0] sm:$0xff]
    %v3415 = vld [vmem:[%s1730 + $0xf8] sm:$0xff]
    %s3416 = scalar_lea.vmem [#allocation12], 2048
    %v3417 = vld [vmem:[%s3416] sm:$0xff]
    %v3418 = vld [vmem:[%s3416 + $0x8] sm:$0xff]
    %v3419 = vld [vmem:[%s3416 + $0x10] sm:$0xff]
    %v3420 = vld [vmem:[%s3416 + $0x18] sm:$0xff]
    %v3421 = vld [vmem:[%s3416 + $0x20] sm:$0xff]
    %v3422 = vld [vmem:[%s3416 + $0x28] sm:$0xff]
    %v3423 = vld [vmem:[%s3416 + $0x30] sm:$0xff]
    %v3424 = vld [vmem:[%s3416 + $0x38] sm:$0xff]
    %v3425 = vld [vmem:[%s3416 + $0x40] sm:$0xff]
    %v3426 = vld [vmem:[%s3416 + $0x48] sm:$0xff]
    %v3427 = vld [vmem:[%s3416 + $0x50] sm:$0xff]
    %v3428 = vld [vmem:[%s3416 + $0x58] sm:$0xff]
    %v3429 = vld [vmem:[%s3416 + $0x60] sm:$0xff]
    %v3430 = vld [vmem:[%s3416 + $0x68] sm:$0xff]
    %v3431 = vld [vmem:[%s3416 + $0x70] sm:$0xff]
    %v3432 = vld [vmem:[%s3416 + $0x78] sm:$0xff]
    %v3433 = vld [vmem:[%s3416 + $0x80] sm:$0xff]
    %v3434 = vld [vmem:[%s3416 + $0x88] sm:$0xff]
    %v3435 = vld [vmem:[%s3416 + $0x90] sm:$0xff]
    %v3436 = vld [vmem:[%s3416 + $0x98] sm:$0xff]
    %v3437 = vld [vmem:[%s3416 + $0xa0] sm:$0xff]
    %v3438 = vld [vmem:[%s3416 + $0xa8] sm:$0xff]
    %v3439 = vld [vmem:[%s3416 + $0xb0] sm:$0xff]
    %v3440 = vld [vmem:[%s3416 + $0xb8] sm:$0xff]
    %v3441 = vld [vmem:[%s3416 + $0xc0] sm:$0xff]
    %v3442 = vld [vmem:[%s3416 + $0xc8] sm:$0xff]
    %v3443 = vld [vmem:[%s3416 + $0xd0] sm:$0xff]
    %v3444 = vld [vmem:[%s3416 + $0xd8] sm:$0xff]
    %v3445 = vld [vmem:[%s3416 + $0xe0] sm:$0xff]
    %v3446 = vld [vmem:[%s3416 + $0xe8] sm:$0xff]
    %v3447 = vld [vmem:[%s3416 + $0xf0] sm:$0xff]
    %v3448 = vld [vmem:[%s3416 + $0xf8] sm:$0xff]
    %v3449 = vld [vmem:[%s3416 + $0x100] sm:$0xff]
    %v3450 = vld [vmem:[%s3416 + $0x108] sm:$0xff]
    %v3451 = vld [vmem:[%s3416 + $0x110] sm:$0xff]
    %v3452 = vld [vmem:[%s3416 + $0x118] sm:$0xff]
    %v3453 = vld [vmem:[%s3416 + $0x120] sm:$0xff]
    %v3454 = vld [vmem:[%s3416 + $0x128] sm:$0xff]
    %v3455 = vld [vmem:[%s3416 + $0x130] sm:$0xff]
    %v3456 = vld [vmem:[%s3416 + $0x138] sm:$0xff]
    %v3457 = vld [vmem:[%s3416 + $0x140] sm:$0xff]
    %v3458 = vld [vmem:[%s3416 + $0x148] sm:$0xff]
    %v3459 = vld [vmem:[%s3416 + $0x150] sm:$0xff]
    %v3460 = vld [vmem:[%s3416 + $0x158] sm:$0xff]
    %v3461 = vld [vmem:[%s3416 + $0x160] sm:$0xff]
    %v3462 = vld [vmem:[%s3416 + $0x168] sm:$0xff]
    %v3463 = vld [vmem:[%s3416 + $0x170] sm:$0xff]
    %v3464 = vld [vmem:[%s3416 + $0x178] sm:$0xff]
    %v3465 = vld [vmem:[%s3416 + $0x180] sm:$0xff]
    %v3466 = vld [vmem:[%s3416 + $0x188] sm:$0xff]
    %v3467 = vld [vmem:[%s3416 + $0x190] sm:$0xff]
    %v3468 = vld [vmem:[%s3416 + $0x198] sm:$0xff]
    %v3469 = vld [vmem:[%s3416 + $0x1a0] sm:$0xff]
    %v3470 = vld [vmem:[%s3416 + $0x1a8] sm:$0xff]
    %v3471 = vld [vmem:[%s3416 + $0x1b0] sm:$0xff]
    %v3472 = vld [vmem:[%s3416 + $0x1b8] sm:$0xff]
    %v3473 = vld [vmem:[%s3416 + $0x1c0] sm:$0xff]
    %v3474 = vld [vmem:[%s3416 + $0x1c8] sm:$0xff]
    %v3475 = vld [vmem:[%s3416 + $0x1d0] sm:$0xff]
    %v3476 = vld [vmem:[%s3416 + $0x1d8] sm:$0xff]
    %v3477 = vld [vmem:[%s3416 + $0x1e0] sm:$0xff]
    %v3478 = vld [vmem:[%s3416 + $0x1e8] sm:$0xff]
    %v3479 = vld [vmem:[%s3416 + $0x1f0] sm:$0xff]
    %v3480 = vld [vmem:[%s3416 + $0x1f8] sm:$0xff]
    %3481 = vmatprep.subr.mxu0 %v3418
    %3482 = vmatpush1.msra.mxu0 %v3417
    %3483 = vmatprep.subr.mxu0 %v3420
    %3484 = vmatpush1.msra.mxu0 %v3419
    %3485 = vmatprep.subr.mxu0 %v3422
    %3486 = vmatpush1.msra.mxu0 %v3421
    %3487 = vmatprep.subr.mxu0 %v3424
    %3488 = vmatpush1.msra.mxu0 %v3423
    %3489 = vmatprep.subr.mxu0 %v3426
    %3490 = vmatpush1.msra.mxu0 %v3425
    %3491 = vmatprep.subr.mxu0 %v3428
    %3492 = vmatpush1.msra.mxu0 %v3427
    %3493 = vmatprep.subr.mxu0 %v3430
    %3494 = vmatpush1.msra.mxu0 %v3429
    %3495 = vmatprep.subr.mxu0 %v3432
    %3496 = vmatpush1.msra.mxu0 %v3431
    %3497 = vmatprep.subr.mxu0 %v3434
    %3498 = vmatpush1.msra.mxu0 %v3433
    %3499 = vmatprep.subr.mxu0 %v3436
    %3500 = vmatpush1.msra.mxu0 %v3435
    %3501 = vmatprep.subr.mxu0 %v3438
    %3502 = vmatpush1.msra.mxu0 %v3437
    %3503 = vmatprep.subr.mxu0 %v3440
    %3504 = vmatpush1.msra.mxu0 %v3439
    %3505 = vmatprep.subr.mxu0 %v3442
    %3506 = vmatpush1.msra.mxu0 %v3441
    %3507 = vmatprep.subr.mxu0 %v3444
    %3508 = vmatpush1.msra.mxu0 %v3443
    %3509 = vmatprep.subr.mxu0 %v3446
    %3510 = vmatpush1.msra.mxu0 %v3445
    %3511 = vmatprep.subr.mxu0 %v3448
    %3512 = vmatpush1.msra.mxu0 %v3447
    %3513 = vmatprep.subr.mxu0 %v3450
    %3514 = vmatpush1.msra.mxu0 %v3449
    %3515 = vmatprep.subr.mxu0 %v3452
    %3516 = vmatpush1.msra.mxu0 %v3451
    %3517 = vmatprep.subr.mxu0 %v3454
    %3518 = vmatpush1.msra.mxu0 %v3453
    %3519 = vmatprep.subr.mxu0 %v3456
    %3520 = vmatpush1.msra.mxu0 %v3455
    %3521 = vmatprep.subr.mxu0 %v3458
    %3522 = vmatpush1.msra.mxu0 %v3457
    %3523 = vmatprep.subr.mxu0 %v3460
    %3524 = vmatpush1.msra.mxu0 %v3459
    %3525 = vmatprep.subr.mxu0 %v3462
    %3526 = vmatpush1.msra.mxu0 %v3461
    %3527 = vmatprep.subr.mxu0 %v3464
    %3528 = vmatpush1.msra.mxu0 %v3463
    %3529 = vmatprep.subr.mxu0 %v3466
    %3530 = vmatpush1.msra.mxu0 %v3465
    %3531 = vmatprep.subr.mxu0 %v3468
    %3532 = vmatpush1.msra.mxu0 %v3467
    %3533 = vmatprep.subr.mxu0 %v3470
    %3534 = vmatpush1.msra.mxu0 %v3469
    %3535 = vmatprep.subr.mxu0 %v3472
    %3536 = vmatpush1.msra.mxu0 %v3471
    %3537 = vmatprep.subr.mxu0 %v3474
    %3538 = vmatpush1.msra.mxu0 %v3473
    %3539 = vmatprep.subr.mxu0 %v3476
    %3540 = vmatpush1.msra.mxu0 %v3475
    %3541 = vmatprep.subr.mxu0 %v3478
    %3542 = vmatpush1.msra.mxu0 %v3477
    %3543 = vmatprep.subr.mxu0 %v3480
    %3544 = vmatpush1.msra.mxu0 %v3479
    %3545 = vmatprep.mubr.f32.mxu0 %v3385
    %3546 = vmatmul.mubr.f32.gmra.mrb[0].mxu0 %v3384
    %v3547 = vpop.f32.mrb[0].mxu0
    %v3548 = vadd.f32 0.0, %v3547
    %v3549 = vpop.f32.mrb[0].mxu0
    %v3550 = vadd.f32 0.0, %v3549
    %3551 = vmatprep.mubr.f32.mxu0 %v3387
    %3552 = vmatmul.mubr.f32.gmra.mrb[0].mxu0 %v3386
    %v3553 = vpop.f32.mrb[0].mxu0
    %v3554 = vadd.f32 0.0, %v3553
    %v3555 = vpop.f32.mrb[0].mxu0
    %v3556 = vadd.f32 0.0, %v3555
    %3557 = vmatprep.mubr.f32.mxu0 %v3389
    %3558 = vmatmul.mubr.f32.gmra.mrb[0].mxu0 %v3388
    %v3559 = vpop.f32.mrb[0].mxu0
    %v3560 = vadd.f32 0.0, %v3559
    %v3561 = vpop.f32.mrb[0].mxu0
    %v3562 = vadd.f32 0.0, %v3561
    %3563 = vmatprep.mubr.f32.mxu0 %v3391
    %3564 = vmatmul.mubr.f32.gmra.mrb[0].mxu0 %v3390
    %v3565 = vpop.f32.mrb[0].mxu0
    %v3566 = vadd.f32 0.0, %v3565
    %v3567 = vpop.f32.mrb[0].mxu0
    %v3568 = vadd.f32 0.0, %v3567
    %3569 = vmatprep.mubr.f32.mxu0 %v3393
    %3570 = vmatmul.mubr.f32.gmra.mrb[0].mxu0 %v3392
    %v3571 = vpop.f32.mrb[0].mxu0
    %v3572 = vadd.f32 0.0, %v3571
    %v3573 = vpop.f32.mrb[0].mxu0
    %v3574 = vadd.f32 0.0, %v3573
    %3575 = vmatprep.mubr.f32.mxu0 %v3395
    %3576 = vmatmul.mubr.f32.gmra.mrb[0].mxu0 %v3394
    %v3577 = vpop.f32.mrb[0].mxu0
    %v3578 = vadd.f32 0.0, %v3577
    %v3579 = vpop.f32.mrb[0].mxu0
    %v3580 = vadd.f32 0.0, %v3579
    %3581 = vmatprep.mubr.f32.mxu0 %v3397
    %3582 = vmatmul.mubr.f32.gmra.mrb[0].mxu0 %v3396
    %v3583 = vpop.f32.mrb[0].mxu0
    %v3584 = vadd.f32 0.0, %v3583
    %v3585 = vpop.f32.mrb[0].mxu0
    %v3586 = vadd.f32 0.0, %v3585
    %3587 = vmatprep.mubr.f32.mxu0 %v3399
    %3588 = vmatmul.mubr.f32.gmra.mrb[0].mxu0 %v3398
    %v3589 = vpop.f32.mrb[0].mxu0
    %v3590 = vadd.f32 0.0, %v3589
    %v3591 = vpop.f32.mrb[0].mxu0
    %v3592 = vadd.f32 0.0, %v3591
    %3593 = vmatprep.mubr.f32.mxu0 %v3401
    %3594 = vmatmul.mubr.f32.gmra.mrb[0].mxu0 %v3400
    %v3595 = vpop.f32.mrb[0].mxu0
    %v3596 = vadd.f32 0.0, %v3595
    %v3597 = vpop.f32.mrb[0].mxu0
    %v3598 = vadd.f32 0.0, %v3597
    %3599 = vmatprep.mubr.f32.mxu0 %v3403
    %3600 = vmatmul.mubr.f32.gmra.mrb[0].mxu0 %v3402
    %v3601 = vpop.f32.mrb[0].mxu0
    %v3602 = vadd.f32 0.0, %v3601
    %v3603 = vpop.f32.mrb[0].mxu0
    %v3604 = vadd.f32 0.0, %v3603
    %3605 = vmatprep.mubr.f32.mxu0 %v3405
    %3606 = vmatmul.mubr.f32.gmra.mrb[0].mxu0 %v3404
    %v3607 = vpop.f32.mrb[0].mxu0
    %v3608 = vadd.f32 0.0, %v3607
    %v3609 = vpop.f32.mrb[0].mxu0
    %v3610 = vadd.f32 0.0, %v3609
    %3611 = vmatprep.mubr.f32.mxu0 %v3407
    %3612 = vmatmul.mubr.f32.gmra.mrb[0].mxu0 %v3406
    %v3613 = vpop.f32.mrb[0].mxu0
    %v3614 = vadd.f32 0.0, %v3613
    %v3615 = vpop.f32.mrb[0].mxu0
    %v3616 = vadd.f32 0.0, %v3615
    %3617 = vmatprep.mubr.f32.mxu0 %v3409
    %3618 = vmatmul.mubr.f32.gmra.mrb[0].mxu0 %v3408
    %v3619 = vpop.f32.mrb[0].mxu0
    %v3620 = vadd.f32 0.0, %v3619
    %v3621 = vpop.f32.mrb[0].mxu0
    %v3622 = vadd.f32 0.0, %v3621
    %3623 = vmatprep.mubr.f32.mxu0 %v3411
    %3624 = vmatmul.mubr.f32.gmra.mrb[0].mxu0 %v3410
    %v3625 = vpop.f32.mrb[0].mxu0
    %v3626 = vadd.f32 0.0, %v3625
    %v3627 = vpop.f32.mrb[0].mxu0
    %v3628 = vadd.f32 0.0, %v3627
    %3629 = vmatprep.mubr.f32.mxu0 %v3413
    %3630 = vmatmul.mubr.f32.gmra.mrb[0].mxu0 %v3412
    %v3631 = vpop.f32.mrb[0].mxu0
    %v3632 = vadd.f32 0.0, %v3631
    %v3633 = vpop.f32.mrb[0].mxu0
    %v3634 = vadd.f32 0.0, %v3633
    %3635 = vmatprep.mubr.f32.mxu0 %v3415
    %3636 = vmatmul.mubr.f32.gmra.mrb[0].mxu0 %v3414
    %v3637 = vpop.f32.mrb[0].mxu0
    %v3638 = vadd.f32 0.0, %v3637
    %v3639 = vpop.f32.mrb[0].mxu0
    %v3640 = vadd.f32 0.0, %v3639
    %3641 = vdwg.mxu0
    %v3642 = vadd.f32 %v3352, %v3548
    %v3643 = vadd.f32 %v3353, %v3550
    %v3644 = vadd.f32 %v3354, %v3554
    %v3645 = vadd.f32 %v3355, %v3556
    %v3646 = vadd.f32 %v3356, %v3560
    %v3647 = vadd.f32 %v3357, %v3562
    %v3648 = vadd.f32 %v3358, %v3566
    %v3649 = vadd.f32 %v3359, %v3568
    %v3650 = vadd.f32 %v3360, %v3572
    %v3651 = vadd.f32 %v3361, %v3574
    %v3652 = vadd.f32 %v3362, %v3578
    %v3653 = vadd.f32 %v3363, %v3580
    %v3654 = vadd.f32 %v3364, %v3584
    %v3655 = vadd.f32 %v3365, %v3586
    %v3656 = vadd.f32 %v3366, %v3590
    %v3657 = vadd.f32 %v3367, %v3592
    %v3658 = vadd.f32 %v3368, %v3596
    %v3659 = vadd.f32 %v3369, %v3598
    %v3660 = vadd.f32 %v3370, %v3602
    %v3661 = vadd.f32 %v3371, %v3604
    %v3662 = vadd.f32 %v3372, %v3608
    %v3663 = vadd.f32 %v3373, %v3610
    %v3664 = vadd.f32 %v3374, %v3614
    %v3665 = vadd.f32 %v3375, %v3616
    %v3666 = vadd.f32 %v3376, %v3620
    %v3667 = vadd.f32 %v3377, %v3622
    %v3668 = vadd.f32 %v3378, %v3626
    %v3669 = vadd.f32 %v3379, %v3628
    %v3670 = vadd.f32 %v3380, %v3632
    %v3671 = vadd.f32 %v3381, %v3634
    %v3672 = vadd.f32 %v3382, %v3638
    %v3673 = vadd.f32 %v3383, %v3640
    %v3674 = vadd.f32 %v3642, %v3644
    %v3675 = vadd.f32 %v3674, %v3646
    %v3676 = vadd.f32 %v3675, %v3648
    %v3677 = vadd.f32 %v3676, %v3650
    %v3678 = vadd.f32 %v3677, %v3652
    %v3679 = vadd.f32 %v3678, %v3654
    %v3680 = vadd.f32 %v3679, %v3656
    %v3681 = vadd.f32 %v3680, %v3658
    %v3682 = vadd.f32 %v3681, %v3660
    %v3683 = vadd.f32 %v3682, %v3662
    %v3684 = vadd.f32 %v3683, %v3664
    %v3685 = vadd.f32 %v3684, %v3666
    %v3686 = vadd.f32 %v3685, %v3668
    %v3687 = vadd.f32 %v3686, %v3670
    %v3688 = vadd.f32 %v3687, %v3672
    %v3689 = vadd.f32 %v3643, %v3645
    %v3690 = vadd.f32 %v3689, %v3647
    %v3691 = vadd.f32 %v3690, %v3649
    %v3692 = vadd.f32 %v3691, %v3651
    %v3693 = vadd.f32 %v3692, %v3653
    %v3694 = vadd.f32 %v3693, %v3655
    %v3695 = vadd.f32 %v3694, %v3657
    %v3696 = vadd.f32 %v3695, %v3659
    %v3697 = vadd.f32 %v3696, %v3661
    %v3698 = vadd.f32 %v3697, %v3663
    %v3699 = vadd.f32 %v3698, %v3665
    %v3700 = vadd.f32 %v3699, %v3667
    %v3701 = vadd.f32 %v3700, %v3669
    %v3702 = vadd.f32 %v3701, %v3671
    %v3703 = vadd.f32 %v3702, %v3673
    %v3706 = vcombine.low %v3688, %v3703
    %v3707 = vcombine.high %v3688, %v3703
    %v3710 = vcombine.high %v3706, %v3706
    %v3711 = vcombine.high %v3707, %v3707
    %vm3714 = vcmask 1043456
    %v3715 = vsel %vm3714, %v3706, 0.0
    %v3716 = vrot.slane %v3715, 4
    %v3717 = vadd.f32 %v3715, %v3716
    %v3718 = vrot.slane %v3717, 2
    %v3719 = vadd.f32 %v3717, %v3718
    %v3720 = vrot.slane %v3719, 1
    %v3721 = vadd.f32 %v3719, %v3720
    %v3722 = vsel %vm3714, %v3710, 0.0
    %v3723 = vrot.slane %v3722, 4
    %v3724 = vadd.f32 %v3722, %v3723
    %v3725 = vrot.slane %v3724, 2
    %v3726 = vadd.f32 %v3724, %v3725
    %v3727 = vrot.slane %v3726, 1
    %v3728 = vadd.f32 %v3726, %v3727
    %v3729 = vsel %vm3714, %v3707, 0.0
    %v3730 = vrot.slane %v3729, 4
    %v3731 = vadd.f32 %v3729, %v3730
    %v3732 = vrot.slane %v3731, 2
    %v3733 = vadd.f32 %v3731, %v3732
    %v3734 = vrot.slane %v3733, 1
    %v3735 = vadd.f32 %v3733, %v3734
    %v3736 = vsel %vm3714, %v3711, 0.0
    %v3737 = vrot.slane %v3736, 4
    %v3738 = vadd.f32 %v3736, %v3737
    %v3739 = vrot.slane %v3738, 2
    %v3740 = vadd.f32 %v3738, %v3739
    %v3741 = vrot.slane %v3740, 1
    %v3742 = vadd.f32 %v3740, %v3741
    %v3743 = vmul.f32 %v3721, 0.015625
    %v3744 = vmul.f32 %v3728, 0.015625
    %v3745 = vmul.f32 %v3735, 0.015625
    %v3746 = vmul.f32 %v3742, 0.015625
    %v3747 = vld [vmem:[%s7] sm:$0xff]
    %v3748 = vld [vmem:[%s7 + $0x8] sm:$0xff]
    %v3749 = vld [vmem:[%s7 + $0x10] sm:$0xff]
    %v3750 = vld [vmem:[%s7 + $0x18] sm:$0xff]
    %v3751 = vld [vmem:[%s7 + $0x20] sm:$0xff]
    %v3752 = vld [vmem:[%s7 + $0x28] sm:$0xff]
    %v3753 = vld [vmem:[%s7 + $0x30] sm:$0xff]
    %v3754 = vld [vmem:[%s7 + $0x38] sm:$0xff]
    %v3755 = vld [vmem:[%s7 + $0x40] sm:$0xff]
    %v3756 = vld [vmem:[%s7 + $0x48] sm:$0xff]
    %v3757 = vld [vmem:[%s7 + $0x50] sm:$0xff]
    %v3758 = vld [vmem:[%s7 + $0x58] sm:$0xff]
    %v3759 = vld [vmem:[%s7 + $0x60] sm:$0xff]
    %v3760 = vld [vmem:[%s7 + $0x68] sm:$0xff]
    %v3761 = vld [vmem:[%s7 + $0x70] sm:$0xff]
    %v3762 = vld [vmem:[%s7 + $0x78] sm:$0xff]
    %v3763 = vld [vmem:[%s7 + $0x80] sm:$0xff]
    %v3764 = vld [vmem:[%s7 + $0x88] sm:$0xff]
    %v3765 = vld [vmem:[%s7 + $0x90] sm:$0xff]
    %v3766 = vld [vmem:[%s7 + $0x98] sm:$0xff]
    %v3767 = vld [vmem:[%s7 + $0xa0] sm:$0xff]
    %v3768 = vld [vmem:[%s7 + $0xa8] sm:$0xff]
    %v3769 = vld [vmem:[%s7 + $0xb0] sm:$0xff]
    %v3770 = vld [vmem:[%s7 + $0xb8] sm:$0xff]
    %v3771 = vld [vmem:[%s7 + $0xc0] sm:$0xff]
    %v3772 = vld [vmem:[%s7 + $0xc8] sm:$0xff]
    %v3773 = vld [vmem:[%s7 + $0xd0] sm:$0xff]
    %v3774 = vld [vmem:[%s7 + $0xd8] sm:$0xff]
    %v3775 = vld [vmem:[%s7 + $0xe0] sm:$0xff]
    %v3776 = vld [vmem:[%s7 + $0xe8] sm:$0xff]
    %v3777 = vld [vmem:[%s7 + $0xf0] sm:$0xff]
    %v3778 = vld [vmem:[%s7 + $0xf8] sm:$0xff]
    %v3779 = vld [vmem:[#allocation15] sm:$0x1]
    %v3781 = vlaneseq
    %v3782 = vshrl.u32 %v3781, 7
    %v3783 = vsub.s32 0, %v3782
    %v3784 = vrot.slane %v3779, %v3783
    %vm3790 = vcmask 1041409
    %v3791 = vsel %vm3790, %v3745, %v3743
    %v3792 = vsel %vm3790, %v3746, %v3744
    %3795 = vmatprep.subr.mxu0 0.0
    %3796 = vmatpush1.msra.mxu0 %v3747
    %3797 = vmatprep.subr.mxu0 0.0
    %3798 = vmatpush1.msra.mxu0 %v3748
    %3799 = vmatprep.subr.mxu0 0.0
    %3800 = vmatpush1.msra.mxu0 %v3749
    %3801 = vmatprep.subr.mxu0 0.0
    %3802 = vmatpush1.msra.mxu0 %v3750
    %3803 = vmatprep.subr.mxu0 0.0
    %3804 = vmatpush1.msra.mxu0 %v3751
    %3805 = vmatprep.subr.mxu0 0.0
    %3806 = vmatpush1.msra.mxu0 %v3752
    %3807 = vmatprep.subr.mxu0 0.0
    %3808 = vmatpush1.msra.mxu0 %v3753
    %3809 = vmatprep.subr.mxu0 0.0
    %3810 = vmatpush1.msra.mxu0 %v3754
    %3811 = vmatprep.subr.mxu0 0.0
    %3812 = vmatpush1.msra.mxu0 %v3755
    %3813 = vmatprep.subr.mxu0 0.0
    %3814 = vmatpush1.msra.mxu0 %v3756
    %3815 = vmatprep.subr.mxu0 0.0
    %3816 = vmatpush1.msra.mxu0 %v3757
    %3817 = vmatprep.subr.mxu0 0.0
    %3818 = vmatpush1.msra.mxu0 %v3758
    %3819 = vmatprep.subr.mxu0 0.0
    %3820 = vmatpush1.msra.mxu0 %v3759
    %3821 = vmatprep.subr.mxu0 0.0
    %3822 = vmatpush1.msra.mxu0 %v3760
    %3823 = vmatprep.subr.mxu0 0.0
    %3824 = vmatpush1.msra.mxu0 %v3761
    %3825 = vmatprep.subr.mxu0 0.0
    %3826 = vmatpush1.msra.mxu0 %v3762
    %3827 = vmatprep.subr.mxu0 0.0
    %3828 = vmatpush1.msra.mxu0 %v3763
    %3829 = vmatprep.subr.mxu0 0.0
    %3830 = vmatpush1.msra.mxu0 %v3764
    %3831 = vmatprep.subr.mxu0 0.0
    %3832 = vmatpush1.msra.mxu0 %v3765
    %3833 = vmatprep.subr.mxu0 0.0
    %3834 = vmatpush1.msra.mxu0 %v3766
    %3835 = vmatprep.subr.mxu0 0.0
    %3836 = vmatpush1.msra.mxu0 %v3767
    %3837 = vmatprep.subr.mxu0 0.0
    %3838 = vmatpush1.msra.mxu0 %v3768
    %3839 = vmatprep.subr.mxu0 0.0
    %3840 = vmatpush1.msra.mxu0 %v3769
    %3841 = vmatprep.subr.mxu0 0.0
    %3842 = vmatpush1.msra.mxu0 %v3770
    %3843 = vmatprep.subr.mxu0 0.0
    %3844 = vmatpush1.msra.mxu0 %v3771
    %3845 = vmatprep.subr.mxu0 0.0
    %3846 = vmatpush1.msra.mxu0 %v3772
    %3847 = vmatprep.subr.mxu0 0.0
    %3848 = vmatpush1.msra.mxu0 %v3773
    %3849 = vmatprep.subr.mxu0 0.0
    %3850 = vmatpush1.msra.mxu0 %v3774
    %3851 = vmatprep.subr.mxu0 0.0
    %3852 = vmatpush1.msra.mxu0 %v3775
    %3853 = vmatprep.subr.mxu0 0.0
    %3854 = vmatpush1.msra.mxu0 %v3776
    %3855 = vmatprep.subr.mxu0 0.0
    %3856 = vmatpush1.msra.mxu0 %v3777
    %3857 = vmatprep.subr.mxu0 0.0
    %3858 = vmatpush1.msra.mxu0 %v3778
    %3859 = vmatprep.mubr.f32.mxu0 %v3792
    %3860 = vmatmul.mubr.f32.gmra.mrb[0].mxu0 %v3791
    %v3861 = vpop.f32.mrb[0].mxu0
    %v3862 = vadd.f32 %v3784, %v3861
    %v3863 = vpop.f32.mrb[0].mxu0
    %3864 = vdwg.mxu0
    %vm3865 = vcmask 25600
    %3866 = vst.msk [vmem:[#allocation17] sm:$0x3] %vm3865, %v3862
    // Predicated region
    $region70: #{tpu_custom_call.1} parent=1 // pred_check
      _
    $region71: #{tpu_custom_call.1} parent=1 // pred_check_branch
      %3868 = sbr.rel (0) target = $region73
    $region72: #{tpu_custom_call.1} parent=1 // pred_region
      %s3870 = ssub.s32 32, 32
      %3871 = vsyncadd [#allocation5], %s3870
      %s3873 = sshll.u32 [#allocation17], 4
      %s3874 = int_to_ptr.vmem [resolvable:$true] %s3873
      %3876 = dma.vmem_to_hbm [thread:$0]  %s3874, 32, %s9, [#allocation5]
    $region73: #{tpu_custom_call.1} parent=1 // pred_fallthru
      _
    // Predicated region
    $region74: #{tpu_custom_call.1} parent=1 // pred_check
      _
    $region75: #{tpu_custom_call.1} parent=1 // pred_check_branch
      %3878 = sbr.rel (0) target = $region77
    $region76: #{tpu_custom_call.1} parent=1 // pred_region
      %3879 = dma.done [#allocation5], 32
    $region77: #{tpu_custom_call.1} parent=1 // pred_fallthru
      _
    %3880 = vsyncpa [#allocation4], 1
    %3881 = vsyncpa [#allocation7], 1
    %3882 = vsyncpa [#allocation10], 1
    %3883 = vsyncpa [#allocation13], 1
    %3884 = vsyncpa [#allocation16], 1
    %3885 = vsyncpa [#allocation5], 1

</llo_original>
